<compile_context>
chip_gen: v6e
topology: v6e:2x2x1
jax: 0.10.0
libtpu: 0.0.40
codegen_flags: <defaults>
</compile_context>

<pallas_src>
import functools
import math

import jax
import jax.numpy as jnp
from jax.experimental import pallas as pl
from jax.experimental.pallas import tpu as pltpu

VOCAB = 50
VOCAB_PAD = 128     # lane-aligned contraction dim for the one-hot gather matmul
D_MODEL = 32        # small stand-in for default 256
N_HEADS = 4
D_FF = 64           # small stand-in for default 512
MAX_SEQ = 16
N_LAYERS = 2
LN_EPS = 1e-5
MISC_PAD = 128      # misc bias / LN rows padded to a full lane width


def _layernorm(x, gamma, beta):
    mu = jnp.mean(x, axis=-1, keepdims=True)
    var = jnp.mean((x - mu) ** 2, axis=-1, keepdims=True)
    return (x - mu) * jax.lax.rsqrt(var + LN_EPS) * gamma + beta


def _fused_encoder_kernel(B, S, D, H, DH, DFF, L,
                          tok_ref, emb_ref, pos_ref, mask_ref,
                          wqkv_ref, bqkv_ref, wo_ref, w1_ref, w2_ref,
                          misc_ref, o_ref):
    BS = B * S
    VP = emb_ref.shape[0]

    # --- embedding lookup as a lane-dense one-hot matmul + pre-tiled pos ----
    tok = tok_ref[...]                                               # (BS, 1) i32
    onehot = (tok == jax.lax.broadcasted_iota(jnp.int32, (BS, VP), 1)
              ).astype(jnp.float32)                                  # (BS, 128)
    x = jnp.dot(onehot, emb_ref[...], preferred_element_type=jnp.float32)
    x = x + pos_ref[...]                                             # (BS, D)

    # src_key_padding_mask -> additive key bias (1.0 = valid, 0.0 = padded)
    neg = jnp.where(mask_ref[...] == 0.0, -1e9, 0.0)[:, None, :]     # (B, 1, S)

    for l in range(L):
        m = misc_ref[l]                                              # (8, 128)
        bo = m[0:1, :D]
        ln1g, ln1b = m[1:2, :D], m[2:3, :D]
        b1 = m[3:4, :DFF]
        b2 = m[4:5, :D]
        ln2g, ln2b = m[5:6, :D], m[6:7, :D]

        # ---- fused QKV projection: one lane-dense (BS,D)@(D,3D) matmul ----
        # (1/sqrt(DH) is folded into the Wq / bq columns at pack time)
        qkv = jnp.dot(x, wqkv_ref[l], preferred_element_type=jnp.float32)
        qkv = qkv + bqkv_ref[l]                                      # (BS, 3D)
        qkv3 = qkv.reshape(B, S, 3 * D)                              # leading-dim split only

        # ---- attention: batch folded into einsum batch dim; static H loop ----
        ctx_heads = []
        for h in range(H):
            q = qkv3[:, :, h * DH:(h + 1) * DH]                      # (B, S, DH)
            k = qkv3[:, :, D + h * DH:D + (h + 1) * DH]              # (B, S, DH)
            v = qkv3[:, :, 2 * D + h * DH:2 * D + (h + 1) * DH]      # (B, S, DH)
            s = jnp.einsum('bqd,bkd->bqk', q, k,
                           preferred_element_type=jnp.float32)       # (B, S, S)
            s = s + neg
            s = s - jnp.max(s, axis=-1, keepdims=True)
            p = jnp.exp(s)
            # exact division for parity with the PyTorch softmax
            p = p / jnp.sum(p, axis=-1, keepdims=True)
            ctx_heads.append(jnp.einsum('bqk,bkd->bqd', p, v,
                                        preferred_element_type=jnp.float32))
        # lane concat of heads -> (BS, D); then one dense D-deep out projection
        ctx = jnp.concatenate(ctx_heads, axis=-1).reshape(BS, D)
        attn = jnp.dot(ctx, wo_ref[l], preferred_element_type=jnp.float32) + bo

        # TODO(synk): dropout(p=0.1) is identity in eval mode; not implemented.
        y = _layernorm(x + attn, ln1g, ln1b)

        h1 = jnp.maximum(
            jnp.dot(y, w1_ref[l], preferred_element_type=jnp.float32) + b1, 0.0)
        ff = jnp.dot(h1, w2_ref[l], preferred_element_type=jnp.float32) + b2
        x = _layernorm(y + ff, ln2g, ln2b)

    o_ref[...] = x.astype(o_ref.dtype)


def simple_html_encoder(packed, html_tokens, attention_mask=None):
    """Full forward pass in one pallas_call. html_tokens: (B, S) int32."""
    B, S = html_tokens.shape
    D, H, DFF, L = D_MODEL, N_HEADS, D_FF, N_LAYERS
    DH = D // H

    if attention_mask is None:
        mask = jnp.ones((B, S), jnp.float32)
    else:
        mask = attention_mask.astype(jnp.float32)

    tok = html_tokens.astype(jnp.int32).reshape(B * S, 1)
    pos = jnp.tile(packed["pos"][:S], (B, 1))        # pre-tiled host-side (B*S, D)

    ops = [tok, packed["emb"], pos, mask,
           packed["wqkv"], packed["bqkv"], packed["wo"],
           packed["w1"], packed["w2"], packed["misc"]]

    def full_spec(a):
        zeros = (0,) * a.ndim

        def imap(i, _z=zeros):
            return _z
        return pl.BlockSpec(a.shape, imap)

    kernel = functools.partial(_fused_encoder_kernel, B, S, D, H, DH, DFF, L)
    out = pl.pallas_call(
        kernel,
        out_shape=jax.ShapeDtypeStruct((B * S, D), jnp.float32),
        grid=(1,),
        in_specs=[full_spec(a) for a in ops],
        out_specs=pl.BlockSpec((B * S, D), lambda i: (0, 0)),
        compiler_params=pltpu.CompilerParams(
            dimension_semantics=("arbitrary",)),
    )(*ops)
    return out.reshape(B, S, D)


# ------------------------- parameter init / packing -------------------------
def init_params(key):
    """Raw PyTorch-layout parameters (used by the pure-JAX reference)."""
    ks = iter(jax.random.split(key, 2 + 12 * N_LAYERS))
    s = 0.05
    params = {
        "embedding": jax.random.normal(next(ks), (VOCAB, D_MODEL), jnp.float32),
        "pos_encoding": jax.random.normal(next(ks), (MAX_SEQ, D_MODEL), jnp.float32),
        "layers": [],
    }
    for _ in range(N_LAYERS):
        params["layers"].append(dict(
            in_proj_w=jax.random.normal(next(ks), (3 * D_MODEL, D_MODEL)) * s,
            in_proj_b=jax.random.normal(next(ks), (3 * D_MODEL,)) * s,
            out_proj_w=jax.random.normal(next(ks), (D_MODEL, D_MODEL)) * s,
            out_proj_b=jax.random.normal(next(ks), (D_MODEL,)) * s,
            ln1_g=1.0 + 0.1 * jax.random.normal(next(ks), (D_MODEL,)),
            ln1_b=0.1 * jax.random.normal(next(ks), (D_MODEL,)),
            lin1_w=jax.random.normal(next(ks), (D_FF, D_MODEL)) * s,
            lin1_b=jax.random.normal(next(ks), (D_FF,)) * s,
            lin2_w=jax.random.normal(next(ks), (D_MODEL, D_FF)) * s,
            lin2_b=jax.random.normal(next(ks), (D_MODEL,)) * s,
            ln2_g=1.0 + 0.1 * jax.random.normal(next(ks), (D_MODEL,)),
            ln2_b=0.1 * jax.random.normal(next(ks), (D_MODEL,)),
        ))
    return params


def pack_params(params):
    """Pack weights into a handful of kernel-friendly, MXU-friendly arrays."""
    DH = D_MODEL // N_HEADS
    scale = 1.0 / math.sqrt(DH)
    emb_pad = jnp.zeros((VOCAB_PAD, D_MODEL), jnp.float32).at[:VOCAB].set(
        params["embedding"])

    def pad_row(v):
        return jnp.pad(v, (0, MISC_PAD - v.shape[0]))

    wqkv, bqkv, wo, w1, w2, misc = [], [], [], [], [], []
    for lp in params["layers"]:
        w_in, b_in = lp["in_proj_w"], lp["in_proj_b"]          # (3D, D), (3D,)
        wq = w_in[:D_MODEL].T * scale                          # fold 1/sqrt(DH)
        wk = w_in[D_MODEL:2 * D_MODEL].T
        wv = w_in[2 * D_MODEL:].T
        bq = b_in[:D_MODEL] * scale
        bk = b_in[D_MODEL:2 * D_MODEL]
        bv = b_in[2 * D_MODEL:]
        wqkv.append(jnp.concatenate([wq, wk, wv], axis=1))     # (D, 3D)
        bqkv.append(jnp.concatenate([bq, bk, bv])[None, :])    # (1, 3D)
        wo.append(lp["out_proj_w"].T)                          # (D, D)
        w1.append(lp["lin1_w"].T)                              # (D, DFF)
        w2.append(lp["lin2_w"].T)                              # (DFF, D)
        misc.append(jnp.stack([
            pad_row(lp["out_proj_b"]),
            pad_row(lp["ln1_g"]), pad_row(lp["ln1_b"]),
            pad_row(lp["lin1_b"]),
            pad_row(lp["lin2_b"]),
            pad_row(lp["ln2_g"]), pad_row(lp["ln2_b"]),
            jnp.zeros((MISC_PAD,), jnp.float32),
        ]))                                                    # (8, 128)
    return dict(
        emb=emb_pad,               # (128, D)
        pos=params["pos_encoding"],
        wqkv=jnp.stack(wqkv),      # (L, D, 3D)
        bqkv=jnp.stack(bqkv),      # (L, 1, 3D)
        wo=jnp.stack(wo),          # (L, D, D)
        w1=jnp.stack(w1),          # (L, D, DFF)
        w2=jnp.stack(w2),          # (L, DFF, D)
        misc=jnp.stack(misc),      # (L, 8, 128)
    )


# ----- pure-JAX reference (same math, vectorized) for a correctness check ----
def _ref_forward(params, tokens, attention_mask):
    B, S = tokens.shape
    D, H = D_MODEL, N_HEADS
    DH = D // H
    x = params["embedding"][tokens] + params["pos_encoding"][:S][None]
    mask = attention_mask.astype(jnp.float32)
    for lp in params["layers"]:
        qkv = x @ lp["in_proj_w"].T + lp["in_proj_b"]
        q, k, v = qkv[..., :D], qkv[..., D:2 * D], qkv[..., 2 * D:]
        q = q.reshape(B, S, H, DH)
        k = k.reshape(B, S, H, DH)
        v = v.reshape(B, S, H, DH)
        s = jnp.einsum("bqhd,bkhd->bhqk", q, k) / math.sqrt(DH)
        s = s + jnp.where(mask[:, None, None, :] == 0.0, -1e9, 0.0)
        a = jax.nn.softmax(s, axis=-1)
        o = jnp.einsum("bhqk,bkhd->bqhd", a, v).reshape(B, S, D)
        o = o @ lp["out_proj_w"].T + lp["out_proj_b"]
        y = _layernorm(x + o, lp["ln1_g"], lp["ln1_b"])
        h = jax.nn.relu(y @ lp["lin1_w"].T + lp["lin1_b"])
        ff = h @ lp["lin2_w"].T + lp["lin2_b"]
        x = _layernorm(y + ff, lp["ln2_g"], lp["ln2_b"])
    return x


if __name__ == "__main__":
    key = jax.random.PRNGKey(0)
    pkey, tkey = jax.random.split(key)
    params = init_params(pkey)
    packed = pack_params(params)

    B, S = 2, 8
    html_tokens = jax.random.randint(tkey, (B, S), 0, VOCAB, dtype=jnp.int32)
    attention_mask = jnp.array([[1, 1, 1, 1, 1, 1, 1, 1],
                                [1, 1, 1, 1, 1, 1, 0, 0]], dtype=jnp.int32)

    out = simple_html_encoder(packed, html_tokens, attention_mask)
    out = jax.block_until_ready(out)
    assert out.shape == (B, S, D_MODEL) and out.dtype == jnp.float32

    ref = _ref_forward(params, html_tokens, attention_mask)
    err = float(jnp.max(jnp.abs(out - ref)))
    assert jnp.allclose(out, ref, atol=5e-3, rtol=5e-3), (
        "mismatch vs reference, max abs err = %g" % err)

    print("KERNEL_OK")
</pallas_src>

<mosaic_0001>
module attributes {stable_mosaic.version = 11 : i64} {
  func.func @_fused_encoder_kernel(%arg0: i32, %arg1: memref<16x1xi32, #tpu.memory_space<vmem>>, %arg2: memref<128x32xf32, #tpu.memory_space<vmem>>, %arg3: memref<16x32xf32, #tpu.memory_space<vmem>>, %arg4: memref<2x8xf32, #tpu.memory_space<vmem>>, %arg5: memref<2x32x96xf32, #tpu.memory_space<vmem>>, %arg6: memref<2x1x96xf32, #tpu.memory_space<vmem>>, %arg7: memref<2x32x32xf32, #tpu.memory_space<vmem>>, %arg8: memref<2x32x64xf32, #tpu.memory_space<vmem>>, %arg9: memref<2x64x32xf32, #tpu.memory_space<vmem>>, %arg10: memref<2x8x128xf32, #tpu.memory_space<vmem>>, %arg11: memref<16x32xf32, #tpu.memory_space<vmem>>) attributes {dimension_semantics = [#tpu.dimension_semantics<arbitrary>], iteration_bounds = array<i64: 1>, scalar_prefetch = 0 : i64, scratch_operands = 0 : i64, tpu.core_type = #tpu.core_type<tc>, window_params = [{pipeline_mode = #tpu.pipeline_mode<synchronous>, transform_indices = @transform_0, window_bounds = array<i64: 16, 1>}, {pipeline_mode = #tpu.pipeline_mode<synchronous>, transform_indices = @transform_1, window_bounds = array<i64: 128, 32>}, {pipeline_mode = #tpu.pipeline_mode<synchronous>, transform_indices = @transform_2, window_bounds = array<i64: 16, 32>}, {pipeline_mode = #tpu.pipeline_mode<synchronous>, transform_indices = @transform_3, window_bounds = array<i64: 2, 8>}, {pipeline_mode = #tpu.pipeline_mode<synchronous>, transform_indices = @transform_4, window_bounds = array<i64: 2, 32, 96>}, {pipeline_mode = #tpu.pipeline_mode<synchronous>, transform_indices = @transform_5, window_bounds = array<i64: 2, 1, 96>}, {pipeline_mode = #tpu.pipeline_mode<synchronous>, transform_indices = @transform_6, window_bounds = array<i64: 2, 32, 32>}, {pipeline_mode = #tpu.pipeline_mode<synchronous>, transform_indices = @transform_7, window_bounds = array<i64: 2, 32, 64>}, {pipeline_mode = #tpu.pipeline_mode<synchronous>, transform_indices = @transform_8, window_bounds = array<i64: 2, 64, 32>}, {pipeline_mode = #tpu.pipeline_mode<synchronous>, transform_indices = @transform_9, window_bounds = array<i64: 2, 8, 128>}, {pipeline_mode = #tpu.pipeline_mode<synchronous>, transform_indices = @transform_10, window_bounds = array<i64: 16, 32>}]} {
    %c0 = arith.constant 0 : index
    %c0_0 = arith.constant 0 : index
    %0 = vector.load %arg1[%c0, %c0_0] : memref<16x1xi32, #tpu.memory_space<vmem>>, vector<16x1xi32>
    %1 = tpu.iota {dimensions = array<i32: 1>} : vector<16x128xi32>
    %2 = vector.broadcast %0 : vector<16x1xi32> to vector<16x128xi32>
    %3 = arith.cmpi eq, %2, %1 : vector<16x128xi32>
    %4 = arith.extui %3 : vector<16x128xi1> to vector<16x128xi32>
    %5 = arith.sitofp %4 : vector<16x128xi32> to vector<16x128xf32>
    %c0_1 = arith.constant 0 : index
    %c0_2 = arith.constant 0 : index
    %6 = vector.load %arg2[%c0_1, %c0_2] : memref<128x32xf32, #tpu.memory_space<vmem>>, vector<128x32xf32>
    %cst = arith.constant dense<0.000000e+00> : vector<16x32xf32>
    %7 = tpu.matmul %5, %6, %cst {dimension_numbers = #tpu.dot_dimension_numbers<[1], [0], [0], [1], [0, 0, 1, 1], [], []>} : vector<16x128xf32>, vector<128x32xf32>, vector<16x32xf32> -> vector<16x32xf32>
    %c0_3 = arith.constant 0 : index
    %c0_4 = arith.constant 0 : index
    %8 = vector.load %arg3[%c0_3, %c0_4] : memref<16x32xf32, #tpu.memory_space<vmem>>, vector<16x32xf32>
    %9 = arith.addf %7, %8 : vector<16x32xf32>
    %c0_5 = arith.constant 0 : index
    %c0_6 = arith.constant 0 : index
    %10 = vector.load %arg4[%c0_5, %c0_6] : memref<2x8xf32, #tpu.memory_space<vmem>>, vector<2x8xf32>
    %cst_7 = arith.constant 0.000000e+00 : f32
    %11 = vector.broadcast %cst_7 : f32 to vector<2x8xf32>
    %12 = arith.cmpf oeq, %10, %11 : vector<2x8xf32>
    %cst_8 = arith.constant -1.000000e+09 : f32
    %cst_9 = arith.constant 0.000000e+00 : f32
    %13 = vector.broadcast %cst_8 : f32 to vector<2x8xf32>
    %14 = vector.broadcast %cst_9 : f32 to vector<2x8xf32>
    %15 = arith.select %12, %13, %14 : vector<2x8xi1>, vector<2x8xf32>
    %16 = vector.shape_cast %15 : vector<2x8xf32> to vector<2x1x8xf32>
    %c0_10 = arith.constant 0 : index
    %c0_11 = arith.constant 0 : index
    %c0_12 = arith.constant 0 : index
    %17 = vector.load %arg10[%c0_10, %c0_11, %c0_12] : memref<2x8x128xf32, #tpu.memory_space<vmem>>, vector<1x8x128xf32>
    %18 = vector.shape_cast %17 : vector<1x8x128xf32> to vector<8x128xf32>
    %19 = vector.extract_strided_slice %18 {offsets = [0, 0], sizes = [1, 32], strides = [1, 1]} : vector<8x128xf32> to vector<1x32xf32>
    %20 = vector.extract_strided_slice %18 {offsets = [1, 0], sizes = [1, 32], strides = [1, 1]} : vector<8x128xf32> to vector<1x32xf32>
    %21 = vector.extract_strided_slice %18 {offsets = [2, 0], sizes = [1, 32], strides = [1, 1]} : vector<8x128xf32> to vector<1x32xf32>
    %22 = vector.extract_strided_slice %18 {offsets = [3, 0], sizes = [1, 64], strides = [1, 1]} : vector<8x128xf32> to vector<1x64xf32>
    %23 = vector.extract_strided_slice %18 {offsets = [4, 0], sizes = [1, 32], strides = [1, 1]} : vector<8x128xf32> to vector<1x32xf32>
    %24 = vector.extract_strided_slice %18 {offsets = [5, 0], sizes = [1, 32], strides = [1, 1]} : vector<8x128xf32> to vector<1x32xf32>
    %25 = vector.extract_strided_slice %18 {offsets = [6, 0], sizes = [1, 32], strides = [1, 1]} : vector<8x128xf32> to vector<1x32xf32>
    %c0_13 = arith.constant 0 : index
    %c0_14 = arith.constant 0 : index
    %c0_15 = arith.constant 0 : index
    %26 = vector.load %arg5[%c0_13, %c0_14, %c0_15] : memref<2x32x96xf32, #tpu.memory_space<vmem>>, vector<1x32x96xf32>
    %27 = vector.shape_cast %26 : vector<1x32x96xf32> to vector<32x96xf32>
    %cst_16 = arith.constant dense<0.000000e+00> : vector<16x96xf32>
    %28 = tpu.matmul %9, %27, %cst_16 {dimension_numbers = #tpu.dot_dimension_numbers<[1], [0], [0], [1], [0, 0, 1, 1], [], []>} : vector<16x32xf32>, vector<32x96xf32>, vector<16x96xf32> -> vector<16x96xf32>
    %c0_17 = arith.constant 0 : index
    %c0_18 = arith.constant 0 : index
    %c0_19 = arith.constant 0 : index
    %29 = vector.load %arg6[%c0_17, %c0_18, %c0_19] : memref<2x1x96xf32, #tpu.memory_space<vmem>>, vector<1x1x96xf32>
    %30 = vector.shape_cast %29 : vector<1x1x96xf32> to vector<1x96xf32>
    %31 = vector.broadcast %30 : vector<1x96xf32> to vector<16x96xf32>
    %32 = arith.addf %28, %31 : vector<16x96xf32>
    %33 = vector.shape_cast %32 : vector<16x96xf32> to vector<2x8x96xf32>
    %34 = vector.extract_strided_slice %33 {offsets = [0, 0, 0], sizes = [2, 8, 8], strides = [1, 1, 1]} : vector<2x8x96xf32> to vector<2x8x8xf32>
    %35 = vector.extract_strided_slice %33 {offsets = [0, 0, 32], sizes = [2, 8, 8], strides = [1, 1, 1]} : vector<2x8x96xf32> to vector<2x8x8xf32>
    %36 = vector.extract_strided_slice %33 {offsets = [0, 0, 64], sizes = [2, 8, 8], strides = [1, 1, 1]} : vector<2x8x96xf32> to vector<2x8x8xf32>
    "tpu.trace_start"() <{level = 10 : i32, message = "bqd,bkd->bqk"}> : () -> ()
    %cst_20 = arith.constant dense<0.000000e+00> : vector<2x8x8xf32>
    %37 = tpu.matmul %34, %35, %cst_20 {dimension_numbers = #tpu.dot_dimension_numbers<[2], [2], [1], [1], [0, 0, 0, 1, 1, 1], [0], [0]>} : vector<2x8x8xf32>, vector<2x8x8xf32>, vector<2x8x8xf32> -> vector<2x8x8xf32>
    "tpu.trace_stop"() : () -> ()
    %38 = vector.broadcast %16 : vector<2x1x8xf32> to vector<2x8x8xf32>
    %39 = arith.addf %37, %38 : vector<2x8x8xf32>
    %cst_21 = arith.constant dense<0xFF800000> : vector<2x8xf32>
    %40 = vector.multi_reduction <maximumf>, %39, %cst_21 [2] : vector<2x8x8xf32> to vector<2x8xf32>
    %41 = vector.shape_cast %40 : vector<2x8xf32> to vector<2x8x1xf32>
    %42 = vector.broadcast %41 : vector<2x8x1xf32> to vector<2x8x8xf32>
    %43 = arith.subf %39, %42 : vector<2x8x8xf32>
    %44 = math.exp %43 : vector<2x8x8xf32>
    %cst_22 = arith.constant dense<0.000000e+00> : vector<2x8xf32>
    %45 = vector.multi_reduction <add>, %44, %cst_22 [2] : vector<2x8x8xf32> to vector<2x8xf32>
    %46 = vector.shape_cast %45 : vector<2x8xf32> to vector<2x8x1xf32>
    %47 = vector.broadcast %46 : vector<2x8x1xf32> to vector<2x8x8xf32>
    %48 = arith.divf %44, %47 : vector<2x8x8xf32>
    "tpu.trace_start"() <{level = 10 : i32, message = "bqk,bkd->bqd"}> : () -> ()
    %cst_23 = arith.constant dense<0.000000e+00> : vector<2x8x8xf32>
    %49 = tpu.matmul %48, %36, %cst_23 {dimension_numbers = #tpu.dot_dimension_numbers<[2], [1], [1], [2], [0, 0, 0, 1, 1, 2], [0], [0]>} : vector<2x8x8xf32>, vector<2x8x8xf32>, vector<2x8x8xf32> -> vector<2x8x8xf32>
    "tpu.trace_stop"() : () -> ()
    %50 = vector.extract_strided_slice %33 {offsets = [0, 0, 8], sizes = [2, 8, 8], strides = [1, 1, 1]} : vector<2x8x96xf32> to vector<2x8x8xf32>
    %51 = vector.extract_strided_slice %33 {offsets = [0, 0, 40], sizes = [2, 8, 8], strides = [1, 1, 1]} : vector<2x8x96xf32> to vector<2x8x8xf32>
    %52 = vector.extract_strided_slice %33 {offsets = [0, 0, 72], sizes = [2, 8, 8], strides = [1, 1, 1]} : vector<2x8x96xf32> to vector<2x8x8xf32>
    "tpu.trace_start"() <{level = 10 : i32, message = "bqd,bkd->bqk"}> : () -> ()
    %cst_24 = arith.constant dense<0.000000e+00> : vector<2x8x8xf32>
    %53 = tpu.matmul %50, %51, %cst_24 {dimension_numbers = #tpu.dot_dimension_numbers<[2], [2], [1], [1], [0, 0, 0, 1, 1, 1], [0], [0]>} : vector<2x8x8xf32>, vector<2x8x8xf32>, vector<2x8x8xf32> -> vector<2x8x8xf32>
    "tpu.trace_stop"() : () -> ()
    %54 = vector.broadcast %16 : vector<2x1x8xf32> to vector<2x8x8xf32>
    %55 = arith.addf %53, %54 : vector<2x8x8xf32>
    %cst_25 = arith.constant dense<0xFF800000> : vector<2x8xf32>
    %56 = vector.multi_reduction <maximumf>, %55, %cst_25 [2] : vector<2x8x8xf32> to vector<2x8xf32>
    %57 = vector.shape_cast %56 : vector<2x8xf32> to vector<2x8x1xf32>
    %58 = vector.broadcast %57 : vector<2x8x1xf32> to vector<2x8x8xf32>
    %59 = arith.subf %55, %58 : vector<2x8x8xf32>
    %60 = math.exp %59 : vector<2x8x8xf32>
    %cst_26 = arith.constant dense<0.000000e+00> : vector<2x8xf32>
    %61 = vector.multi_reduction <add>, %60, %cst_26 [2] : vector<2x8x8xf32> to vector<2x8xf32>
    %62 = vector.shape_cast %61 : vector<2x8xf32> to vector<2x8x1xf32>
    %63 = vector.broadcast %62 : vector<2x8x1xf32> to vector<2x8x8xf32>
    %64 = arith.divf %60, %63 : vector<2x8x8xf32>
    "tpu.trace_start"() <{level = 10 : i32, message = "bqk,bkd->bqd"}> : () -> ()
    %cst_27 = arith.constant dense<0.000000e+00> : vector<2x8x8xf32>
    %65 = tpu.matmul %64, %52, %cst_27 {dimension_numbers = #tpu.dot_dimension_numbers<[2], [1], [1], [2], [0, 0, 0, 1, 1, 2], [0], [0]>} : vector<2x8x8xf32>, vector<2x8x8xf32>, vector<2x8x8xf32> -> vector<2x8x8xf32>
    "tpu.trace_stop"() : () -> ()
    %66 = vector.extract_strided_slice %33 {offsets = [0, 0, 16], sizes = [2, 8, 8], strides = [1, 1, 1]} : vector<2x8x96xf32> to vector<2x8x8xf32>
    %67 = vector.extract_strided_slice %33 {offsets = [0, 0, 48], sizes = [2, 8, 8], strides = [1, 1, 1]} : vector<2x8x96xf32> to vector<2x8x8xf32>
    %68 = vector.extract_strided_slice %33 {offsets = [0, 0, 80], sizes = [2, 8, 8], strides = [1, 1, 1]} : vector<2x8x96xf32> to vector<2x8x8xf32>
    "tpu.trace_start"() <{level = 10 : i32, message = "bqd,bkd->bqk"}> : () -> ()
    %cst_28 = arith.constant dense<0.000000e+00> : vector<2x8x8xf32>
    %69 = tpu.matmul %66, %67, %cst_28 {dimension_numbers = #tpu.dot_dimension_numbers<[2], [2], [1], [1], [0, 0, 0, 1, 1, 1], [0], [0]>} : vector<2x8x8xf32>, vector<2x8x8xf32>, vector<2x8x8xf32> -> vector<2x8x8xf32>
    "tpu.trace_stop"() : () -> ()
    %70 = vector.broadcast %16 : vector<2x1x8xf32> to vector<2x8x8xf32>
    %71 = arith.addf %69, %70 : vector<2x8x8xf32>
    %cst_29 = arith.constant dense<0xFF800000> : vector<2x8xf32>
    %72 = vector.multi_reduction <maximumf>, %71, %cst_29 [2] : vector<2x8x8xf32> to vector<2x8xf32>
    %73 = vector.shape_cast %72 : vector<2x8xf32> to vector<2x8x1xf32>
    %74 = vector.broadcast %73 : vector<2x8x1xf32> to vector<2x8x8xf32>
    %75 = arith.subf %71, %74 : vector<2x8x8xf32>
    %76 = math.exp %75 : vector<2x8x8xf32>
    %cst_30 = arith.constant dense<0.000000e+00> : vector<2x8xf32>
    %77 = vector.multi_reduction <add>, %76, %cst_30 [2] : vector<2x8x8xf32> to vector<2x8xf32>
    %78 = vector.shape_cast %77 : vector<2x8xf32> to vector<2x8x1xf32>
    %79 = vector.broadcast %78 : vector<2x8x1xf32> to vector<2x8x8xf32>
    %80 = arith.divf %76, %79 : vector<2x8x8xf32>
    "tpu.trace_start"() <{level = 10 : i32, message = "bqk,bkd->bqd"}> : () -> ()
    %cst_31 = arith.constant dense<0.000000e+00> : vector<2x8x8xf32>
    %81 = tpu.matmul %80, %68, %cst_31 {dimension_numbers = #tpu.dot_dimension_numbers<[2], [1], [1], [2], [0, 0, 0, 1, 1, 2], [0], [0]>} : vector<2x8x8xf32>, vector<2x8x8xf32>, vector<2x8x8xf32> -> vector<2x8x8xf32>
    "tpu.trace_stop"() : () -> ()
    %82 = vector.extract_strided_slice %33 {offsets = [0, 0, 24], sizes = [2, 8, 8], strides = [1, 1, 1]} : vector<2x8x96xf32> to vector<2x8x8xf32>
    %83 = vector.extract_strided_slice %33 {offsets = [0, 0, 56], sizes = [2, 8, 8], strides = [1, 1, 1]} : vector<2x8x96xf32> to vector<2x8x8xf32>
    %84 = vector.extract_strided_slice %33 {offsets = [0, 0, 88], sizes = [2, 8, 8], strides = [1, 1, 1]} : vector<2x8x96xf32> to vector<2x8x8xf32>
    "tpu.trace_start"() <{level = 10 : i32, message = "bqd,bkd->bqk"}> : () -> ()
    %cst_32 = arith.constant dense<0.000000e+00> : vector<2x8x8xf32>
    %85 = tpu.matmul %82, %83, %cst_32 {dimension_numbers = #tpu.dot_dimension_numbers<[2], [2], [1], [1], [0, 0, 0, 1, 1, 1], [0], [0]>} : vector<2x8x8xf32>, vector<2x8x8xf32>, vector<2x8x8xf32> -> vector<2x8x8xf32>
    "tpu.trace_stop"() : () -> ()
    %86 = vector.broadcast %16 : vector<2x1x8xf32> to vector<2x8x8xf32>
    %87 = arith.addf %85, %86 : vector<2x8x8xf32>
    %cst_33 = arith.constant dense<0xFF800000> : vector<2x8xf32>
    %88 = vector.multi_reduction <maximumf>, %87, %cst_33 [2] : vector<2x8x8xf32> to vector<2x8xf32>
    %89 = vector.shape_cast %88 : vector<2x8xf32> to vector<2x8x1xf32>
    %90 = vector.broadcast %89 : vector<2x8x1xf32> to vector<2x8x8xf32>
    %91 = arith.subf %87, %90 : vector<2x8x8xf32>
    %92 = math.exp %91 : vector<2x8x8xf32>
    %cst_34 = arith.constant dense<0.000000e+00> : vector<2x8xf32>
    %93 = vector.multi_reduction <add>, %92, %cst_34 [2] : vector<2x8x8xf32> to vector<2x8xf32>
    %94 = vector.shape_cast %93 : vector<2x8xf32> to vector<2x8x1xf32>
    %95 = vector.broadcast %94 : vector<2x8x1xf32> to vector<2x8x8xf32>
    %96 = arith.divf %92, %95 : vector<2x8x8xf32>
    "tpu.trace_start"() <{level = 10 : i32, message = "bqk,bkd->bqd"}> : () -> ()
    %cst_35 = arith.constant dense<0.000000e+00> : vector<2x8x8xf32>
    %97 = tpu.matmul %96, %84, %cst_35 {dimension_numbers = #tpu.dot_dimension_numbers<[2], [1], [1], [2], [0, 0, 0, 1, 1, 2], [0], [0]>} : vector<2x8x8xf32>, vector<2x8x8xf32>, vector<2x8x8xf32> -> vector<2x8x8xf32>
    "tpu.trace_stop"() : () -> ()
    %98 = tpu.concatenate %49, %65, %81, %97 in 2 : vector<2x8x8xf32>, vector<2x8x8xf32>, vector<2x8x8xf32>, vector<2x8x8xf32> -> vector<2x8x32xf32>
    %99 = vector.shape_cast %98 : vector<2x8x32xf32> to vector<16x32xf32>
    %c0_36 = arith.constant 0 : index
    %c0_37 = arith.constant 0 : index
    %c0_38 = arith.constant 0 : index
    %100 = vector.load %arg7[%c0_36, %c0_37, %c0_38] : memref<2x32x32xf32, #tpu.memory_space<vmem>>, vector<1x32x32xf32>
    %101 = vector.shape_cast %100 : vector<1x32x32xf32> to vector<32x32xf32>
    %cst_39 = arith.constant dense<0.000000e+00> : vector<16x32xf32>
    %102 = tpu.matmul %99, %101, %cst_39 {dimension_numbers = #tpu.dot_dimension_numbers<[1], [0], [0], [1], [0, 0, 1, 1], [], []>} : vector<16x32xf32>, vector<32x32xf32>, vector<16x32xf32> -> vector<16x32xf32>
    %103 = vector.broadcast %19 : vector<1x32xf32> to vector<16x32xf32>
    %104 = arith.addf %102, %103 : vector<16x32xf32>
    %105 = arith.addf %9, %104 : vector<16x32xf32>
    %cst_40 = arith.constant dense<0.000000e+00> : vector<16xf32>
    %106 = vector.multi_reduction <add>, %105, %cst_40 [1] : vector<16x32xf32> to vector<16xf32>
    %107 = vector.shape_cast %106 : vector<16xf32> to vector<16x1xf32>
    %cst_41 = arith.constant 3.200000e+01 : f32
    %108 = vector.broadcast %cst_41 : f32 to vector<16x1xf32>
    %109 = arith.divf %107, %108 : vector<16x1xf32>
    %110 = vector.broadcast %109 : vector<16x1xf32> to vector<16x32xf32>
    %111 = arith.subf %105, %110 : vector<16x32xf32>
    %112 = arith.mulf %111, %111 : vector<16x32xf32>
    %cst_42 = arith.constant dense<0.000000e+00> : vector<16xf32>
    %113 = vector.multi_reduction <add>, %112, %cst_42 [1] : vector<16x32xf32> to vector<16xf32>
    %114 = vector.shape_cast %113 : vector<16xf32> to vector<16x1xf32>
    %cst_43 = arith.constant 3.200000e+01 : f32
    %115 = vector.broadcast %cst_43 : f32 to vector<16x1xf32>
    %116 = arith.divf %114, %115 : vector<16x1xf32>
    %117 = vector.broadcast %109 : vector<16x1xf32> to vector<16x32xf32>
    %118 = arith.subf %105, %117 : vector<16x32xf32>
    %cst_44 = arith.constant 9.99999974E-6 : f32
    %119 = vector.broadcast %cst_44 : f32 to vector<16x1xf32>
    %120 = arith.addf %116, %119 : vector<16x1xf32>
    %121 = math.rsqrt %120 : vector<16x1xf32>
    %122 = vector.broadcast %121 : vector<16x1xf32> to vector<16x32xf32>
    %123 = arith.mulf %118, %122 : vector<16x32xf32>
    %124 = vector.broadcast %20 : vector<1x32xf32> to vector<16x32xf32>
    %125 = arith.mulf %123, %124 : vector<16x32xf32>
    %126 = vector.broadcast %21 : vector<1x32xf32> to vector<16x32xf32>
    %127 = arith.addf %125, %126 : vector<16x32xf32>
    %c0_45 = arith.constant 0 : index
    %c0_46 = arith.constant 0 : index
    %c0_47 = arith.constant 0 : index
    %128 = vector.load %arg8[%c0_45, %c0_46, %c0_47] : memref<2x32x64xf32, #tpu.memory_space<vmem>>, vector<1x32x64xf32>
    %129 = vector.shape_cast %128 : vector<1x32x64xf32> to vector<32x64xf32>
    %cst_48 = arith.constant dense<0.000000e+00> : vector<16x64xf32>
    %130 = tpu.matmul %127, %129, %cst_48 {dimension_numbers = #tpu.dot_dimension_numbers<[1], [0], [0], [1], [0, 0, 1, 1], [], []>} : vector<16x32xf32>, vector<32x64xf32>, vector<16x64xf32> -> vector<16x64xf32>
    %131 = vector.broadcast %22 : vector<1x64xf32> to vector<16x64xf32>
    %132 = arith.addf %130, %131 : vector<16x64xf32>
    %cst_49 = arith.constant 0.000000e+00 : f32
    %133 = vector.broadcast %cst_49 : f32 to vector<16x64xf32>
    %134 = arith.maximumf %132, %133 : vector<16x64xf32>
    %c0_50 = arith.constant 0 : index
    %c0_51 = arith.constant 0 : index
    %c0_52 = arith.constant 0 : index
    %135 = vector.load %arg9[%c0_50, %c0_51, %c0_52] : memref<2x64x32xf32, #tpu.memory_space<vmem>>, vector<1x64x32xf32>
    %136 = vector.shape_cast %135 : vector<1x64x32xf32> to vector<64x32xf32>
    %cst_53 = arith.constant dense<0.000000e+00> : vector<16x32xf32>
    %137 = tpu.matmul %134, %136, %cst_53 {dimension_numbers = #tpu.dot_dimension_numbers<[1], [0], [0], [1], [0, 0, 1, 1], [], []>} : vector<16x64xf32>, vector<64x32xf32>, vector<16x32xf32> -> vector<16x32xf32>
    %138 = vector.broadcast %23 : vector<1x32xf32> to vector<16x32xf32>
    %139 = arith.addf %137, %138 : vector<16x32xf32>
    %140 = arith.addf %127, %139 : vector<16x32xf32>
    %cst_54 = arith.constant dense<0.000000e+00> : vector<16xf32>
    %141 = vector.multi_reduction <add>, %140, %cst_54 [1] : vector<16x32xf32> to vector<16xf32>
    %142 = vector.shape_cast %141 : vector<16xf32> to vector<16x1xf32>
    %cst_55 = arith.constant 3.200000e+01 : f32
    %143 = vector.broadcast %cst_55 : f32 to vector<16x1xf32>
    %144 = arith.divf %142, %143 : vector<16x1xf32>
    %145 = vector.broadcast %144 : vector<16x1xf32> to vector<16x32xf32>
    %146 = arith.subf %140, %145 : vector<16x32xf32>
    %147 = arith.mulf %146, %146 : vector<16x32xf32>
    %cst_56 = arith.constant dense<0.000000e+00> : vector<16xf32>
    %148 = vector.multi_reduction <add>, %147, %cst_56 [1] : vector<16x32xf32> to vector<16xf32>
    %149 = vector.shape_cast %148 : vector<16xf32> to vector<16x1xf32>
    %cst_57 = arith.constant 3.200000e+01 : f32
    %150 = vector.broadcast %cst_57 : f32 to vector<16x1xf32>
    %151 = arith.divf %149, %150 : vector<16x1xf32>
    %152 = vector.broadcast %144 : vector<16x1xf32> to vector<16x32xf32>
    %153 = arith.subf %140, %152 : vector<16x32xf32>
    %cst_58 = arith.constant 9.99999974E-6 : f32
    %154 = vector.broadcast %cst_58 : f32 to vector<16x1xf32>
    %155 = arith.addf %151, %154 : vector<16x1xf32>
    %156 = math.rsqrt %155 : vector<16x1xf32>
    %157 = vector.broadcast %156 : vector<16x1xf32> to vector<16x32xf32>
    %158 = arith.mulf %153, %157 : vector<16x32xf32>
    %159 = vector.broadcast %24 : vector<1x32xf32> to vector<16x32xf32>
    %160 = arith.mulf %158, %159 : vector<16x32xf32>
    %161 = vector.broadcast %25 : vector<1x32xf32> to vector<16x32xf32>
    %162 = arith.addf %160, %161 : vector<16x32xf32>
    %c1 = arith.constant 1 : index
    %c0_59 = arith.constant 0 : index
    %c0_60 = arith.constant 0 : index
    %163 = vector.load %arg10[%c1, %c0_59, %c0_60] : memref<2x8x128xf32, #tpu.memory_space<vmem>>, vector<1x8x128xf32>
    %164 = vector.shape_cast %163 : vector<1x8x128xf32> to vector<8x128xf32>
    %165 = vector.extract_strided_slice %164 {offsets = [0, 0], sizes = [1, 32], strides = [1, 1]} : vector<8x128xf32> to vector<1x32xf32>
    %166 = vector.extract_strided_slice %164 {offsets = [1, 0], sizes = [1, 32], strides = [1, 1]} : vector<8x128xf32> to vector<1x32xf32>
    %167 = vector.extract_strided_slice %164 {offsets = [2, 0], sizes = [1, 32], strides = [1, 1]} : vector<8x128xf32> to vector<1x32xf32>
    %168 = vector.extract_strided_slice %164 {offsets = [3, 0], sizes = [1, 64], strides = [1, 1]} : vector<8x128xf32> to vector<1x64xf32>
    %169 = vector.extract_strided_slice %164 {offsets = [4, 0], sizes = [1, 32], strides = [1, 1]} : vector<8x128xf32> to vector<1x32xf32>
    %170 = vector.extract_strided_slice %164 {offsets = [5, 0], sizes = [1, 32], strides = [1, 1]} : vector<8x128xf32> to vector<1x32xf32>
    %171 = vector.extract_strided_slice %164 {offsets = [6, 0], sizes = [1, 32], strides = [1, 1]} : vector<8x128xf32> to vector<1x32xf32>
    %c1_61 = arith.constant 1 : index
    %c0_62 = arith.constant 0 : index
    %c0_63 = arith.constant 0 : index
    %172 = vector.load %arg5[%c1_61, %c0_62, %c0_63] : memref<2x32x96xf32, #tpu.memory_space<vmem>>, vector<1x32x96xf32>
    %173 = vector.shape_cast %172 : vector<1x32x96xf32> to vector<32x96xf32>
    %cst_64 = arith.constant dense<0.000000e+00> : vector<16x96xf32>
    %174 = tpu.matmul %162, %173, %cst_64 {dimension_numbers = #tpu.dot_dimension_numbers<[1], [0], [0], [1], [0, 0, 1, 1], [], []>} : vector<16x32xf32>, vector<32x96xf32>, vector<16x96xf32> -> vector<16x96xf32>
    %c1_65 = arith.constant 1 : index
    %c0_66 = arith.constant 0 : index
    %c0_67 = arith.constant 0 : index
    %175 = vector.load %arg6[%c1_65, %c0_66, %c0_67] : memref<2x1x96xf32, #tpu.memory_space<vmem>>, vector<1x1x96xf32>
    %176 = vector.shape_cast %175 : vector<1x1x96xf32> to vector<1x96xf32>
    %177 = vector.broadcast %176 : vector<1x96xf32> to vector<16x96xf32>
    %178 = arith.addf %174, %177 : vector<16x96xf32>
    %179 = vector.shape_cast %178 : vector<16x96xf32> to vector<2x8x96xf32>
    %180 = vector.extract_strided_slice %179 {offsets = [0, 0, 0], sizes = [2, 8, 8], strides = [1, 1, 1]} : vector<2x8x96xf32> to vector<2x8x8xf32>
    %181 = vector.extract_strided_slice %179 {offsets = [0, 0, 32], sizes = [2, 8, 8], strides = [1, 1, 1]} : vector<2x8x96xf32> to vector<2x8x8xf32>
    %182 = vector.extract_strided_slice %179 {offsets = [0, 0, 64], sizes = [2, 8, 8], strides = [1, 1, 1]} : vector<2x8x96xf32> to vector<2x8x8xf32>
    "tpu.trace_start"() <{level = 10 : i32, message = "bqd,bkd->bqk"}> : () -> ()
    %cst_68 = arith.constant dense<0.000000e+00> : vector<2x8x8xf32>
    %183 = tpu.matmul %180, %181, %cst_68 {dimension_numbers = #tpu.dot_dimension_numbers<[2], [2], [1], [1], [0, 0, 0, 1, 1, 1], [0], [0]>} : vector<2x8x8xf32>, vector<2x8x8xf32>, vector<2x8x8xf32> -> vector<2x8x8xf32>
    "tpu.trace_stop"() : () -> ()
    %184 = vector.broadcast %16 : vector<2x1x8xf32> to vector<2x8x8xf32>
    %185 = arith.addf %183, %184 : vector<2x8x8xf32>
    %cst_69 = arith.constant dense<0xFF800000> : vector<2x8xf32>
    %186 = vector.multi_reduction <maximumf>, %185, %cst_69 [2] : vector<2x8x8xf32> to vector<2x8xf32>
    %187 = vector.shape_cast %186 : vector<2x8xf32> to vector<2x8x1xf32>
    %188 = vector.broadcast %187 : vector<2x8x1xf32> to vector<2x8x8xf32>
    %189 = arith.subf %185, %188 : vector<2x8x8xf32>
    %190 = math.exp %189 : vector<2x8x8xf32>
    %cst_70 = arith.constant dense<0.000000e+00> : vector<2x8xf32>
    %191 = vector.multi_reduction <add>, %190, %cst_70 [2] : vector<2x8x8xf32> to vector<2x8xf32>
    %192 = vector.shape_cast %191 : vector<2x8xf32> to vector<2x8x1xf32>
    %193 = vector.broadcast %192 : vector<2x8x1xf32> to vector<2x8x8xf32>
    %194 = arith.divf %190, %193 : vector<2x8x8xf32>
    "tpu.trace_start"() <{level = 10 : i32, message = "bqk,bkd->bqd"}> : () -> ()
    %cst_71 = arith.constant dense<0.000000e+00> : vector<2x8x8xf32>
    %195 = tpu.matmul %194, %182, %cst_71 {dimension_numbers = #tpu.dot_dimension_numbers<[2], [1], [1], [2], [0, 0, 0, 1, 1, 2], [0], [0]>} : vector<2x8x8xf32>, vector<2x8x8xf32>, vector<2x8x8xf32> -> vector<2x8x8xf32>
    "tpu.trace_stop"() : () -> ()
    %196 = vector.extract_strided_slice %179 {offsets = [0, 0, 8], sizes = [2, 8, 8], strides = [1, 1, 1]} : vector<2x8x96xf32> to vector<2x8x8xf32>
    %197 = vector.extract_strided_slice %179 {offsets = [0, 0, 40], sizes = [2, 8, 8], strides = [1, 1, 1]} : vector<2x8x96xf32> to vector<2x8x8xf32>
    %198 = vector.extract_strided_slice %179 {offsets = [0, 0, 72], sizes = [2, 8, 8], strides = [1, 1, 1]} : vector<2x8x96xf32> to vector<2x8x8xf32>
    "tpu.trace_start"() <{level = 10 : i32, message = "bqd,bkd->bqk"}> : () -> ()
    %cst_72 = arith.constant dense<0.000000e+00> : vector<2x8x8xf32>
    %199 = tpu.matmul %196, %197, %cst_72 {dimension_numbers = #tpu.dot_dimension_numbers<[2], [2], [1], [1], [0, 0, 0, 1, 1, 1], [0], [0]>} : vector<2x8x8xf32>, vector<2x8x8xf32>, vector<2x8x8xf32> -> vector<2x8x8xf32>
    "tpu.trace_stop"() : () -> ()
    %200 = vector.broadcast %16 : vector<2x1x8xf32> to vector<2x8x8xf32>
    %201 = arith.addf %199, %200 : vector<2x8x8xf32>
    %cst_73 = arith.constant dense<0xFF800000> : vector<2x8xf32>
    %202 = vector.multi_reduction <maximumf>, %201, %cst_73 [2] : vector<2x8x8xf32> to vector<2x8xf32>
    %203 = vector.shape_cast %202 : vector<2x8xf32> to vector<2x8x1xf32>
    %204 = vector.broadcast %203 : vector<2x8x1xf32> to vector<2x8x8xf32>
    %205 = arith.subf %201, %204 : vector<2x8x8xf32>
    %206 = math.exp %205 : vector<2x8x8xf32>
    %cst_74 = arith.constant dense<0.000000e+00> : vector<2x8xf32>
    %207 = vector.multi_reduction <add>, %206, %cst_74 [2] : vector<2x8x8xf32> to vector<2x8xf32>
    %208 = vector.shape_cast %207 : vector<2x8xf32> to vector<2x8x1xf32>
    %209 = vector.broadcast %208 : vector<2x8x1xf32> to vector<2x8x8xf32>
    %210 = arith.divf %206, %209 : vector<2x8x8xf32>
    "tpu.trace_start"() <{level = 10 : i32, message = "bqk,bkd->bqd"}> : () -> ()
    %cst_75 = arith.constant dense<0.000000e+00> : vector<2x8x8xf32>
    %211 = tpu.matmul %210, %198, %cst_75 {dimension_numbers = #tpu.dot_dimension_numbers<[2], [1], [1], [2], [0, 0, 0, 1, 1, 2], [0], [0]>} : vector<2x8x8xf32>, vector<2x8x8xf32>, vector<2x8x8xf32> -> vector<2x8x8xf32>
    "tpu.trace_stop"() : () -> ()
    %212 = vector.extract_strided_slice %179 {offsets = [0, 0, 16], sizes = [2, 8, 8], strides = [1, 1, 1]} : vector<2x8x96xf32> to vector<2x8x8xf32>
    %213 = vector.extract_strided_slice %179 {offsets = [0, 0, 48], sizes = [2, 8, 8], strides = [1, 1, 1]} : vector<2x8x96xf32> to vector<2x8x8xf32>
    %214 = vector.extract_strided_slice %179 {offsets = [0, 0, 80], sizes = [2, 8, 8], strides = [1, 1, 1]} : vector<2x8x96xf32> to vector<2x8x8xf32>
    "tpu.trace_start"() <{level = 10 : i32, message = "bqd,bkd->bqk"}> : () -> ()
    %cst_76 = arith.constant dense<0.000000e+00> : vector<2x8x8xf32>
    %215 = tpu.matmul %212, %213, %cst_76 {dimension_numbers = #tpu.dot_dimension_numbers<[2], [2], [1], [1], [0, 0, 0, 1, 1, 1], [0], [0]>} : vector<2x8x8xf32>, vector<2x8x8xf32>, vector<2x8x8xf32> -> vector<2x8x8xf32>
    "tpu.trace_stop"() : () -> ()
    %216 = vector.broadcast %16 : vector<2x1x8xf32> to vector<2x8x8xf32>
    %217 = arith.addf %215, %216 : vector<2x8x8xf32>
    %cst_77 = arith.constant dense<0xFF800000> : vector<2x8xf32>
    %218 = vector.multi_reduction <maximumf>, %217, %cst_77 [2] : vector<2x8x8xf32> to vector<2x8xf32>
    %219 = vector.shape_cast %218 : vector<2x8xf32> to vector<2x8x1xf32>
    %220 = vector.broadcast %219 : vector<2x8x1xf32> to vector<2x8x8xf32>
    %221 = arith.subf %217, %220 : vector<2x8x8xf32>
    %222 = math.exp %221 : vector<2x8x8xf32>
    %cst_78 = arith.constant dense<0.000000e+00> : vector<2x8xf32>
    %223 = vector.multi_reduction <add>, %222, %cst_78 [2] : vector<2x8x8xf32> to vector<2x8xf32>
    %224 = vector.shape_cast %223 : vector<2x8xf32> to vector<2x8x1xf32>
    %225 = vector.broadcast %224 : vector<2x8x1xf32> to vector<2x8x8xf32>
    %226 = arith.divf %222, %225 : vector<2x8x8xf32>
    "tpu.trace_start"() <{level = 10 : i32, message = "bqk,bkd->bqd"}> : () -> ()
    %cst_79 = arith.constant dense<0.000000e+00> : vector<2x8x8xf32>
    %227 = tpu.matmul %226, %214, %cst_79 {dimension_numbers = #tpu.dot_dimension_numbers<[2], [1], [1], [2], [0, 0, 0, 1, 1, 2], [0], [0]>} : vector<2x8x8xf32>, vector<2x8x8xf32>, vector<2x8x8xf32> -> vector<2x8x8xf32>
    "tpu.trace_stop"() : () -> ()
    %228 = vector.extract_strided_slice %179 {offsets = [0, 0, 24], sizes = [2, 8, 8], strides = [1, 1, 1]} : vector<2x8x96xf32> to vector<2x8x8xf32>
    %229 = vector.extract_strided_slice %179 {offsets = [0, 0, 56], sizes = [2, 8, 8], strides = [1, 1, 1]} : vector<2x8x96xf32> to vector<2x8x8xf32>
    %230 = vector.extract_strided_slice %179 {offsets = [0, 0, 88], sizes = [2, 8, 8], strides = [1, 1, 1]} : vector<2x8x96xf32> to vector<2x8x8xf32>
    "tpu.trace_start"() <{level = 10 : i32, message = "bqd,bkd->bqk"}> : () -> ()
    %cst_80 = arith.constant dense<0.000000e+00> : vector<2x8x8xf32>
    %231 = tpu.matmul %228, %229, %cst_80 {dimension_numbers = #tpu.dot_dimension_numbers<[2], [2], [1], [1], [0, 0, 0, 1, 1, 1], [0], [0]>} : vector<2x8x8xf32>, vector<2x8x8xf32>, vector<2x8x8xf32> -> vector<2x8x8xf32>
    "tpu.trace_stop"() : () -> ()
    %232 = vector.broadcast %16 : vector<2x1x8xf32> to vector<2x8x8xf32>
    %233 = arith.addf %231, %232 : vector<2x8x8xf32>
    %cst_81 = arith.constant dense<0xFF800000> : vector<2x8xf32>
    %234 = vector.multi_reduction <maximumf>, %233, %cst_81 [2] : vector<2x8x8xf32> to vector<2x8xf32>
    %235 = vector.shape_cast %234 : vector<2x8xf32> to vector<2x8x1xf32>
    %236 = vector.broadcast %235 : vector<2x8x1xf32> to vector<2x8x8xf32>
    %237 = arith.subf %233, %236 : vector<2x8x8xf32>
    %238 = math.exp %237 : vector<2x8x8xf32>
    %cst_82 = arith.constant dense<0.000000e+00> : vector<2x8xf32>
    %239 = vector.multi_reduction <add>, %238, %cst_82 [2] : vector<2x8x8xf32> to vector<2x8xf32>
    %240 = vector.shape_cast %239 : vector<2x8xf32> to vector<2x8x1xf32>
    %241 = vector.broadcast %240 : vector<2x8x1xf32> to vector<2x8x8xf32>
    %242 = arith.divf %238, %241 : vector<2x8x8xf32>
    "tpu.trace_start"() <{level = 10 : i32, message = "bqk,bkd->bqd"}> : () -> ()
    %cst_83 = arith.constant dense<0.000000e+00> : vector<2x8x8xf32>
    %243 = tpu.matmul %242, %230, %cst_83 {dimension_numbers = #tpu.dot_dimension_numbers<[2], [1], [1], [2], [0, 0, 0, 1, 1, 2], [0], [0]>} : vector<2x8x8xf32>, vector<2x8x8xf32>, vector<2x8x8xf32> -> vector<2x8x8xf32>
    "tpu.trace_stop"() : () -> ()
    %244 = tpu.concatenate %195, %211, %227, %243 in 2 : vector<2x8x8xf32>, vector<2x8x8xf32>, vector<2x8x8xf32>, vector<2x8x8xf32> -> vector<2x8x32xf32>
    %245 = vector.shape_cast %244 : vector<2x8x32xf32> to vector<16x32xf32>
    %c1_84 = arith.constant 1 : index
    %c0_85 = arith.constant 0 : index
    %c0_86 = arith.constant 0 : index
    %246 = vector.load %arg7[%c1_84, %c0_85, %c0_86] : memref<2x32x32xf32, #tpu.memory_space<vmem>>, vector<1x32x32xf32>
    %247 = vector.shape_cast %246 : vector<1x32x32xf32> to vector<32x32xf32>
    %cst_87 = arith.constant dense<0.000000e+00> : vector<16x32xf32>
    %248 = tpu.matmul %245, %247, %cst_87 {dimension_numbers = #tpu.dot_dimension_numbers<[1], [0], [0], [1], [0, 0, 1, 1], [], []>} : vector<16x32xf32>, vector<32x32xf32>, vector<16x32xf32> -> vector<16x32xf32>
    %249 = vector.broadcast %165 : vector<1x32xf32> to vector<16x32xf32>
    %250 = arith.addf %248, %249 : vector<16x32xf32>
    %251 = arith.addf %162, %250 : vector<16x32xf32>
    %cst_88 = arith.constant dense<0.000000e+00> : vector<16xf32>
    %252 = vector.multi_reduction <add>, %251, %cst_88 [1] : vector<16x32xf32> to vector<16xf32>
    %253 = vector.shape_cast %252 : vector<16xf32> to vector<16x1xf32>
    %cst_89 = arith.constant 3.200000e+01 : f32
    %254 = vector.broadcast %cst_89 : f32 to vector<16x1xf32>
    %255 = arith.divf %253, %254 : vector<16x1xf32>
    %256 = vector.broadcast %255 : vector<16x1xf32> to vector<16x32xf32>
    %257 = arith.subf %251, %256 : vector<16x32xf32>
    %258 = arith.mulf %257, %257 : vector<16x32xf32>
    %cst_90 = arith.constant dense<0.000000e+00> : vector<16xf32>
    %259 = vector.multi_reduction <add>, %258, %cst_90 [1] : vector<16x32xf32> to vector<16xf32>
    %260 = vector.shape_cast %259 : vector<16xf32> to vector<16x1xf32>
    %cst_91 = arith.constant 3.200000e+01 : f32
    %261 = vector.broadcast %cst_91 : f32 to vector<16x1xf32>
    %262 = arith.divf %260, %261 : vector<16x1xf32>
    %263 = vector.broadcast %255 : vector<16x1xf32> to vector<16x32xf32>
    %264 = arith.subf %251, %263 : vector<16x32xf32>
    %cst_92 = arith.constant 9.99999974E-6 : f32
    %265 = vector.broadcast %cst_92 : f32 to vector<16x1xf32>
    %266 = arith.addf %262, %265 : vector<16x1xf32>
    %267 = math.rsqrt %266 : vector<16x1xf32>
    %268 = vector.broadcast %267 : vector<16x1xf32> to vector<16x32xf32>
    %269 = arith.mulf %264, %268 : vector<16x32xf32>
    %270 = vector.broadcast %166 : vector<1x32xf32> to vector<16x32xf32>
    %271 = arith.mulf %269, %270 : vector<16x32xf32>
    %272 = vector.broadcast %167 : vector<1x32xf32> to vector<16x32xf32>
    %273 = arith.addf %271, %272 : vector<16x32xf32>
    %c1_93 = arith.constant 1 : index
    %c0_94 = arith.constant 0 : index
    %c0_95 = arith.constant 0 : index
    %274 = vector.load %arg8[%c1_93, %c0_94, %c0_95] : memref<2x32x64xf32, #tpu.memory_space<vmem>>, vector<1x32x64xf32>
    %275 = vector.shape_cast %274 : vector<1x32x64xf32> to vector<32x64xf32>
    %cst_96 = arith.constant dense<0.000000e+00> : vector<16x64xf32>
    %276 = tpu.matmul %273, %275, %cst_96 {dimension_numbers = #tpu.dot_dimension_numbers<[1], [0], [0], [1], [0, 0, 1, 1], [], []>} : vector<16x32xf32>, vector<32x64xf32>, vector<16x64xf32> -> vector<16x64xf32>
    %277 = vector.broadcast %168 : vector<1x64xf32> to vector<16x64xf32>
    %278 = arith.addf %276, %277 : vector<16x64xf32>
    %cst_97 = arith.constant 0.000000e+00 : f32
    %279 = vector.broadcast %cst_97 : f32 to vector<16x64xf32>
    %280 = arith.maximumf %278, %279 : vector<16x64xf32>
    %c1_98 = arith.constant 1 : index
    %c0_99 = arith.constant 0 : index
    %c0_100 = arith.constant 0 : index
    %281 = vector.load %arg9[%c1_98, %c0_99, %c0_100] : memref<2x64x32xf32, #tpu.memory_space<vmem>>, vector<1x64x32xf32>
    %282 = vector.shape_cast %281 : vector<1x64x32xf32> to vector<64x32xf32>
    %cst_101 = arith.constant dense<0.000000e+00> : vector<16x32xf32>
    %283 = tpu.matmul %280, %282, %cst_101 {dimension_numbers = #tpu.dot_dimension_numbers<[1], [0], [0], [1], [0, 0, 1, 1], [], []>} : vector<16x64xf32>, vector<64x32xf32>, vector<16x32xf32> -> vector<16x32xf32>
    %284 = vector.broadcast %169 : vector<1x32xf32> to vector<16x32xf32>
    %285 = arith.addf %283, %284 : vector<16x32xf32>
    %286 = arith.addf %273, %285 : vector<16x32xf32>
    %cst_102 = arith.constant dense<0.000000e+00> : vector<16xf32>
    %287 = vector.multi_reduction <add>, %286, %cst_102 [1] : vector<16x32xf32> to vector<16xf32>
    %288 = vector.shape_cast %287 : vector<16xf32> to vector<16x1xf32>
    %cst_103 = arith.constant 3.200000e+01 : f32
    %289 = vector.broadcast %cst_103 : f32 to vector<16x1xf32>
    %290 = arith.divf %288, %289 : vector<16x1xf32>
    %291 = vector.broadcast %290 : vector<16x1xf32> to vector<16x32xf32>
    %292 = arith.subf %286, %291 : vector<16x32xf32>
    %293 = arith.mulf %292, %292 : vector<16x32xf32>
    %cst_104 = arith.constant dense<0.000000e+00> : vector<16xf32>
    %294 = vector.multi_reduction <add>, %293, %cst_104 [1] : vector<16x32xf32> to vector<16xf32>
    %295 = vector.shape_cast %294 : vector<16xf32> to vector<16x1xf32>
    %cst_105 = arith.constant 3.200000e+01 : f32
    %296 = vector.broadcast %cst_105 : f32 to vector<16x1xf32>
    %297 = arith.divf %295, %296 : vector<16x1xf32>
    %298 = vector.broadcast %290 : vector<16x1xf32> to vector<16x32xf32>
    %299 = arith.subf %286, %298 : vector<16x32xf32>
    %cst_106 = arith.constant 9.99999974E-6 : f32
    %300 = vector.broadcast %cst_106 : f32 to vector<16x1xf32>
    %301 = arith.addf %297, %300 : vector<16x1xf32>
    %302 = math.rsqrt %301 : vector<16x1xf32>
    %303 = vector.broadcast %302 : vector<16x1xf32> to vector<16x32xf32>
    %304 = arith.mulf %299, %303 : vector<16x32xf32>
    %305 = vector.broadcast %170 : vector<1x32xf32> to vector<16x32xf32>
    %306 = arith.mulf %304, %305 : vector<16x32xf32>
    %307 = vector.broadcast %171 : vector<1x32xf32> to vector<16x32xf32>
    %308 = arith.addf %306, %307 : vector<16x32xf32>
    %c0_107 = arith.constant 0 : index
    %c0_108 = arith.constant 0 : index
    %309 = vector.load %arg11[%c0_107, %c0_108] : memref<16x32xf32, #tpu.memory_space<vmem>>, vector<16x32xf32>
    tpu.vector_store %arg11[%c0_107, %c0_108], %308 {strides = array<i32>} : memref<16x32xf32, #tpu.memory_space<vmem>>, vector<16x32xf32>,
    return
  }
  func.func @transform_0(%arg0: i32) -> (i32, i32) {
    %c0_i32 = arith.constant 0 : i32
    %c0_i32_0 = arith.constant 0 : i32
    %c0_i32_1 = arith.constant 0 : i32
    return %c0_i32, %c0_i32_0 : i32, i32
  }
  func.func @transform_1(%arg0: i32) -> (i32, i32) {
    %c0_i32 = arith.constant 0 : i32
    %c0_i32_0 = arith.constant 0 : i32
    %c0_i32_1 = arith.constant 0 : i32
    return %c0_i32, %c0_i32_0 : i32, i32
  }
  func.func @transform_2(%arg0: i32) -> (i32, i32) {
    %c0_i32 = arith.constant 0 : i32
    %c0_i32_0 = arith.constant 0 : i32
    %c0_i32_1 = arith.constant 0 : i32
    return %c0_i32, %c0_i32_0 : i32, i32
  }
  func.func @transform_3(%arg0: i32) -> (i32, i32) {
    %c0_i32 = arith.constant 0 : i32
    %c0_i32_0 = arith.constant 0 : i32
    %c0_i32_1 = arith.constant 0 : i32
    return %c0_i32, %c0_i32_0 : i32, i32
  }
  func.func @transform_4(%arg0: i32) -> (i32, i32, i32) {
    %c0_i32 = arith.constant 0 : i32
    %c0_i32_0 = arith.constant 0 : i32
    %c0_i32_1 = arith.constant 0 : i32
    %c0_i32_2 = arith.constant 0 : i32
    return %c0_i32, %c0_i32_0, %c0_i32_1 : i32, i32, i32
  }
  func.func @transform_5(%arg0: i32) -> (i32, i32, i32) {
    %c0_i32 = arith.constant 0 : i32
    %c0_i32_0 = arith.constant 0 : i32
    %c0_i32_1 = arith.constant 0 : i32
    %c0_i32_2 = arith.constant 0 : i32
    return %c0_i32, %c0_i32_0, %c0_i32_1 : i32, i32, i32
  }
  func.func @transform_6(%arg0: i32) -> (i32, i32, i32) {
    %c0_i32 = arith.constant 0 : i32
    %c0_i32_0 = arith.constant 0 : i32
    %c0_i32_1 = arith.constant 0 : i32
    %c0_i32_2 = arith.constant 0 : i32
    return %c0_i32, %c0_i32_0, %c0_i32_1 : i32, i32, i32
  }
  func.func @transform_7(%arg0: i32) -> (i32, i32, i32) {
    %c0_i32 = arith.constant 0 : i32
    %c0_i32_0 = arith.constant 0 : i32
    %c0_i32_1 = arith.constant 0 : i32
    %c0_i32_2 = arith.constant 0 : i32
    return %c0_i32, %c0_i32_0, %c0_i32_1 : i32, i32, i32
  }
  func.func @transform_8(%arg0: i32) -> (i32, i32, i32) {
    %c0_i32 = arith.constant 0 : i32
    %c0_i32_0 = arith.constant 0 : i32
    %c0_i32_1 = arith.constant 0 : i32
    %c0_i32_2 = arith.constant 0 : i32
    return %c0_i32, %c0_i32_0, %c0_i32_1 : i32, i32, i32
  }
  func.func @transform_9(%arg0: i32) -> (i32, i32, i32) {
    %c0_i32 = arith.constant 0 : i32
    %c0_i32_0 = arith.constant 0 : i32
    %c0_i32_1 = arith.constant 0 : i32
    %c0_i32_2 = arith.constant 0 : i32
    return %c0_i32, %c0_i32_0, %c0_i32_1 : i32, i32, i32
  }
  func.func @transform_10(%arg0: i32) -> (i32, i32) {
    %c0_i32 = arith.constant 0 : i32
    %c0_i32_0 = arith.constant 0 : i32
    %c0_i32_1 = arith.constant 0 : i32
    return %c0_i32, %c0_i32_0 : i32, i32
  }
}

</mosaic_0001>

<llo_original>
// kernel: tpu_custom_call.1
$region0: #{tpu_custom_call.1}
  #allocation0 [shape = 'u32[]', space=smem, size = 0x4, offset = 0x4, fixed_abs, tag = 'smem constant byte address 0x4 - core index']
  #allocation1 [shape = 'u32[144,128]{1,0:T(1,128)}', space=vmem, size = 0x12000, scoped, tag = 'internal scratch']
  %s0 = inlined_call_operand.vmem [shape: s32[16,1], index: 0, kind: input, shape index: {}]
  %s1 = inlined_call_operand.vmem [shape: f32[128,32], index: 1, kind: input, shape index: {}]
  %s2 = inlined_call_operand.vmem [shape: f32[16,32], index: 2, kind: input, shape index: {}]
  %s3 = inlined_call_operand.vmem [shape: f32[2,8], index: 3, kind: input, shape index: {}]
  %s4 = inlined_call_operand.vmem [shape: f32[2,32,96], index: 4, kind: input, shape index: {}]
  %s5 = inlined_call_operand.vmem [shape: f32[2,1,96], index: 5, kind: input, shape index: {}]
  %s6 = inlined_call_operand.vmem [shape: f32[2,32,32], index: 6, kind: input, shape index: {}]
  %s7 = inlined_call_operand.vmem [shape: f32[2,32,64], index: 7, kind: input, shape index: {}]
  %s8 = inlined_call_operand.vmem [shape: f32[2,64,32], index: 8, kind: input, shape index: {}]
  %s9 = inlined_call_operand.vmem [shape: f32[2,8,128], index: 9, kind: input, shape index: {}]
  %s10 = inlined_call_operand.hbm [shape: f32[16,32], index: 10, kind: output, shape index: {}]
  %s11 = sld [smem:[#allocation0]]
  $region50: #{tpu_custom_call.1} parent=0
    _
  %s13 = ssub.s32 1, %s11
  %s14 = scalar_select 0, %s13, %s11
  $region1: #{tpu_custom_call.1} parent=0
    #allocation2 [shape = 'u8[8192]{0}', space=vmem, size = 0x2000, scoped, tag = 'output window, operand 0, single buffered']
    #allocation3 [shape = 's32[1]{0}', space=sflag, size = 0x4, scoped, tag = 'scoped memory for tpu_custom_call.1']
    %15 = vsyncpa [#allocation3], 0
    // Predicated region
    $region2: #{tpu_custom_call.1} parent=1 // pred_check
      _
    $region3: #{tpu_custom_call.1} parent=1 // pred_check_branch
      %17 = sbr.rel (0) target = $region5
    $region4: #{tpu_custom_call.1} parent=1 // pred_region
      _
    $region5: #{tpu_custom_call.1} parent=1 // pred_fallthru
      _
    // Predicated region
    $region6: #{tpu_custom_call.1} parent=1 // pred_check
      _
    $region7: #{tpu_custom_call.1} parent=1 // pred_check_branch
      %19 = sbr.rel (0) target = $region9
    $region8: #{tpu_custom_call.1} parent=1 // pred_region
      _
    $region9: #{tpu_custom_call.1} parent=1 // pred_fallthru
      _
    // Predicated region
    $region10: #{tpu_custom_call.1} parent=1 // pred_check
      _
    $region11: #{tpu_custom_call.1} parent=1 // pred_check_branch
      %21 = sbr.rel (0) target = $region13
    $region12: #{tpu_custom_call.1} parent=1 // pred_region
      _
    $region13: #{tpu_custom_call.1} parent=1 // pred_fallthru
      _
    // Predicated region
    $region14: #{tpu_custom_call.1} parent=1 // pred_check
      _
    $region15: #{tpu_custom_call.1} parent=1 // pred_check_branch
      %23 = sbr.rel (0) target = $region17
    $region16: #{tpu_custom_call.1} parent=1 // pred_region
      _
    $region17: #{tpu_custom_call.1} parent=1 // pred_fallthru
      _
    // Predicated region
    $region18: #{tpu_custom_call.1} parent=1 // pred_check
      _
    $region19: #{tpu_custom_call.1} parent=1 // pred_check_branch
      %25 = sbr.rel (0) target = $region21
    $region20: #{tpu_custom_call.1} parent=1 // pred_region
      _
    $region21: #{tpu_custom_call.1} parent=1 // pred_fallthru
      _
    // Predicated region
    $region22: #{tpu_custom_call.1} parent=1 // pred_check
      _
    $region23: #{tpu_custom_call.1} parent=1 // pred_check_branch
      %27 = sbr.rel (0) target = $region25
    $region24: #{tpu_custom_call.1} parent=1 // pred_region
      _
    $region25: #{tpu_custom_call.1} parent=1 // pred_fallthru
      _
    // Predicated region
    $region26: #{tpu_custom_call.1} parent=1 // pred_check
      _
    $region27: #{tpu_custom_call.1} parent=1 // pred_check_branch
      %29 = sbr.rel (0) target = $region29
    $region28: #{tpu_custom_call.1} parent=1 // pred_region
      _
    $region29: #{tpu_custom_call.1} parent=1 // pred_fallthru
      _
    // Predicated region
    $region30: #{tpu_custom_call.1} parent=1 // pred_check
      _
    $region31: #{tpu_custom_call.1} parent=1 // pred_check_branch
      %31 = sbr.rel (0) target = $region33
    $region32: #{tpu_custom_call.1} parent=1 // pred_region
      _
    $region33: #{tpu_custom_call.1} parent=1 // pred_fallthru
      _
    // Predicated region
    $region34: #{tpu_custom_call.1} parent=1 // pred_check
      _
    $region35: #{tpu_custom_call.1} parent=1 // pred_check_branch
      %33 = sbr.rel (0) target = $region37
    $region36: #{tpu_custom_call.1} parent=1 // pred_region
      _
    $region37: #{tpu_custom_call.1} parent=1 // pred_fallthru
      _
    // Predicated region
    $region38: #{tpu_custom_call.1} parent=1 // pred_check
      _
    $region39: #{tpu_custom_call.1} parent=1 // pred_check_branch
      %35 = sbr.rel (0) target = $region41
    $region40: #{tpu_custom_call.1} parent=1 // pred_region
      _
    $region41: #{tpu_custom_call.1} parent=1 // pred_fallthru
      _
    %v36 = vld [vmem:[%s0] sm:$0xff]
    %v37 = vld [vmem:[%s0 + $0x8] sm:$0xff]
    %v38 = vlaneseq
    %v39 = vand.u32 %v38, 127
    %40 = vset.pattern.permute.xlu0 0
    %41 = vperm.xlu0 %40, %v36
    %v42 = vpop.permute.xlu0 %41
    %43 = vset.pattern.permute.xlu0 0
    %44 = vperm.xlu0 %43, %v37
    %v45 = vpop.permute.xlu0 %44
    %vm46 = vcmp.eq.s32.totalorder %v42, %v39
    %vm47 = vcmp.eq.s32.totalorder %v45, %v39
    %v48 = vsel %vm46, 1, 0
    %v49 = vsel %vm47, 1, 0
    %v50 = vcvt.s32.f32 %v48
    %v51 = vcvt.s32.f32 %v49
    %v52 = vld [vmem:[%s1] sm:$0xff]
    %v53 = vld [vmem:[%s1 + $0x8] sm:$0xff]
    %v54 = vld [vmem:[%s1 + $0x10] sm:$0xff]
    %v55 = vld [vmem:[%s1 + $0x18] sm:$0xff]
    %v56 = vld [vmem:[%s1 + $0x20] sm:$0xff]
    %v57 = vld [vmem:[%s1 + $0x28] sm:$0xff]
    %v58 = vld [vmem:[%s1 + $0x30] sm:$0xff]
    %v59 = vld [vmem:[%s1 + $0x38] sm:$0xff]
    %v60 = vld [vmem:[%s1 + $0x40] sm:$0xff]
    %v61 = vld [vmem:[%s1 + $0x48] sm:$0xff]
    %v62 = vld [vmem:[%s1 + $0x50] sm:$0xff]
    %v63 = vld [vmem:[%s1 + $0x58] sm:$0xff]
    %v64 = vld [vmem:[%s1 + $0x60] sm:$0xff]
    %v65 = vld [vmem:[%s1 + $0x68] sm:$0xff]
    %v66 = vld [vmem:[%s1 + $0x70] sm:$0xff]
    %v67 = vld [vmem:[%s1 + $0x78] sm:$0xff]
    %v68 = vld [vmem:[%s2] sm:$0xff]
    %v69 = vld [vmem:[%s2 + $0x8] sm:$0xff]
    %70 = vmatprep.subr.mxu0 0.0
    %71 = vmatpush1.msra.mxu0 %v67
    %72 = vmatprep.subr.mxu0 0.0
    %73 = vmatpush1.msra.mxu0 %v66
    %74 = vmatprep.subr.mxu0 0.0
    %75 = vmatpush1.msra.mxu0 %v65
    %76 = vmatprep.subr.mxu0 0.0
    %77 = vmatpush1.msra.mxu0 %v64
    %78 = vmatprep.subr.mxu0 0.0
    %79 = vmatpush1.msra.mxu0 %v63
    %80 = vmatprep.subr.mxu0 0.0
    %81 = vmatpush1.msra.mxu0 %v62
    %82 = vmatprep.subr.mxu0 0.0
    %83 = vmatpush1.msra.mxu0 %v61
    %84 = vmatprep.subr.mxu0 0.0
    %85 = vmatpush1.msra.mxu0 %v60
    %86 = vmatprep.subr.mxu0 0.0
    %87 = vmatpush1.msra.mxu0 %v59
    %88 = vmatprep.subr.mxu0 0.0
    %89 = vmatpush1.msra.mxu0 %v58
    %90 = vmatprep.subr.mxu0 0.0
    %91 = vmatpush1.msra.mxu0 %v57
    %92 = vmatprep.subr.mxu0 0.0
    %93 = vmatpush1.msra.mxu0 %v56
    %94 = vmatprep.subr.mxu0 0.0
    %95 = vmatpush1.msra.mxu0 %v55
    %96 = vmatprep.subr.mxu0 0.0
    %97 = vmatpush1.msra.mxu0 %v54
    %98 = vmatprep.subr.mxu0 0.0
    %99 = vmatpush1.msra.mxu0 %v53
    %100 = vmatprep.subr.mxu0 0.0
    %101 = vmatpush1.msra.mxu0 %v52
    %102 = vmatprep.subr.mxu0 0.0
    %103 = vmatpush2.msra.mxu0 0.0
    %104 = vmatprep.subr.mxu0 0.0
    %105 = vmatpush2.msra.mxu0 0.0
    %106 = vmatprep.subr.mxu0 0.0
    %107 = vmatpush2.msra.mxu0 0.0
    %108 = vmatprep.subr.mxu0 0.0
    %109 = vmatpush2.msra.mxu0 0.0
    %110 = vmatprep.subr.mxu0 0.0
    %111 = vmatpush2.msra.mxu0 0.0
    %112 = vmatprep.subr.mxu0 0.0
    %113 = vmatpush2.msra.mxu0 0.0
    %114 = vmatprep.subr.mxu0 0.0
    %115 = vmatpush2.msra.mxu0 0.0
    %116 = vmatprep.subr.mxu0 0.0
    %117 = vmatpush2.msra.mxu0 0.0
    %118 = vmatprep.subr.mxu0 0.0
    %119 = vmatpush2.msra.mxu0 0.0
    %120 = vmatprep.subr.mxu0 0.0
    %121 = vmatpush2.msra.mxu0 0.0
    %122 = vmatprep.subr.mxu0 0.0
    %123 = vmatpush2.msra.mxu0 0.0
    %124 = vmatprep.subr.mxu0 0.0
    %125 = vmatpush2.msra.mxu0 0.0
    %126 = vmatprep.subr.mxu0 0.0
    %127 = vmatpush2.msra.mxu0 0.0
    %128 = vmatprep.subr.mxu0 0.0
    %129 = vmatpush2.msra.mxu0 0.0
    %130 = vmatprep.subr.mxu0 0.0
    %131 = vmatpush2.msra.mxu0 0.0
    %132 = vmatprep.subr.mxu0 0.0
    %133 = vmatpush2.msra.mxu0 0.0
    %134 = vmatprep.mubr.f32.mxu0 0.0
    %135 = vmatmul.mubr.f32.gmra.mxu0 %v50
    %v136 = vpop.f32.mrf.mxu0
    %v137 = vadd.f32 %v68, %v136
    %v138 = vpop.f32.mrf.mxu0
    %139 = vmatprep.mubr.f32.mxu0 0.0
    %140 = vmatmul.mubr.f32.gmra.mxu0 %v51
    %v141 = vpop.f32.mrf.mxu0
    %v142 = vadd.f32 %v69, %v141
    %v143 = vpop.f32.mrf.mxu0
    %144 = vdwg.mxu0
    %v145 = vld [vmem:[%s3] sm:$0x3]
    %vm146 = vcmp.eq.f32.partialorder %v145, 0.0
    %v147 = vsel %vm146, -1e+09, 0.0
    %v150 = vunpack.c.l.s4 1966171168
    %v151 = vunpack.c.0.s8 %v150
    %v152 = vlaneseq
    %v153 = vshrl.u32 %v152, 7
    %v154 = vsub.s32 %v151, %v153
    %v155 = vrot.slane %v147, %v154
    %v156 = vcombine.high %v155, %v155
    %v158 = vunpack.c.l.s4 1966171168
    %v159 = vunpack.c.0.s8 %v158
    %v160 = vlaneseq
    %v161 = vshrl.u32 %v160, 7
    %v162 = vsub.s32 %v159, %v161
    %v163 = vrot.slane %v155, %v162
    %v165 = vunpack.c.l.s4 1966171168
    %v166 = vunpack.c.0.s8 %v165
    %v167 = vlaneseq
    %v168 = vshrl.u32 %v167, 7
    %v169 = vsub.s32 %v166, %v168
    %v170 = vrot.slane %v156, %v169
    %v171 = vld [vmem:[%s9] sm:$0xff]
    %v172 = vld [vmem:[%s4] sm:$0xff]
    %v173 = vld [vmem:[%s4 + $0x8] sm:$0xff]
    %v174 = vld [vmem:[%s4 + $0x10] sm:$0xff]
    %v175 = vld [vmem:[%s4 + $0x18] sm:$0xff]
    %v176 = vld [vmem:[%s5] sm:$0x1]
    %v178 = vlaneseq
    %v179 = vshrl.u32 %v178, 7
    %v180 = vsub.s32 0, %v179
    %v181 = vrot.slane %v176, %v180
    %vm183 = vcmask 261120
    %v185 = vsel %vm183, %v137, 0
    %v188 = vsel %vm183, %v142, 0
    %190 = vmatprep.subr.mxu0 0.0
    %191 = vmatpush1.msra.mxu0 0.0
    %192 = vmatprep.subr.mxu0 0.0
    %193 = vmatpush1.msra.mxu0 0.0
    %194 = vmatprep.subr.mxu0 0.0
    %195 = vmatpush1.msra.mxu0 0.0
    %196 = vmatprep.subr.mxu0 0.0
    %197 = vmatpush1.msra.mxu0 0.0
    %198 = vmatprep.subr.mxu0 0.0
    %199 = vmatpush1.msra.mxu0 0.0
    %200 = vmatprep.subr.mxu0 0.0
    %201 = vmatpush1.msra.mxu0 0.0
    %202 = vmatprep.subr.mxu0 0.0
    %203 = vmatpush1.msra.mxu0 0.0
    %204 = vmatprep.subr.mxu0 0.0
    %205 = vmatpush1.msra.mxu0 0.0
    %206 = vmatprep.subr.mxu0 0.0
    %207 = vmatpush1.msra.mxu0 0.0
    %208 = vmatprep.subr.mxu0 0.0
    %209 = vmatpush1.msra.mxu0 0.0
    %210 = vmatprep.subr.mxu0 0.0
    %211 = vmatpush1.msra.mxu0 0.0
    %212 = vmatprep.subr.mxu0 0.0
    %213 = vmatpush1.msra.mxu0 0.0
    %214 = vmatprep.subr.mxu0 0.0
    %215 = vmatpush1.msra.mxu0 %v175
    %216 = vmatprep.subr.mxu0 0.0
    %217 = vmatpush1.msra.mxu0 %v174
    %218 = vmatprep.subr.mxu0 0.0
    %219 = vmatpush1.msra.mxu0 %v173
    %220 = vmatprep.subr.mxu0 0.0
    %221 = vmatpush1.msra.mxu0 %v172
    %222 = vmatprep.subr.mxu0 0.0
    %223 = vmatpush2.msra.mxu0 0.0
    %224 = vmatprep.subr.mxu0 0.0
    %225 = vmatpush2.msra.mxu0 0.0
    %226 = vmatprep.subr.mxu0 0.0
    %227 = vmatpush2.msra.mxu0 0.0
    %228 = vmatprep.subr.mxu0 0.0
    %229 = vmatpush2.msra.mxu0 0.0
    %230 = vmatprep.subr.mxu0 0.0
    %231 = vmatpush2.msra.mxu0 0.0
    %232 = vmatprep.subr.mxu0 0.0
    %233 = vmatpush2.msra.mxu0 0.0
    %234 = vmatprep.subr.mxu0 0.0
    %235 = vmatpush2.msra.mxu0 0.0
    %236 = vmatprep.subr.mxu0 0.0
    %237 = vmatpush2.msra.mxu0 0.0
    %238 = vmatprep.subr.mxu0 0.0
    %239 = vmatpush2.msra.mxu0 0.0
    %240 = vmatprep.subr.mxu0 0.0
    %241 = vmatpush2.msra.mxu0 0.0
    %242 = vmatprep.subr.mxu0 0.0
    %243 = vmatpush2.msra.mxu0 0.0
    %244 = vmatprep.subr.mxu0 0.0
    %245 = vmatpush2.msra.mxu0 0.0
    %246 = vmatprep.subr.mxu0 0.0
    %247 = vmatpush2.msra.mxu0 0.0
    %248 = vmatprep.subr.mxu0 0.0
    %249 = vmatpush2.msra.mxu0 0.0
    %250 = vmatprep.subr.mxu0 0.0
    %251 = vmatpush2.msra.mxu0 0.0
    %252 = vmatprep.subr.mxu0 0.0
    %253 = vmatpush2.msra.mxu0 0.0
    %254 = vmatprep.mubr.f32.mxu0 0.0
    %255 = vmatmul.mubr.f32.gmra.mxu0 %v185
    %v256 = vpop.f32.mrf.mxu0
    %v257 = vadd.f32 %v181, %v256
    %v258 = vpop.f32.mrf.mxu0
    %259 = vmatprep.mubr.f32.mxu0 0.0
    %260 = vmatmul.mubr.f32.gmra.mxu0 %v188
    %v261 = vpop.f32.mrf.mxu0
    %v262 = vadd.f32 %v181, %v261
    %v263 = vpop.f32.mrf.mxu0
    %264 = vdwg.mxu0
    %v265 = vlaneseq
    %v266 = vshrl.u32 %v265, 7
    %v267 = vsub.s32 0, %v266
    %v268 = vrot.slane %v163, %v267
    %v269 = vlaneseq
    %v270 = vshrl.u32 %v269, 7
    %v271 = vsub.s32 0, %v270
    %v272 = vrot.slane %v170, %v271
    %276 = vrot.lane.b32.xlu0 %v257, 96
    %v277 = vpop.permute.xlu0 %276
    %vm278 = vcmask 64512
    %v279 = vsel %vm278, %v257, 0
    %v281 = vsel %vm278, %v277, 0
    %283 = vmatprep.subr.mxu0 0.0
    %284 = vmatpush1.xpose.msra.mxu0 0.0
    %285 = vmatprep.subr.mxu0 0.0
    %286 = vmatpush1.xpose.msra.mxu0 0.0
    %287 = vmatprep.subr.mxu0 0.0
    %288 = vmatpush1.xpose.msra.mxu0 0.0
    %289 = vmatprep.subr.mxu0 0.0
    %290 = vmatpush1.xpose.msra.mxu0 0.0
    %291 = vmatprep.subr.mxu0 0.0
    %292 = vmatpush1.xpose.msra.mxu0 0.0
    %293 = vmatprep.subr.mxu0 0.0
    %294 = vmatpush1.xpose.msra.mxu0 0.0
    %295 = vmatprep.subr.mxu0 0.0
    %296 = vmatpush1.xpose.msra.mxu0 0.0
    %297 = vmatprep.subr.mxu0 0.0
    %298 = vmatpush1.xpose.msra.mxu0 0.0
    %299 = vmatprep.subr.mxu0 0.0
    %300 = vmatpush1.xpose.msra.mxu0 0.0
    %301 = vmatprep.subr.mxu0 0.0
    %302 = vmatpush1.xpose.msra.mxu0 0.0
    %303 = vmatprep.subr.mxu0 0.0
    %304 = vmatpush1.xpose.msra.mxu0 0.0
    %305 = vmatprep.subr.mxu0 0.0
    %306 = vmatpush1.xpose.msra.mxu0 0.0
    %307 = vmatprep.subr.mxu0 0.0
    %308 = vmatpush1.xpose.msra.mxu0 0.0
    %309 = vmatprep.subr.mxu0 0.0
    %310 = vmatpush1.xpose.msra.mxu0 0.0
    %311 = vmatprep.subr.mxu0 0.0
    %312 = vmatpush1.xpose.msra.mxu0 0.0
    %313 = vmatprep.subr.mxu0 0.0
    %314 = vmatpush1.xpose.msra.mxu0 %v281
    %315 = vmatprep.subr.mxu0 0.0
    %316 = vmatpush2.xpose.msra.mxu0 0.0
    %317 = vmatprep.subr.mxu0 0.0
    %318 = vmatpush2.xpose.msra.mxu0 0.0
    %319 = vmatprep.subr.mxu0 0.0
    %320 = vmatpush2.xpose.msra.mxu0 0.0
    %321 = vmatprep.subr.mxu0 0.0
    %322 = vmatpush2.xpose.msra.mxu0 0.0
    %323 = vmatprep.subr.mxu0 0.0
    %324 = vmatpush2.xpose.msra.mxu0 0.0
    %325 = vmatprep.subr.mxu0 0.0
    %326 = vmatpush2.xpose.msra.mxu0 0.0
    %327 = vmatprep.subr.mxu0 0.0
    %328 = vmatpush2.xpose.msra.mxu0 0.0
    %329 = vmatprep.subr.mxu0 0.0
    %330 = vmatpush2.xpose.msra.mxu0 0.0
    %331 = vmatprep.subr.mxu0 0.0
    %332 = vmatpush2.xpose.msra.mxu0 0.0
    %333 = vmatprep.subr.mxu0 0.0
    %334 = vmatpush2.xpose.msra.mxu0 0.0
    %335 = vmatprep.subr.mxu0 0.0
    %336 = vmatpush2.xpose.msra.mxu0 0.0
    %337 = vmatprep.subr.mxu0 0.0
    %338 = vmatpush2.xpose.msra.mxu0 0.0
    %339 = vmatprep.subr.mxu0 0.0
    %340 = vmatpush2.xpose.msra.mxu0 0.0
    %341 = vmatprep.subr.mxu0 0.0
    %342 = vmatpush2.xpose.msra.mxu0 0.0
    %343 = vmatprep.subr.mxu0 0.0
    %344 = vmatpush2.xpose.msra.mxu0 0.0
    %345 = vmatprep.subr.mxu0 0.0
    %346 = vmatpush2.xpose.msra.mxu0 0.0
    %347 = vmatprep.mubr.f32.mxu0 0.0
    %348 = vmatmul.mubr.f32.gmra.mxu0 %v279
    %v349 = vpop.f32.mrf.mxu0
    %v350 = vadd.f32 %v268, %v349
    %v351 = vpop.f32.mrf.mxu0
    %352 = vdwg.mxu0
    %354 = vrot.lane.b32.xlu0 %v262, 96
    %v355 = vpop.permute.xlu0 %354
    %v356 = vsel %vm278, %v262, 0
    %v358 = vsel %vm278, %v355, 0
    %360 = vmatprep.subr.mxu0 0.0
    %361 = vmatpush1.xpose.msra.mxu0 0.0
    %362 = vmatprep.subr.mxu0 0.0
    %363 = vmatpush1.xpose.msra.mxu0 0.0
    %364 = vmatprep.subr.mxu0 0.0
    %365 = vmatpush1.xpose.msra.mxu0 0.0
    %366 = vmatprep.subr.mxu0 0.0
    %367 = vmatpush1.xpose.msra.mxu0 0.0
    %368 = vmatprep.subr.mxu0 0.0
    %369 = vmatpush1.xpose.msra.mxu0 0.0
    %370 = vmatprep.subr.mxu0 0.0
    %371 = vmatpush1.xpose.msra.mxu0 0.0
    %372 = vmatprep.subr.mxu0 0.0
    %373 = vmatpush1.xpose.msra.mxu0 0.0
    %374 = vmatprep.subr.mxu0 0.0
    %375 = vmatpush1.xpose.msra.mxu0 0.0
    %376 = vmatprep.subr.mxu0 0.0
    %377 = vmatpush1.xpose.msra.mxu0 0.0
    %378 = vmatprep.subr.mxu0 0.0
    %379 = vmatpush1.xpose.msra.mxu0 0.0
    %380 = vmatprep.subr.mxu0 0.0
    %381 = vmatpush1.xpose.msra.mxu0 0.0
    %382 = vmatprep.subr.mxu0 0.0
    %383 = vmatpush1.xpose.msra.mxu0 0.0
    %384 = vmatprep.subr.mxu0 0.0
    %385 = vmatpush1.xpose.msra.mxu0 0.0
    %386 = vmatprep.subr.mxu0 0.0
    %387 = vmatpush1.xpose.msra.mxu0 0.0
    %388 = vmatprep.subr.mxu0 0.0
    %389 = vmatpush1.xpose.msra.mxu0 0.0
    %390 = vmatprep.subr.mxu0 0.0
    %391 = vmatpush1.xpose.msra.mxu0 %v358
    %392 = vmatprep.subr.mxu0 0.0
    %393 = vmatpush2.xpose.msra.mxu0 0.0
    %394 = vmatprep.subr.mxu0 0.0
    %395 = vmatpush2.xpose.msra.mxu0 0.0
    %396 = vmatprep.subr.mxu0 0.0
    %397 = vmatpush2.xpose.msra.mxu0 0.0
    %398 = vmatprep.subr.mxu0 0.0
    %399 = vmatpush2.xpose.msra.mxu0 0.0
    %400 = vmatprep.subr.mxu0 0.0
    %401 = vmatpush2.xpose.msra.mxu0 0.0
    %402 = vmatprep.subr.mxu0 0.0
    %403 = vmatpush2.xpose.msra.mxu0 0.0
    %404 = vmatprep.subr.mxu0 0.0
    %405 = vmatpush2.xpose.msra.mxu0 0.0
    %406 = vmatprep.subr.mxu0 0.0
    %407 = vmatpush2.xpose.msra.mxu0 0.0
    %408 = vmatprep.subr.mxu0 0.0
    %409 = vmatpush2.xpose.msra.mxu0 0.0
    %410 = vmatprep.subr.mxu0 0.0
    %411 = vmatpush2.xpose.msra.mxu0 0.0
    %412 = vmatprep.subr.mxu0 0.0
    %413 = vmatpush2.xpose.msra.mxu0 0.0
    %414 = vmatprep.subr.mxu0 0.0
    %415 = vmatpush2.xpose.msra.mxu0 0.0
    %416 = vmatprep.subr.mxu0 0.0
    %417 = vmatpush2.xpose.msra.mxu0 0.0
    %418 = vmatprep.subr.mxu0 0.0
    %419 = vmatpush2.xpose.msra.mxu0 0.0
    %420 = vmatprep.subr.mxu0 0.0
    %421 = vmatpush2.xpose.msra.mxu0 0.0
    %422 = vmatprep.subr.mxu0 0.0
    %423 = vmatpush2.xpose.msra.mxu0 0.0
    %424 = vmatprep.mubr.f32.mxu0 0.0
    %425 = vmatmul.mubr.f32.gmra.mxu0 %v356
    %v426 = vpop.f32.mrf.mxu0
    %v427 = vadd.f32 %v272, %v426
    %v428 = vpop.f32.mrf.mxu0
    %429 = vdwg.mxu0
    %v430 = vsel %vm278, %v350, -inf
    %431 = vmax.xlane.f32.xlu0 %v430
    %v432 = vpop.xlane.xlu0 %431
    %v433 = vsel %vm278, %v427, -inf
    %434 = vmax.xlane.f32.xlu0 %v433
    %v435 = vpop.xlane.xlu0 %434
    %v436 = vsub.f32 %v350, %v432
    %v437 = vsub.f32 %v427, %v435
    %v438 = vmul.f32 %v436, 1.442695
    %v439 = vpow.pop %v438
    %v440 = vmul.f32 %v437, 1.442695
    %v441 = vpow.pop %v440
    %v442 = vsel %vm278, %v439, 0.0
    %443 = vadd.xlane.f32.xlu0 %v442
    %v444 = vpop.xlane.xlu0 %443
    %v445 = vsel %vm278, %v441, 0.0
    %446 = vadd.xlane.f32.xlu0 %v445
    %v447 = vpop.xlane.xlu0 %446
    %v448 = vrcp.pop %v444
    %v449 = vmul.f32 %v439, %v448
    %v450 = vrcp.pop %v447
    %v451 = vmul.f32 %v441, %v450
    %452 = vrot.lane.b32.xlu0 %v257, 64
    %v453 = vpop.permute.xlu0 %452
    %v456 = vsel %vm278, %v449, 0
    %458 = vmatprep.subr.mxu0 0.0
    %459 = vmatpush1.msra.mxu0 0.0
    %460 = vmatprep.subr.mxu0 0.0
    %461 = vmatpush1.msra.mxu0 0.0
    %462 = vmatprep.subr.mxu0 0.0
    %463 = vmatpush1.msra.mxu0 0.0
    %464 = vmatprep.subr.mxu0 0.0
    %465 = vmatpush1.msra.mxu0 0.0
    %466 = vmatprep.subr.mxu0 0.0
    %467 = vmatpush1.msra.mxu0 0.0
    %468 = vmatprep.subr.mxu0 0.0
    %469 = vmatpush1.msra.mxu0 0.0
    %470 = vmatprep.subr.mxu0 0.0
    %471 = vmatpush1.msra.mxu0 0.0
    %472 = vmatprep.subr.mxu0 0.0
    %473 = vmatpush1.msra.mxu0 0.0
    %474 = vmatprep.subr.mxu0 0.0
    %475 = vmatpush1.msra.mxu0 0.0
    %476 = vmatprep.subr.mxu0 0.0
    %477 = vmatpush1.msra.mxu0 0.0
    %478 = vmatprep.subr.mxu0 0.0
    %479 = vmatpush1.msra.mxu0 0.0
    %480 = vmatprep.subr.mxu0 0.0
    %481 = vmatpush1.msra.mxu0 0.0
    %482 = vmatprep.subr.mxu0 0.0
    %483 = vmatpush1.msra.mxu0 0.0
    %484 = vmatprep.subr.mxu0 0.0
    %485 = vmatpush1.msra.mxu0 0.0
    %486 = vmatprep.subr.mxu0 0.0
    %487 = vmatpush1.msra.mxu0 0.0
    %488 = vmatprep.subr.mxu0 0.0
    %489 = vmatpush1.msra.mxu0 %v453
    %490 = vmatprep.subr.mxu0 0.0
    %491 = vmatpush2.msra.mxu0 0.0
    %492 = vmatprep.subr.mxu0 0.0
    %493 = vmatpush2.msra.mxu0 0.0
    %494 = vmatprep.subr.mxu0 0.0
    %495 = vmatpush2.msra.mxu0 0.0
    %496 = vmatprep.subr.mxu0 0.0
    %497 = vmatpush2.msra.mxu0 0.0
    %498 = vmatprep.subr.mxu0 0.0
    %499 = vmatpush2.msra.mxu0 0.0
    %500 = vmatprep.subr.mxu0 0.0
    %501 = vmatpush2.msra.mxu0 0.0
    %502 = vmatprep.subr.mxu0 0.0
    %503 = vmatpush2.msra.mxu0 0.0
    %504 = vmatprep.subr.mxu0 0.0
    %505 = vmatpush2.msra.mxu0 0.0
    %506 = vmatprep.subr.mxu0 0.0
    %507 = vmatpush2.msra.mxu0 0.0
    %508 = vmatprep.subr.mxu0 0.0
    %509 = vmatpush2.msra.mxu0 0.0
    %510 = vmatprep.subr.mxu0 0.0
    %511 = vmatpush2.msra.mxu0 0.0
    %512 = vmatprep.subr.mxu0 0.0
    %513 = vmatpush2.msra.mxu0 0.0
    %514 = vmatprep.subr.mxu0 0.0
    %515 = vmatpush2.msra.mxu0 0.0
    %516 = vmatprep.subr.mxu0 0.0
    %517 = vmatpush2.msra.mxu0 0.0
    %518 = vmatprep.subr.mxu0 0.0
    %519 = vmatpush2.msra.mxu0 0.0
    %520 = vmatprep.subr.mxu0 0.0
    %521 = vmatpush2.msra.mxu0 0.0
    %522 = vmatprep.mubr.f32.mxu0 0.0
    %523 = vmatmul.mubr.f32.gmra.mxu0 %v456
    %v524 = vpop.f32.mrf.mxu0
    %v525 = vadd.f32 0.0, %v524
    %v526 = vpop.f32.mrf.mxu0
    %527 = vdwg.mxu0
    %528 = vrot.lane.b32.xlu0 %v262, 64
    %v529 = vpop.permute.xlu0 %528
    %v532 = vsel %vm278, %v451, 0
    %534 = vmatprep.subr.mxu0 0.0
    %535 = vmatpush1.msra.mxu0 0.0
    %536 = vmatprep.subr.mxu0 0.0
    %537 = vmatpush1.msra.mxu0 0.0
    %538 = vmatprep.subr.mxu0 0.0
    %539 = vmatpush1.msra.mxu0 0.0
    %540 = vmatprep.subr.mxu0 0.0
    %541 = vmatpush1.msra.mxu0 0.0
    %542 = vmatprep.subr.mxu0 0.0
    %543 = vmatpush1.msra.mxu0 0.0
    %544 = vmatprep.subr.mxu0 0.0
    %545 = vmatpush1.msra.mxu0 0.0
    %546 = vmatprep.subr.mxu0 0.0
    %547 = vmatpush1.msra.mxu0 0.0
    %548 = vmatprep.subr.mxu0 0.0
    %549 = vmatpush1.msra.mxu0 0.0
    %550 = vmatprep.subr.mxu0 0.0
    %551 = vmatpush1.msra.mxu0 0.0
    %552 = vmatprep.subr.mxu0 0.0
    %553 = vmatpush1.msra.mxu0 0.0
    %554 = vmatprep.subr.mxu0 0.0
    %555 = vmatpush1.msra.mxu0 0.0
    %556 = vmatprep.subr.mxu0 0.0
    %557 = vmatpush1.msra.mxu0 0.0
    %558 = vmatprep.subr.mxu0 0.0
    %559 = vmatpush1.msra.mxu0 0.0
    %560 = vmatprep.subr.mxu0 0.0
    %561 = vmatpush1.msra.mxu0 0.0
    %562 = vmatprep.subr.mxu0 0.0
    %563 = vmatpush1.msra.mxu0 0.0
    %564 = vmatprep.subr.mxu0 0.0
    %565 = vmatpush1.msra.mxu0 %v529
    %566 = vmatprep.subr.mxu0 0.0
    %567 = vmatpush2.msra.mxu0 0.0
    %568 = vmatprep.subr.mxu0 0.0
    %569 = vmatpush2.msra.mxu0 0.0
    %570 = vmatprep.subr.mxu0 0.0
    %571 = vmatpush2.msra.mxu0 0.0
    %572 = vmatprep.subr.mxu0 0.0
    %573 = vmatpush2.msra.mxu0 0.0
    %574 = vmatprep.subr.mxu0 0.0
    %575 = vmatpush2.msra.mxu0 0.0
    %576 = vmatprep.subr.mxu0 0.0
    %577 = vmatpush2.msra.mxu0 0.0
    %578 = vmatprep.subr.mxu0 0.0
    %579 = vmatpush2.msra.mxu0 0.0
    %580 = vmatprep.subr.mxu0 0.0
    %581 = vmatpush2.msra.mxu0 0.0
    %582 = vmatprep.subr.mxu0 0.0
    %583 = vmatpush2.msra.mxu0 0.0
    %584 = vmatprep.subr.mxu0 0.0
    %585 = vmatpush2.msra.mxu0 0.0
    %586 = vmatprep.subr.mxu0 0.0
    %587 = vmatpush2.msra.mxu0 0.0
    %588 = vmatprep.subr.mxu0 0.0
    %589 = vmatpush2.msra.mxu0 0.0
    %590 = vmatprep.subr.mxu0 0.0
    %591 = vmatpush2.msra.mxu0 0.0
    %592 = vmatprep.subr.mxu0 0.0
    %593 = vmatpush2.msra.mxu0 0.0
    %594 = vmatprep.subr.mxu0 0.0
    %595 = vmatpush2.msra.mxu0 0.0
    %596 = vmatprep.subr.mxu0 0.0
    %597 = vmatpush2.msra.mxu0 0.0
    %598 = vmatprep.mubr.f32.mxu0 0.0
    %599 = vmatmul.mubr.f32.gmra.mxu0 %v532
    %v600 = vpop.f32.mrf.mxu0
    %v601 = vadd.f32 0.0, %v600
    %v602 = vpop.f32.mrf.mxu0
    %603 = vdwg.mxu0
    %604 = vrot.lane.b32.xlu0 %v257, 120
    %v605 = vpop.permute.xlu0 %604
    %606 = vrot.lane.b32.xlu0 %v257, 88
    %v607 = vpop.permute.xlu0 %606
    %v608 = vsel %vm278, %v605, 0
    %v610 = vsel %vm278, %v607, 0
    %612 = vmatprep.subr.mxu0 0.0
    %613 = vmatpush1.xpose.msra.mxu0 0.0
    %614 = vmatprep.subr.mxu0 0.0
    %615 = vmatpush1.xpose.msra.mxu0 0.0
    %616 = vmatprep.subr.mxu0 0.0
    %617 = vmatpush1.xpose.msra.mxu0 0.0
    %618 = vmatprep.subr.mxu0 0.0
    %619 = vmatpush1.xpose.msra.mxu0 0.0
    %620 = vmatprep.subr.mxu0 0.0
    %621 = vmatpush1.xpose.msra.mxu0 0.0
    %622 = vmatprep.subr.mxu0 0.0
    %623 = vmatpush1.xpose.msra.mxu0 0.0
    %624 = vmatprep.subr.mxu0 0.0
    %625 = vmatpush1.xpose.msra.mxu0 0.0
    %626 = vmatprep.subr.mxu0 0.0
    %627 = vmatpush1.xpose.msra.mxu0 0.0
    %628 = vmatprep.subr.mxu0 0.0
    %629 = vmatpush1.xpose.msra.mxu0 0.0
    %630 = vmatprep.subr.mxu0 0.0
    %631 = vmatpush1.xpose.msra.mxu0 0.0
    %632 = vmatprep.subr.mxu0 0.0
    %633 = vmatpush1.xpose.msra.mxu0 0.0
    %634 = vmatprep.subr.mxu0 0.0
    %635 = vmatpush1.xpose.msra.mxu0 0.0
    %636 = vmatprep.subr.mxu0 0.0
    %637 = vmatpush1.xpose.msra.mxu0 0.0
    %638 = vmatprep.subr.mxu0 0.0
    %639 = vmatpush1.xpose.msra.mxu0 0.0
    %640 = vmatprep.subr.mxu0 0.0
    %641 = vmatpush1.xpose.msra.mxu0 0.0
    %642 = vmatprep.subr.mxu0 0.0
    %643 = vmatpush1.xpose.msra.mxu0 %v610
    %644 = vmatprep.subr.mxu0 0.0
    %645 = vmatpush2.xpose.msra.mxu0 0.0
    %646 = vmatprep.subr.mxu0 0.0
    %647 = vmatpush2.xpose.msra.mxu0 0.0
    %648 = vmatprep.subr.mxu0 0.0
    %649 = vmatpush2.xpose.msra.mxu0 0.0
    %650 = vmatprep.subr.mxu0 0.0
    %651 = vmatpush2.xpose.msra.mxu0 0.0
    %652 = vmatprep.subr.mxu0 0.0
    %653 = vmatpush2.xpose.msra.mxu0 0.0
    %654 = vmatprep.subr.mxu0 0.0
    %655 = vmatpush2.xpose.msra.mxu0 0.0
    %656 = vmatprep.subr.mxu0 0.0
    %657 = vmatpush2.xpose.msra.mxu0 0.0
    %658 = vmatprep.subr.mxu0 0.0
    %659 = vmatpush2.xpose.msra.mxu0 0.0
    %660 = vmatprep.subr.mxu0 0.0
    %661 = vmatpush2.xpose.msra.mxu0 0.0
    %662 = vmatprep.subr.mxu0 0.0
    %663 = vmatpush2.xpose.msra.mxu0 0.0
    %664 = vmatprep.subr.mxu0 0.0
    %665 = vmatpush2.xpose.msra.mxu0 0.0
    %666 = vmatprep.subr.mxu0 0.0
    %667 = vmatpush2.xpose.msra.mxu0 0.0
    %668 = vmatprep.subr.mxu0 0.0
    %669 = vmatpush2.xpose.msra.mxu0 0.0
    %670 = vmatprep.subr.mxu0 0.0
    %671 = vmatpush2.xpose.msra.mxu0 0.0
    %672 = vmatprep.subr.mxu0 0.0
    %673 = vmatpush2.xpose.msra.mxu0 0.0
    %674 = vmatprep.subr.mxu0 0.0
    %675 = vmatpush2.xpose.msra.mxu0 0.0
    %676 = vmatprep.mubr.f32.mxu0 0.0
    %677 = vmatmul.mubr.f32.gmra.mxu0 %v608
    %v678 = vpop.f32.mrf.mxu0
    %v679 = vadd.f32 %v268, %v678
    %v680 = vpop.f32.mrf.mxu0
    %681 = vdwg.mxu0
    %682 = vrot.lane.b32.xlu0 %v262, 120
    %v683 = vpop.permute.xlu0 %682
    %684 = vrot.lane.b32.xlu0 %v262, 88
    %v685 = vpop.permute.xlu0 %684
    %v686 = vsel %vm278, %v683, 0
    %v688 = vsel %vm278, %v685, 0
    %690 = vmatprep.subr.mxu0 0.0
    %691 = vmatpush1.xpose.msra.mxu0 0.0
    %692 = vmatprep.subr.mxu0 0.0
    %693 = vmatpush1.xpose.msra.mxu0 0.0
    %694 = vmatprep.subr.mxu0 0.0
    %695 = vmatpush1.xpose.msra.mxu0 0.0
    %696 = vmatprep.subr.mxu0 0.0
    %697 = vmatpush1.xpose.msra.mxu0 0.0
    %698 = vmatprep.subr.mxu0 0.0
    %699 = vmatpush1.xpose.msra.mxu0 0.0
    %700 = vmatprep.subr.mxu0 0.0
    %701 = vmatpush1.xpose.msra.mxu0 0.0
    %702 = vmatprep.subr.mxu0 0.0
    %703 = vmatpush1.xpose.msra.mxu0 0.0
    %704 = vmatprep.subr.mxu0 0.0
    %705 = vmatpush1.xpose.msra.mxu0 0.0
    %706 = vmatprep.subr.mxu0 0.0
    %707 = vmatpush1.xpose.msra.mxu0 0.0
    %708 = vmatprep.subr.mxu0 0.0
    %709 = vmatpush1.xpose.msra.mxu0 0.0
    %710 = vmatprep.subr.mxu0 0.0
    %711 = vmatpush1.xpose.msra.mxu0 0.0
    %712 = vmatprep.subr.mxu0 0.0
    %713 = vmatpush1.xpose.msra.mxu0 0.0
    %714 = vmatprep.subr.mxu0 0.0
    %715 = vmatpush1.xpose.msra.mxu0 0.0
    %716 = vmatprep.subr.mxu0 0.0
    %717 = vmatpush1.xpose.msra.mxu0 0.0
    %718 = vmatprep.subr.mxu0 0.0
    %719 = vmatpush1.xpose.msra.mxu0 0.0
    %720 = vmatprep.subr.mxu0 0.0
    %721 = vmatpush1.xpose.msra.mxu0 %v688
    %722 = vmatprep.subr.mxu0 0.0
    %723 = vmatpush2.xpose.msra.mxu0 0.0
    %724 = vmatprep.subr.mxu0 0.0
    %725 = vmatpush2.xpose.msra.mxu0 0.0
    %726 = vmatprep.subr.mxu0 0.0
    %727 = vmatpush2.xpose.msra.mxu0 0.0
    %728 = vmatprep.subr.mxu0 0.0
    %729 = vmatpush2.xpose.msra.mxu0 0.0
    %730 = vmatprep.subr.mxu0 0.0
    %731 = vmatpush2.xpose.msra.mxu0 0.0
    %732 = vmatprep.subr.mxu0 0.0
    %733 = vmatpush2.xpose.msra.mxu0 0.0
    %734 = vmatprep.subr.mxu0 0.0
    %735 = vmatpush2.xpose.msra.mxu0 0.0
    %736 = vmatprep.subr.mxu0 0.0
    %737 = vmatpush2.xpose.msra.mxu0 0.0
    %738 = vmatprep.subr.mxu0 0.0
    %739 = vmatpush2.xpose.msra.mxu0 0.0
    %740 = vmatprep.subr.mxu0 0.0
    %741 = vmatpush2.xpose.msra.mxu0 0.0
    %742 = vmatprep.subr.mxu0 0.0
    %743 = vmatpush2.xpose.msra.mxu0 0.0
    %744 = vmatprep.subr.mxu0 0.0
    %745 = vmatpush2.xpose.msra.mxu0 0.0
    %746 = vmatprep.subr.mxu0 0.0
    %747 = vmatpush2.xpose.msra.mxu0 0.0
    %748 = vmatprep.subr.mxu0 0.0
    %749 = vmatpush2.xpose.msra.mxu0 0.0
    %750 = vmatprep.subr.mxu0 0.0
    %751 = vmatpush2.xpose.msra.mxu0 0.0
    %752 = vmatprep.subr.mxu0 0.0
    %753 = vmatpush2.xpose.msra.mxu0 0.0
    %754 = vmatprep.mubr.f32.mxu0 0.0
    %755 = vmatmul.mubr.f32.gmra.mxu0 %v686
    %v756 = vpop.f32.mrf.mxu0
    %v757 = vadd.f32 %v272, %v756
    %v758 = vpop.f32.mrf.mxu0
    %759 = vdwg.mxu0
    %v760 = vsel %vm278, %v679, -inf
    %761 = vmax.xlane.f32.xlu0 %v760
    %v762 = vpop.xlane.xlu0 %761
    %v763 = vsel %vm278, %v757, -inf
    %764 = vmax.xlane.f32.xlu0 %v763
    %v765 = vpop.xlane.xlu0 %764
    %v766 = vsub.f32 %v679, %v762
    %v767 = vsub.f32 %v757, %v765
    %v768 = vmul.f32 %v766, 1.442695
    %v769 = vpow.pop %v768
    %v770 = vmul.f32 %v767, 1.442695
    %v771 = vpow.pop %v770
    %v772 = vsel %vm278, %v769, 0.0
    %773 = vadd.xlane.f32.xlu0 %v772
    %v774 = vpop.xlane.xlu0 %773
    %v775 = vsel %vm278, %v771, 0.0
    %776 = vadd.xlane.f32.xlu0 %v775
    %v777 = vpop.xlane.xlu0 %776
    %v778 = vrcp.pop %v774
    %v779 = vmul.f32 %v769, %v778
    %v780 = vrcp.pop %v777
    %v781 = vmul.f32 %v771, %v780
    %782 = vrot.lane.b32.xlu0 %v257, 56
    %v783 = vpop.permute.xlu0 %782
    %v786 = vsel %vm278, %v779, 0
    %788 = vmatprep.subr.mxu0 0.0
    %789 = vmatpush1.msra.mxu0 0.0
    %790 = vmatprep.subr.mxu0 0.0
    %791 = vmatpush1.msra.mxu0 0.0
    %792 = vmatprep.subr.mxu0 0.0
    %793 = vmatpush1.msra.mxu0 0.0
    %794 = vmatprep.subr.mxu0 0.0
    %795 = vmatpush1.msra.mxu0 0.0
    %796 = vmatprep.subr.mxu0 0.0
    %797 = vmatpush1.msra.mxu0 0.0
    %798 = vmatprep.subr.mxu0 0.0
    %799 = vmatpush1.msra.mxu0 0.0
    %800 = vmatprep.subr.mxu0 0.0
    %801 = vmatpush1.msra.mxu0 0.0
    %802 = vmatprep.subr.mxu0 0.0
    %803 = vmatpush1.msra.mxu0 0.0
    %804 = vmatprep.subr.mxu0 0.0
    %805 = vmatpush1.msra.mxu0 0.0
    %806 = vmatprep.subr.mxu0 0.0
    %807 = vmatpush1.msra.mxu0 0.0
    %808 = vmatprep.subr.mxu0 0.0
    %809 = vmatpush1.msra.mxu0 0.0
    %810 = vmatprep.subr.mxu0 0.0
    %811 = vmatpush1.msra.mxu0 0.0
    %812 = vmatprep.subr.mxu0 0.0
    %813 = vmatpush1.msra.mxu0 0.0
    %814 = vmatprep.subr.mxu0 0.0
    %815 = vmatpush1.msra.mxu0 0.0
    %816 = vmatprep.subr.mxu0 0.0
    %817 = vmatpush1.msra.mxu0 0.0
    %818 = vmatprep.subr.mxu0 0.0
    %819 = vmatpush1.msra.mxu0 %v783
    %820 = vmatprep.subr.mxu0 0.0
    %821 = vmatpush2.msra.mxu0 0.0
    %822 = vmatprep.subr.mxu0 0.0
    %823 = vmatpush2.msra.mxu0 0.0
    %824 = vmatprep.subr.mxu0 0.0
    %825 = vmatpush2.msra.mxu0 0.0
    %826 = vmatprep.subr.mxu0 0.0
    %827 = vmatpush2.msra.mxu0 0.0
    %828 = vmatprep.subr.mxu0 0.0
    %829 = vmatpush2.msra.mxu0 0.0
    %830 = vmatprep.subr.mxu0 0.0
    %831 = vmatpush2.msra.mxu0 0.0
    %832 = vmatprep.subr.mxu0 0.0
    %833 = vmatpush2.msra.mxu0 0.0
    %834 = vmatprep.subr.mxu0 0.0
    %835 = vmatpush2.msra.mxu0 0.0
    %836 = vmatprep.subr.mxu0 0.0
    %837 = vmatpush2.msra.mxu0 0.0
    %838 = vmatprep.subr.mxu0 0.0
    %839 = vmatpush2.msra.mxu0 0.0
    %840 = vmatprep.subr.mxu0 0.0
    %841 = vmatpush2.msra.mxu0 0.0
    %842 = vmatprep.subr.mxu0 0.0
    %843 = vmatpush2.msra.mxu0 0.0
    %844 = vmatprep.subr.mxu0 0.0
    %845 = vmatpush2.msra.mxu0 0.0
    %846 = vmatprep.subr.mxu0 0.0
    %847 = vmatpush2.msra.mxu0 0.0
    %848 = vmatprep.subr.mxu0 0.0
    %849 = vmatpush2.msra.mxu0 0.0
    %850 = vmatprep.subr.mxu0 0.0
    %851 = vmatpush2.msra.mxu0 0.0
    %852 = vmatprep.mubr.f32.mxu0 0.0
    %853 = vmatmul.mubr.f32.gmra.mxu0 %v786
    %v854 = vpop.f32.mrf.mxu0
    %v855 = vadd.f32 0.0, %v854
    %v856 = vpop.f32.mrf.mxu0
    %857 = vdwg.mxu0
    %858 = vrot.lane.b32.xlu0 %v262, 56
    %v859 = vpop.permute.xlu0 %858
    %v862 = vsel %vm278, %v781, 0
    %864 = vmatprep.subr.mxu0 0.0
    %865 = vmatpush1.msra.mxu0 0.0
    %866 = vmatprep.subr.mxu0 0.0
    %867 = vmatpush1.msra.mxu0 0.0
    %868 = vmatprep.subr.mxu0 0.0
    %869 = vmatpush1.msra.mxu0 0.0
    %870 = vmatprep.subr.mxu0 0.0
    %871 = vmatpush1.msra.mxu0 0.0
    %872 = vmatprep.subr.mxu0 0.0
    %873 = vmatpush1.msra.mxu0 0.0
    %874 = vmatprep.subr.mxu0 0.0
    %875 = vmatpush1.msra.mxu0 0.0
    %876 = vmatprep.subr.mxu0 0.0
    %877 = vmatpush1.msra.mxu0 0.0
    %878 = vmatprep.subr.mxu0 0.0
    %879 = vmatpush1.msra.mxu0 0.0
    %880 = vmatprep.subr.mxu0 0.0
    %881 = vmatpush1.msra.mxu0 0.0
    %882 = vmatprep.subr.mxu0 0.0
    %883 = vmatpush1.msra.mxu0 0.0
    %884 = vmatprep.subr.mxu0 0.0
    %885 = vmatpush1.msra.mxu0 0.0
    %886 = vmatprep.subr.mxu0 0.0
    %887 = vmatpush1.msra.mxu0 0.0
    %888 = vmatprep.subr.mxu0 0.0
    %889 = vmatpush1.msra.mxu0 0.0
    %890 = vmatprep.subr.mxu0 0.0
    %891 = vmatpush1.msra.mxu0 0.0
    %892 = vmatprep.subr.mxu0 0.0
    %893 = vmatpush1.msra.mxu0 0.0
    %894 = vmatprep.subr.mxu0 0.0
    %895 = vmatpush1.msra.mxu0 %v859
    %896 = vmatprep.subr.mxu0 0.0
    %897 = vmatpush2.msra.mxu0 0.0
    %898 = vmatprep.subr.mxu0 0.0
    %899 = vmatpush2.msra.mxu0 0.0
    %900 = vmatprep.subr.mxu0 0.0
    %901 = vmatpush2.msra.mxu0 0.0
    %902 = vmatprep.subr.mxu0 0.0
    %903 = vmatpush2.msra.mxu0 0.0
    %904 = vmatprep.subr.mxu0 0.0
    %905 = vmatpush2.msra.mxu0 0.0
    %906 = vmatprep.subr.mxu0 0.0
    %907 = vmatpush2.msra.mxu0 0.0
    %908 = vmatprep.subr.mxu0 0.0
    %909 = vmatpush2.msra.mxu0 0.0
    %910 = vmatprep.subr.mxu0 0.0
    %911 = vmatpush2.msra.mxu0 0.0
    %912 = vmatprep.subr.mxu0 0.0
    %913 = vmatpush2.msra.mxu0 0.0
    %914 = vmatprep.subr.mxu0 0.0
    %915 = vmatpush2.msra.mxu0 0.0
    %916 = vmatprep.subr.mxu0 0.0
    %917 = vmatpush2.msra.mxu0 0.0
    %918 = vmatprep.subr.mxu0 0.0
    %919 = vmatpush2.msra.mxu0 0.0
    %920 = vmatprep.subr.mxu0 0.0
    %921 = vmatpush2.msra.mxu0 0.0
    %922 = vmatprep.subr.mxu0 0.0
    %923 = vmatpush2.msra.mxu0 0.0
    %924 = vmatprep.subr.mxu0 0.0
    %925 = vmatpush2.msra.mxu0 0.0
    %926 = vmatprep.subr.mxu0 0.0
    %927 = vmatpush2.msra.mxu0 0.0
    %928 = vmatprep.mubr.f32.mxu0 0.0
    %929 = vmatmul.mubr.f32.gmra.mxu0 %v862
    %v930 = vpop.f32.mrf.mxu0
    %v931 = vadd.f32 0.0, %v930
    %v932 = vpop.f32.mrf.mxu0
    %933 = vdwg.mxu0
    %934 = vrot.lane.b32.xlu0 %v257, 112
    %v935 = vpop.permute.xlu0 %934
    %936 = vrot.lane.b32.xlu0 %v257, 80
    %v937 = vpop.permute.xlu0 %936
    %v938 = vsel %vm278, %v935, 0
    %v940 = vsel %vm278, %v937, 0
    %942 = vmatprep.subr.mxu0 0.0
    %943 = vmatpush1.xpose.msra.mxu0 0.0
    %944 = vmatprep.subr.mxu0 0.0
    %945 = vmatpush1.xpose.msra.mxu0 0.0
    %946 = vmatprep.subr.mxu0 0.0
    %947 = vmatpush1.xpose.msra.mxu0 0.0
    %948 = vmatprep.subr.mxu0 0.0
    %949 = vmatpush1.xpose.msra.mxu0 0.0
    %950 = vmatprep.subr.mxu0 0.0
    %951 = vmatpush1.xpose.msra.mxu0 0.0
    %952 = vmatprep.subr.mxu0 0.0
    %953 = vmatpush1.xpose.msra.mxu0 0.0
    %954 = vmatprep.subr.mxu0 0.0
    %955 = vmatpush1.xpose.msra.mxu0 0.0
    %956 = vmatprep.subr.mxu0 0.0
    %957 = vmatpush1.xpose.msra.mxu0 0.0
    %958 = vmatprep.subr.mxu0 0.0
    %959 = vmatpush1.xpose.msra.mxu0 0.0
    %960 = vmatprep.subr.mxu0 0.0
    %961 = vmatpush1.xpose.msra.mxu0 0.0
    %962 = vmatprep.subr.mxu0 0.0
    %963 = vmatpush1.xpose.msra.mxu0 0.0
    %964 = vmatprep.subr.mxu0 0.0
    %965 = vmatpush1.xpose.msra.mxu0 0.0
    %966 = vmatprep.subr.mxu0 0.0
    %967 = vmatpush1.xpose.msra.mxu0 0.0
    %968 = vmatprep.subr.mxu0 0.0
    %969 = vmatpush1.xpose.msra.mxu0 0.0
    %970 = vmatprep.subr.mxu0 0.0
    %971 = vmatpush1.xpose.msra.mxu0 0.0
    %972 = vmatprep.subr.mxu0 0.0
    %973 = vmatpush1.xpose.msra.mxu0 %v940
    %974 = vmatprep.subr.mxu0 0.0
    %975 = vmatpush2.xpose.msra.mxu0 0.0
    %976 = vmatprep.subr.mxu0 0.0
    %977 = vmatpush2.xpose.msra.mxu0 0.0
    %978 = vmatprep.subr.mxu0 0.0
    %979 = vmatpush2.xpose.msra.mxu0 0.0
    %980 = vmatprep.subr.mxu0 0.0
    %981 = vmatpush2.xpose.msra.mxu0 0.0
    %982 = vmatprep.subr.mxu0 0.0
    %983 = vmatpush2.xpose.msra.mxu0 0.0
    %984 = vmatprep.subr.mxu0 0.0
    %985 = vmatpush2.xpose.msra.mxu0 0.0
    %986 = vmatprep.subr.mxu0 0.0
    %987 = vmatpush2.xpose.msra.mxu0 0.0
    %988 = vmatprep.subr.mxu0 0.0
    %989 = vmatpush2.xpose.msra.mxu0 0.0
    %990 = vmatprep.subr.mxu0 0.0
    %991 = vmatpush2.xpose.msra.mxu0 0.0
    %992 = vmatprep.subr.mxu0 0.0
    %993 = vmatpush2.xpose.msra.mxu0 0.0
    %994 = vmatprep.subr.mxu0 0.0
    %995 = vmatpush2.xpose.msra.mxu0 0.0
    %996 = vmatprep.subr.mxu0 0.0
    %997 = vmatpush2.xpose.msra.mxu0 0.0
    %998 = vmatprep.subr.mxu0 0.0
    %999 = vmatpush2.xpose.msra.mxu0 0.0
    %1000 = vmatprep.subr.mxu0 0.0
    %1001 = vmatpush2.xpose.msra.mxu0 0.0
    %1002 = vmatprep.subr.mxu0 0.0
    %1003 = vmatpush2.xpose.msra.mxu0 0.0
    %1004 = vmatprep.subr.mxu0 0.0
    %1005 = vmatpush2.xpose.msra.mxu0 0.0
    %1006 = vmatprep.mubr.f32.mxu0 0.0
    %1007 = vmatmul.mubr.f32.gmra.mxu0 %v938
    %v1008 = vpop.f32.mrf.mxu0
    %v1009 = vadd.f32 %v268, %v1008
    %v1010 = vpop.f32.mrf.mxu0
    %1011 = vdwg.mxu0
    %1012 = vrot.lane.b32.xlu0 %v262, 112
    %v1013 = vpop.permute.xlu0 %1012
    %1014 = vrot.lane.b32.xlu0 %v262, 80
    %v1015 = vpop.permute.xlu0 %1014
    %v1016 = vsel %vm278, %v1013, 0
    %v1018 = vsel %vm278, %v1015, 0
    %1020 = vmatprep.subr.mxu0 0.0
    %1021 = vmatpush1.xpose.msra.mxu0 0.0
    %1022 = vmatprep.subr.mxu0 0.0
    %1023 = vmatpush1.xpose.msra.mxu0 0.0
    %1024 = vmatprep.subr.mxu0 0.0
    %1025 = vmatpush1.xpose.msra.mxu0 0.0
    %1026 = vmatprep.subr.mxu0 0.0
    %1027 = vmatpush1.xpose.msra.mxu0 0.0
    %1028 = vmatprep.subr.mxu0 0.0
    %1029 = vmatpush1.xpose.msra.mxu0 0.0
    %1030 = vmatprep.subr.mxu0 0.0
    %1031 = vmatpush1.xpose.msra.mxu0 0.0
    %1032 = vmatprep.subr.mxu0 0.0
    %1033 = vmatpush1.xpose.msra.mxu0 0.0
    %1034 = vmatprep.subr.mxu0 0.0
    %1035 = vmatpush1.xpose.msra.mxu0 0.0
    %1036 = vmatprep.subr.mxu0 0.0
    %1037 = vmatpush1.xpose.msra.mxu0 0.0
    %1038 = vmatprep.subr.mxu0 0.0
    %1039 = vmatpush1.xpose.msra.mxu0 0.0
    %1040 = vmatprep.subr.mxu0 0.0
    %1041 = vmatpush1.xpose.msra.mxu0 0.0
    %1042 = vmatprep.subr.mxu0 0.0
    %1043 = vmatpush1.xpose.msra.mxu0 0.0
    %1044 = vmatprep.subr.mxu0 0.0
    %1045 = vmatpush1.xpose.msra.mxu0 0.0
    %1046 = vmatprep.subr.mxu0 0.0
    %1047 = vmatpush1.xpose.msra.mxu0 0.0
    %1048 = vmatprep.subr.mxu0 0.0
    %1049 = vmatpush1.xpose.msra.mxu0 0.0
    %1050 = vmatprep.subr.mxu0 0.0
    %1051 = vmatpush1.xpose.msra.mxu0 %v1018
    %1052 = vmatprep.subr.mxu0 0.0
    %1053 = vmatpush2.xpose.msra.mxu0 0.0
    %1054 = vmatprep.subr.mxu0 0.0
    %1055 = vmatpush2.xpose.msra.mxu0 0.0
    %1056 = vmatprep.subr.mxu0 0.0
    %1057 = vmatpush2.xpose.msra.mxu0 0.0
    %1058 = vmatprep.subr.mxu0 0.0
    %1059 = vmatpush2.xpose.msra.mxu0 0.0
    %1060 = vmatprep.subr.mxu0 0.0
    %1061 = vmatpush2.xpose.msra.mxu0 0.0
    %1062 = vmatprep.subr.mxu0 0.0
    %1063 = vmatpush2.xpose.msra.mxu0 0.0
    %1064 = vmatprep.subr.mxu0 0.0
    %1065 = vmatpush2.xpose.msra.mxu0 0.0
    %1066 = vmatprep.subr.mxu0 0.0
    %1067 = vmatpush2.xpose.msra.mxu0 0.0
    %1068 = vmatprep.subr.mxu0 0.0
    %1069 = vmatpush2.xpose.msra.mxu0 0.0
    %1070 = vmatprep.subr.mxu0 0.0
    %1071 = vmatpush2.xpose.msra.mxu0 0.0
    %1072 = vmatprep.subr.mxu0 0.0
    %1073 = vmatpush2.xpose.msra.mxu0 0.0
    %1074 = vmatprep.subr.mxu0 0.0
    %1075 = vmatpush2.xpose.msra.mxu0 0.0
    %1076 = vmatprep.subr.mxu0 0.0
    %1077 = vmatpush2.xpose.msra.mxu0 0.0
    %1078 = vmatprep.subr.mxu0 0.0
    %1079 = vmatpush2.xpose.msra.mxu0 0.0
    %1080 = vmatprep.subr.mxu0 0.0
    %1081 = vmatpush2.xpose.msra.mxu0 0.0
    %1082 = vmatprep.subr.mxu0 0.0
    %1083 = vmatpush2.xpose.msra.mxu0 0.0
    %1084 = vmatprep.mubr.f32.mxu0 0.0
    %1085 = vmatmul.mubr.f32.gmra.mxu0 %v1016
    %v1086 = vpop.f32.mrf.mxu0
    %v1087 = vadd.f32 %v272, %v1086
    %v1088 = vpop.f32.mrf.mxu0
    %1089 = vdwg.mxu0
    %v1090 = vsel %vm278, %v1009, -inf
    %1091 = vmax.xlane.f32.xlu0 %v1090
    %v1092 = vpop.xlane.xlu0 %1091
    %v1093 = vsel %vm278, %v1087, -inf
    %1094 = vmax.xlane.f32.xlu0 %v1093
    %v1095 = vpop.xlane.xlu0 %1094
    %v1096 = vsub.f32 %v1009, %v1092
    %v1097 = vsub.f32 %v1087, %v1095
    %v1098 = vmul.f32 %v1096, 1.442695
    %v1099 = vpow.pop %v1098
    %v1100 = vmul.f32 %v1097, 1.442695
    %v1101 = vpow.pop %v1100
    %v1102 = vsel %vm278, %v1099, 0.0
    %1103 = vadd.xlane.f32.xlu0 %v1102
    %v1104 = vpop.xlane.xlu0 %1103
    %v1105 = vsel %vm278, %v1101, 0.0
    %1106 = vadd.xlane.f32.xlu0 %v1105
    %v1107 = vpop.xlane.xlu0 %1106
    %v1108 = vrcp.pop %v1104
    %v1109 = vmul.f32 %v1099, %v1108
    %v1110 = vrcp.pop %v1107
    %v1111 = vmul.f32 %v1101, %v1110
    %1112 = vrot.lane.b32.xlu0 %v257, 48
    %v1113 = vpop.permute.xlu0 %1112
    %v1116 = vsel %vm278, %v1109, 0
    %1118 = vmatprep.subr.mxu0 0.0
    %1119 = vmatpush1.msra.mxu0 0.0
    %1120 = vmatprep.subr.mxu0 0.0
    %1121 = vmatpush1.msra.mxu0 0.0
    %1122 = vmatprep.subr.mxu0 0.0
    %1123 = vmatpush1.msra.mxu0 0.0
    %1124 = vmatprep.subr.mxu0 0.0
    %1125 = vmatpush1.msra.mxu0 0.0
    %1126 = vmatprep.subr.mxu0 0.0
    %1127 = vmatpush1.msra.mxu0 0.0
    %1128 = vmatprep.subr.mxu0 0.0
    %1129 = vmatpush1.msra.mxu0 0.0
    %1130 = vmatprep.subr.mxu0 0.0
    %1131 = vmatpush1.msra.mxu0 0.0
    %1132 = vmatprep.subr.mxu0 0.0
    %1133 = vmatpush1.msra.mxu0 0.0
    %1134 = vmatprep.subr.mxu0 0.0
    %1135 = vmatpush1.msra.mxu0 0.0
    %1136 = vmatprep.subr.mxu0 0.0
    %1137 = vmatpush1.msra.mxu0 0.0
    %1138 = vmatprep.subr.mxu0 0.0
    %1139 = vmatpush1.msra.mxu0 0.0
    %1140 = vmatprep.subr.mxu0 0.0
    %1141 = vmatpush1.msra.mxu0 0.0
    %1142 = vmatprep.subr.mxu0 0.0
    %1143 = vmatpush1.msra.mxu0 0.0
    %1144 = vmatprep.subr.mxu0 0.0
    %1145 = vmatpush1.msra.mxu0 0.0
    %1146 = vmatprep.subr.mxu0 0.0
    %1147 = vmatpush1.msra.mxu0 0.0
    %1148 = vmatprep.subr.mxu0 0.0
    %1149 = vmatpush1.msra.mxu0 %v1113
    %1150 = vmatprep.subr.mxu0 0.0
    %1151 = vmatpush2.msra.mxu0 0.0
    %1152 = vmatprep.subr.mxu0 0.0
    %1153 = vmatpush2.msra.mxu0 0.0
    %1154 = vmatprep.subr.mxu0 0.0
    %1155 = vmatpush2.msra.mxu0 0.0
    %1156 = vmatprep.subr.mxu0 0.0
    %1157 = vmatpush2.msra.mxu0 0.0
    %1158 = vmatprep.subr.mxu0 0.0
    %1159 = vmatpush2.msra.mxu0 0.0
    %1160 = vmatprep.subr.mxu0 0.0
    %1161 = vmatpush2.msra.mxu0 0.0
    %1162 = vmatprep.subr.mxu0 0.0
    %1163 = vmatpush2.msra.mxu0 0.0
    %1164 = vmatprep.subr.mxu0 0.0
    %1165 = vmatpush2.msra.mxu0 0.0
    %1166 = vmatprep.subr.mxu0 0.0
    %1167 = vmatpush2.msra.mxu0 0.0
    %1168 = vmatprep.subr.mxu0 0.0
    %1169 = vmatpush2.msra.mxu0 0.0
    %1170 = vmatprep.subr.mxu0 0.0
    %1171 = vmatpush2.msra.mxu0 0.0
    %1172 = vmatprep.subr.mxu0 0.0
    %1173 = vmatpush2.msra.mxu0 0.0
    %1174 = vmatprep.subr.mxu0 0.0
    %1175 = vmatpush2.msra.mxu0 0.0
    %1176 = vmatprep.subr.mxu0 0.0
    %1177 = vmatpush2.msra.mxu0 0.0
    %1178 = vmatprep.subr.mxu0 0.0
    %1179 = vmatpush2.msra.mxu0 0.0
    %1180 = vmatprep.subr.mxu0 0.0
    %1181 = vmatpush2.msra.mxu0 0.0
    %1182 = vmatprep.mubr.f32.mxu0 0.0
    %1183 = vmatmul.mubr.f32.gmra.mxu0 %v1116
    %v1184 = vpop.f32.mrf.mxu0
    %v1185 = vadd.f32 0.0, %v1184
    %v1186 = vpop.f32.mrf.mxu0
    %1187 = vdwg.mxu0
    %1188 = vrot.lane.b32.xlu0 %v262, 48
    %v1189 = vpop.permute.xlu0 %1188
    %v1192 = vsel %vm278, %v1111, 0
    %1194 = vmatprep.subr.mxu0 0.0
    %1195 = vmatpush1.msra.mxu0 0.0
    %1196 = vmatprep.subr.mxu0 0.0
    %1197 = vmatpush1.msra.mxu0 0.0
    %1198 = vmatprep.subr.mxu0 0.0
    %1199 = vmatpush1.msra.mxu0 0.0
    %1200 = vmatprep.subr.mxu0 0.0
    %1201 = vmatpush1.msra.mxu0 0.0
    %1202 = vmatprep.subr.mxu0 0.0
    %1203 = vmatpush1.msra.mxu0 0.0
    %1204 = vmatprep.subr.mxu0 0.0
    %1205 = vmatpush1.msra.mxu0 0.0
    %1206 = vmatprep.subr.mxu0 0.0
    %1207 = vmatpush1.msra.mxu0 0.0
    %1208 = vmatprep.subr.mxu0 0.0
    %1209 = vmatpush1.msra.mxu0 0.0
    %1210 = vmatprep.subr.mxu0 0.0
    %1211 = vmatpush1.msra.mxu0 0.0
    %1212 = vmatprep.subr.mxu0 0.0
    %1213 = vmatpush1.msra.mxu0 0.0
    %1214 = vmatprep.subr.mxu0 0.0
    %1215 = vmatpush1.msra.mxu0 0.0
    %1216 = vmatprep.subr.mxu0 0.0
    %1217 = vmatpush1.msra.mxu0 0.0
    %1218 = vmatprep.subr.mxu0 0.0
    %1219 = vmatpush1.msra.mxu0 0.0
    %1220 = vmatprep.subr.mxu0 0.0
    %1221 = vmatpush1.msra.mxu0 0.0
    %1222 = vmatprep.subr.mxu0 0.0
    %1223 = vmatpush1.msra.mxu0 0.0
    %1224 = vmatprep.subr.mxu0 0.0
    %1225 = vmatpush1.msra.mxu0 %v1189
    %1226 = vmatprep.subr.mxu0 0.0
    %1227 = vmatpush2.msra.mxu0 0.0
    %1228 = vmatprep.subr.mxu0 0.0
    %1229 = vmatpush2.msra.mxu0 0.0
    %1230 = vmatprep.subr.mxu0 0.0
    %1231 = vmatpush2.msra.mxu0 0.0
    %1232 = vmatprep.subr.mxu0 0.0
    %1233 = vmatpush2.msra.mxu0 0.0
    %1234 = vmatprep.subr.mxu0 0.0
    %1235 = vmatpush2.msra.mxu0 0.0
    %1236 = vmatprep.subr.mxu0 0.0
    %1237 = vmatpush2.msra.mxu0 0.0
    %1238 = vmatprep.subr.mxu0 0.0
    %1239 = vmatpush2.msra.mxu0 0.0
    %1240 = vmatprep.subr.mxu0 0.0
    %1241 = vmatpush2.msra.mxu0 0.0
    %1242 = vmatprep.subr.mxu0 0.0
    %1243 = vmatpush2.msra.mxu0 0.0
    %1244 = vmatprep.subr.mxu0 0.0
    %1245 = vmatpush2.msra.mxu0 0.0
    %1246 = vmatprep.subr.mxu0 0.0
    %1247 = vmatpush2.msra.mxu0 0.0
    %1248 = vmatprep.subr.mxu0 0.0
    %1249 = vmatpush2.msra.mxu0 0.0
    %1250 = vmatprep.subr.mxu0 0.0
    %1251 = vmatpush2.msra.mxu0 0.0
    %1252 = vmatprep.subr.mxu0 0.0
    %1253 = vmatpush2.msra.mxu0 0.0
    %1254 = vmatprep.subr.mxu0 0.0
    %1255 = vmatpush2.msra.mxu0 0.0
    %1256 = vmatprep.subr.mxu0 0.0
    %1257 = vmatpush2.msra.mxu0 0.0
    %1258 = vmatprep.mubr.f32.mxu0 0.0
    %1259 = vmatmul.mubr.f32.gmra.mxu0 %v1192
    %v1260 = vpop.f32.mrf.mxu0
    %v1261 = vadd.f32 0.0, %v1260
    %v1262 = vpop.f32.mrf.mxu0
    %1263 = vdwg.mxu0
    %1264 = vrot.lane.b32.xlu0 %v257, 104
    %v1265 = vpop.permute.xlu0 %1264
    %1266 = vrot.lane.b32.xlu0 %v257, 72
    %v1267 = vpop.permute.xlu0 %1266
    %v1268 = vsel %vm278, %v1265, 0
    %v1270 = vsel %vm278, %v1267, 0
    %1272 = vmatprep.subr.mxu0 0.0
    %1273 = vmatpush1.xpose.msra.mxu0 0.0
    %1274 = vmatprep.subr.mxu0 0.0
    %1275 = vmatpush1.xpose.msra.mxu0 0.0
    %1276 = vmatprep.subr.mxu0 0.0
    %1277 = vmatpush1.xpose.msra.mxu0 0.0
    %1278 = vmatprep.subr.mxu0 0.0
    %1279 = vmatpush1.xpose.msra.mxu0 0.0
    %1280 = vmatprep.subr.mxu0 0.0
    %1281 = vmatpush1.xpose.msra.mxu0 0.0
    %1282 = vmatprep.subr.mxu0 0.0
    %1283 = vmatpush1.xpose.msra.mxu0 0.0
    %1284 = vmatprep.subr.mxu0 0.0
    %1285 = vmatpush1.xpose.msra.mxu0 0.0
    %1286 = vmatprep.subr.mxu0 0.0
    %1287 = vmatpush1.xpose.msra.mxu0 0.0
    %1288 = vmatprep.subr.mxu0 0.0
    %1289 = vmatpush1.xpose.msra.mxu0 0.0
    %1290 = vmatprep.subr.mxu0 0.0
    %1291 = vmatpush1.xpose.msra.mxu0 0.0
    %1292 = vmatprep.subr.mxu0 0.0
    %1293 = vmatpush1.xpose.msra.mxu0 0.0
    %1294 = vmatprep.subr.mxu0 0.0
    %1295 = vmatpush1.xpose.msra.mxu0 0.0
    %1296 = vmatprep.subr.mxu0 0.0
    %1297 = vmatpush1.xpose.msra.mxu0 0.0
    %1298 = vmatprep.subr.mxu0 0.0
    %1299 = vmatpush1.xpose.msra.mxu0 0.0
    %1300 = vmatprep.subr.mxu0 0.0
    %1301 = vmatpush1.xpose.msra.mxu0 0.0
    %1302 = vmatprep.subr.mxu0 0.0
    %1303 = vmatpush1.xpose.msra.mxu0 %v1270
    %1304 = vmatprep.subr.mxu0 0.0
    %1305 = vmatpush2.xpose.msra.mxu0 0.0
    %1306 = vmatprep.subr.mxu0 0.0
    %1307 = vmatpush2.xpose.msra.mxu0 0.0
    %1308 = vmatprep.subr.mxu0 0.0
    %1309 = vmatpush2.xpose.msra.mxu0 0.0
    %1310 = vmatprep.subr.mxu0 0.0
    %1311 = vmatpush2.xpose.msra.mxu0 0.0
    %1312 = vmatprep.subr.mxu0 0.0
    %1313 = vmatpush2.xpose.msra.mxu0 0.0
    %1314 = vmatprep.subr.mxu0 0.0
    %1315 = vmatpush2.xpose.msra.mxu0 0.0
    %1316 = vmatprep.subr.mxu0 0.0
    %1317 = vmatpush2.xpose.msra.mxu0 0.0
    %1318 = vmatprep.subr.mxu0 0.0
    %1319 = vmatpush2.xpose.msra.mxu0 0.0
    %1320 = vmatprep.subr.mxu0 0.0
    %1321 = vmatpush2.xpose.msra.mxu0 0.0
    %1322 = vmatprep.subr.mxu0 0.0
    %1323 = vmatpush2.xpose.msra.mxu0 0.0
    %1324 = vmatprep.subr.mxu0 0.0
    %1325 = vmatpush2.xpose.msra.mxu0 0.0
    %1326 = vmatprep.subr.mxu0 0.0
    %1327 = vmatpush2.xpose.msra.mxu0 0.0
    %1328 = vmatprep.subr.mxu0 0.0
    %1329 = vmatpush2.xpose.msra.mxu0 0.0
    %1330 = vmatprep.subr.mxu0 0.0
    %1331 = vmatpush2.xpose.msra.mxu0 0.0
    %1332 = vmatprep.subr.mxu0 0.0
    %1333 = vmatpush2.xpose.msra.mxu0 0.0
    %1334 = vmatprep.subr.mxu0 0.0
    %1335 = vmatpush2.xpose.msra.mxu0 0.0
    %1336 = vmatprep.mubr.f32.mxu0 0.0
    %1337 = vmatmul.mubr.f32.gmra.mxu0 %v1268
    %v1338 = vpop.f32.mrf.mxu0
    %v1339 = vadd.f32 %v268, %v1338
    %v1340 = vpop.f32.mrf.mxu0
    %1341 = vdwg.mxu0
    %1342 = vrot.lane.b32.xlu0 %v262, 104
    %v1343 = vpop.permute.xlu0 %1342
    %1344 = vrot.lane.b32.xlu0 %v262, 72
    %v1345 = vpop.permute.xlu0 %1344
    %v1346 = vsel %vm278, %v1343, 0
    %v1348 = vsel %vm278, %v1345, 0
    %1350 = vmatprep.subr.mxu0 0.0
    %1351 = vmatpush1.xpose.msra.mxu0 0.0
    %1352 = vmatprep.subr.mxu0 0.0
    %1353 = vmatpush1.xpose.msra.mxu0 0.0
    %1354 = vmatprep.subr.mxu0 0.0
    %1355 = vmatpush1.xpose.msra.mxu0 0.0
    %1356 = vmatprep.subr.mxu0 0.0
    %1357 = vmatpush1.xpose.msra.mxu0 0.0
    %1358 = vmatprep.subr.mxu0 0.0
    %1359 = vmatpush1.xpose.msra.mxu0 0.0
    %1360 = vmatprep.subr.mxu0 0.0
    %1361 = vmatpush1.xpose.msra.mxu0 0.0
    %1362 = vmatprep.subr.mxu0 0.0
    %1363 = vmatpush1.xpose.msra.mxu0 0.0
    %1364 = vmatprep.subr.mxu0 0.0
    %1365 = vmatpush1.xpose.msra.mxu0 0.0
    %1366 = vmatprep.subr.mxu0 0.0
    %1367 = vmatpush1.xpose.msra.mxu0 0.0
    %1368 = vmatprep.subr.mxu0 0.0
    %1369 = vmatpush1.xpose.msra.mxu0 0.0
    %1370 = vmatprep.subr.mxu0 0.0
    %1371 = vmatpush1.xpose.msra.mxu0 0.0
    %1372 = vmatprep.subr.mxu0 0.0
    %1373 = vmatpush1.xpose.msra.mxu0 0.0
    %1374 = vmatprep.subr.mxu0 0.0
    %1375 = vmatpush1.xpose.msra.mxu0 0.0
    %1376 = vmatprep.subr.mxu0 0.0
    %1377 = vmatpush1.xpose.msra.mxu0 0.0
    %1378 = vmatprep.subr.mxu0 0.0
    %1379 = vmatpush1.xpose.msra.mxu0 0.0
    %1380 = vmatprep.subr.mxu0 0.0
    %1381 = vmatpush1.xpose.msra.mxu0 %v1348
    %1382 = vmatprep.subr.mxu0 0.0
    %1383 = vmatpush2.xpose.msra.mxu0 0.0
    %1384 = vmatprep.subr.mxu0 0.0
    %1385 = vmatpush2.xpose.msra.mxu0 0.0
    %1386 = vmatprep.subr.mxu0 0.0
    %1387 = vmatpush2.xpose.msra.mxu0 0.0
    %1388 = vmatprep.subr.mxu0 0.0
    %1389 = vmatpush2.xpose.msra.mxu0 0.0
    %1390 = vmatprep.subr.mxu0 0.0
    %1391 = vmatpush2.xpose.msra.mxu0 0.0
    %1392 = vmatprep.subr.mxu0 0.0
    %1393 = vmatpush2.xpose.msra.mxu0 0.0
    %1394 = vmatprep.subr.mxu0 0.0
    %1395 = vmatpush2.xpose.msra.mxu0 0.0
    %1396 = vmatprep.subr.mxu0 0.0
    %1397 = vmatpush2.xpose.msra.mxu0 0.0
    %1398 = vmatprep.subr.mxu0 0.0
    %1399 = vmatpush2.xpose.msra.mxu0 0.0
    %1400 = vmatprep.subr.mxu0 0.0
    %1401 = vmatpush2.xpose.msra.mxu0 0.0
    %1402 = vmatprep.subr.mxu0 0.0
    %1403 = vmatpush2.xpose.msra.mxu0 0.0
    %1404 = vmatprep.subr.mxu0 0.0
    %1405 = vmatpush2.xpose.msra.mxu0 0.0
    %1406 = vmatprep.subr.mxu0 0.0
    %1407 = vmatpush2.xpose.msra.mxu0 0.0
    %1408 = vmatprep.subr.mxu0 0.0
    %1409 = vmatpush2.xpose.msra.mxu0 0.0
    %1410 = vmatprep.subr.mxu0 0.0
    %1411 = vmatpush2.xpose.msra.mxu0 0.0
    %1412 = vmatprep.subr.mxu0 0.0
    %1413 = vmatpush2.xpose.msra.mxu0 0.0
    %1414 = vmatprep.mubr.f32.mxu0 0.0
    %1415 = vmatmul.mubr.f32.gmra.mxu0 %v1346
    %v1416 = vpop.f32.mrf.mxu0
    %v1417 = vadd.f32 %v272, %v1416
    %v1418 = vpop.f32.mrf.mxu0
    %1419 = vdwg.mxu0
    %v1420 = vsel %vm278, %v1339, -inf
    %1421 = vmax.xlane.f32.xlu0 %v1420
    %v1422 = vpop.xlane.xlu0 %1421
    %v1423 = vsel %vm278, %v1417, -inf
    %1424 = vmax.xlane.f32.xlu0 %v1423
    %v1425 = vpop.xlane.xlu0 %1424
    %v1426 = vsub.f32 %v1339, %v1422
    %v1427 = vsub.f32 %v1417, %v1425
    %v1428 = vmul.f32 %v1426, 1.442695
    %v1429 = vpow.pop %v1428
    %v1430 = vmul.f32 %v1427, 1.442695
    %v1431 = vpow.pop %v1430
    %v1432 = vsel %vm278, %v1429, 0.0
    %1433 = vadd.xlane.f32.xlu0 %v1432
    %v1434 = vpop.xlane.xlu0 %1433
    %v1435 = vsel %vm278, %v1431, 0.0
    %1436 = vadd.xlane.f32.xlu0 %v1435
    %v1437 = vpop.xlane.xlu0 %1436
    %v1438 = vrcp.pop %v1434
    %v1439 = vmul.f32 %v1429, %v1438
    %v1440 = vrcp.pop %v1437
    %v1441 = vmul.f32 %v1431, %v1440
    %1442 = vrot.lane.b32.xlu0 %v257, 40
    %v1443 = vpop.permute.xlu0 %1442
    %v1446 = vsel %vm278, %v1439, 0
    %1448 = vmatprep.subr.mxu0 0.0
    %1449 = vmatpush1.msra.mxu0 0.0
    %1450 = vmatprep.subr.mxu0 0.0
    %1451 = vmatpush1.msra.mxu0 0.0
    %1452 = vmatprep.subr.mxu0 0.0
    %1453 = vmatpush1.msra.mxu0 0.0
    %1454 = vmatprep.subr.mxu0 0.0
    %1455 = vmatpush1.msra.mxu0 0.0
    %1456 = vmatprep.subr.mxu0 0.0
    %1457 = vmatpush1.msra.mxu0 0.0
    %1458 = vmatprep.subr.mxu0 0.0
    %1459 = vmatpush1.msra.mxu0 0.0
    %1460 = vmatprep.subr.mxu0 0.0
    %1461 = vmatpush1.msra.mxu0 0.0
    %1462 = vmatprep.subr.mxu0 0.0
    %1463 = vmatpush1.msra.mxu0 0.0
    %1464 = vmatprep.subr.mxu0 0.0
    %1465 = vmatpush1.msra.mxu0 0.0
    %1466 = vmatprep.subr.mxu0 0.0
    %1467 = vmatpush1.msra.mxu0 0.0
    %1468 = vmatprep.subr.mxu0 0.0
    %1469 = vmatpush1.msra.mxu0 0.0
    %1470 = vmatprep.subr.mxu0 0.0
    %1471 = vmatpush1.msra.mxu0 0.0
    %1472 = vmatprep.subr.mxu0 0.0
    %1473 = vmatpush1.msra.mxu0 0.0
    %1474 = vmatprep.subr.mxu0 0.0
    %1475 = vmatpush1.msra.mxu0 0.0
    %1476 = vmatprep.subr.mxu0 0.0
    %1477 = vmatpush1.msra.mxu0 0.0
    %1478 = vmatprep.subr.mxu0 0.0
    %1479 = vmatpush1.msra.mxu0 %v1443
    %1480 = vmatprep.subr.mxu0 0.0
    %1481 = vmatpush2.msra.mxu0 0.0
    %1482 = vmatprep.subr.mxu0 0.0
    %1483 = vmatpush2.msra.mxu0 0.0
    %1484 = vmatprep.subr.mxu0 0.0
    %1485 = vmatpush2.msra.mxu0 0.0
    %1486 = vmatprep.subr.mxu0 0.0
    %1487 = vmatpush2.msra.mxu0 0.0
    %1488 = vmatprep.subr.mxu0 0.0
    %1489 = vmatpush2.msra.mxu0 0.0
    %1490 = vmatprep.subr.mxu0 0.0
    %1491 = vmatpush2.msra.mxu0 0.0
    %1492 = vmatprep.subr.mxu0 0.0
    %1493 = vmatpush2.msra.mxu0 0.0
    %1494 = vmatprep.subr.mxu0 0.0
    %1495 = vmatpush2.msra.mxu0 0.0
    %1496 = vmatprep.subr.mxu0 0.0
    %1497 = vmatpush2.msra.mxu0 0.0
    %1498 = vmatprep.subr.mxu0 0.0
    %1499 = vmatpush2.msra.mxu0 0.0
    %1500 = vmatprep.subr.mxu0 0.0
    %1501 = vmatpush2.msra.mxu0 0.0
    %1502 = vmatprep.subr.mxu0 0.0
    %1503 = vmatpush2.msra.mxu0 0.0
    %1504 = vmatprep.subr.mxu0 0.0
    %1505 = vmatpush2.msra.mxu0 0.0
    %1506 = vmatprep.subr.mxu0 0.0
    %1507 = vmatpush2.msra.mxu0 0.0
    %1508 = vmatprep.subr.mxu0 0.0
    %1509 = vmatpush2.msra.mxu0 0.0
    %1510 = vmatprep.subr.mxu0 0.0
    %1511 = vmatpush2.msra.mxu0 0.0
    %1512 = vmatprep.mubr.f32.mxu0 0.0
    %1513 = vmatmul.mubr.f32.gmra.mxu0 %v1446
    %v1514 = vpop.f32.mrf.mxu0
    %v1515 = vadd.f32 0.0, %v1514
    %v1516 = vpop.f32.mrf.mxu0
    %1517 = vdwg.mxu0
    %1518 = vrot.lane.b32.xlu0 %v262, 40
    %v1519 = vpop.permute.xlu0 %1518
    %v1522 = vsel %vm278, %v1441, 0
    %1524 = vmatprep.subr.mxu0 0.0
    %1525 = vmatpush1.msra.mxu0 0.0
    %1526 = vmatprep.subr.mxu0 0.0
    %1527 = vmatpush1.msra.mxu0 0.0
    %1528 = vmatprep.subr.mxu0 0.0
    %1529 = vmatpush1.msra.mxu0 0.0
    %1530 = vmatprep.subr.mxu0 0.0
    %1531 = vmatpush1.msra.mxu0 0.0
    %1532 = vmatprep.subr.mxu0 0.0
    %1533 = vmatpush1.msra.mxu0 0.0
    %1534 = vmatprep.subr.mxu0 0.0
    %1535 = vmatpush1.msra.mxu0 0.0
    %1536 = vmatprep.subr.mxu0 0.0
    %1537 = vmatpush1.msra.mxu0 0.0
    %1538 = vmatprep.subr.mxu0 0.0
    %1539 = vmatpush1.msra.mxu0 0.0
    %1540 = vmatprep.subr.mxu0 0.0
    %1541 = vmatpush1.msra.mxu0 0.0
    %1542 = vmatprep.subr.mxu0 0.0
    %1543 = vmatpush1.msra.mxu0 0.0
    %1544 = vmatprep.subr.mxu0 0.0
    %1545 = vmatpush1.msra.mxu0 0.0
    %1546 = vmatprep.subr.mxu0 0.0
    %1547 = vmatpush1.msra.mxu0 0.0
    %1548 = vmatprep.subr.mxu0 0.0
    %1549 = vmatpush1.msra.mxu0 0.0
    %1550 = vmatprep.subr.mxu0 0.0
    %1551 = vmatpush1.msra.mxu0 0.0
    %1552 = vmatprep.subr.mxu0 0.0
    %1553 = vmatpush1.msra.mxu0 0.0
    %1554 = vmatprep.subr.mxu0 0.0
    %1555 = vmatpush1.msra.mxu0 %v1519
    %1556 = vmatprep.subr.mxu0 0.0
    %1557 = vmatpush2.msra.mxu0 0.0
    %1558 = vmatprep.subr.mxu0 0.0
    %1559 = vmatpush2.msra.mxu0 0.0
    %1560 = vmatprep.subr.mxu0 0.0
    %1561 = vmatpush2.msra.mxu0 0.0
    %1562 = vmatprep.subr.mxu0 0.0
    %1563 = vmatpush2.msra.mxu0 0.0
    %1564 = vmatprep.subr.mxu0 0.0
    %1565 = vmatpush2.msra.mxu0 0.0
    %1566 = vmatprep.subr.mxu0 0.0
    %1567 = vmatpush2.msra.mxu0 0.0
    %1568 = vmatprep.subr.mxu0 0.0
    %1569 = vmatpush2.msra.mxu0 0.0
    %1570 = vmatprep.subr.mxu0 0.0
    %1571 = vmatpush2.msra.mxu0 0.0
    %1572 = vmatprep.subr.mxu0 0.0
    %1573 = vmatpush2.msra.mxu0 0.0
    %1574 = vmatprep.subr.mxu0 0.0
    %1575 = vmatpush2.msra.mxu0 0.0
    %1576 = vmatprep.subr.mxu0 0.0
    %1577 = vmatpush2.msra.mxu0 0.0
    %1578 = vmatprep.subr.mxu0 0.0
    %1579 = vmatpush2.msra.mxu0 0.0
    %1580 = vmatprep.subr.mxu0 0.0
    %1581 = vmatpush2.msra.mxu0 0.0
    %1582 = vmatprep.subr.mxu0 0.0
    %1583 = vmatpush2.msra.mxu0 0.0
    %1584 = vmatprep.subr.mxu0 0.0
    %1585 = vmatpush2.msra.mxu0 0.0
    %1586 = vmatprep.subr.mxu0 0.0
    %1587 = vmatpush2.msra.mxu0 0.0
    %1588 = vmatprep.mubr.f32.mxu0 0.0
    %1589 = vmatmul.mubr.f32.gmra.mxu0 %v1522
    %v1590 = vpop.f32.mrf.mxu0
    %v1591 = vadd.f32 0.0, %v1590
    %v1592 = vpop.f32.mrf.mxu0
    %1593 = vdwg.mxu0
    %1596 = vrot.lane.b32.xlu0 %v855, 8
    %v1597 = vpop.permute.xlu0 %1596
    %1598 = vrot.lane.b32.xlu0 %v931, 8
    %v1599 = vpop.permute.xlu0 %1598
    %1604 = vrot.lane.b32.xlu0 %v1185, 16
    %v1605 = vpop.permute.xlu0 %1604
    %1606 = vrot.lane.b32.xlu0 %v1261, 16
    %v1607 = vpop.permute.xlu0 %1606
    %1612 = vrot.lane.b32.xlu0 %v1515, 24
    %v1613 = vpop.permute.xlu0 %1612
    %1614 = vrot.lane.b32.xlu0 %v1591, 24
    %v1615 = vpop.permute.xlu0 %1614
    %v1618 = vsel %vm278, %v525, %v1597
    %v1619 = vsel %vm278, %v601, %v1599
    %vm1620 = vcmask 130048
    %v1621 = vsel %vm1620, %v1618, %v1605
    %v1622 = vsel %vm1620, %v1619, %v1607
    %vm1623 = vcmask 195584
    %v1624 = vsel %vm1623, %v1621, %v1613
    %v1625 = vsel %vm1623, %v1622, %v1615
    %v1626 = vld [vmem:[%s6] sm:$0xff]
    %v1627 = vld [vmem:[%s6 + $0x8] sm:$0xff]
    %v1628 = vld [vmem:[%s6 + $0x10] sm:$0xff]
    %v1629 = vld [vmem:[%s6 + $0x18] sm:$0xff]
    %v1630 = vlaneseq
    %v1631 = vshrl.u32 %v1630, 7
    %v1632 = vsub.s32 0, %v1631
    %v1633 = vrot.slane %v171, %v1632
    %v1635 = vsel %vm183, %v1624, 0
    %v1638 = vsel %vm183, %v1625, 0
    %1640 = vmatprep.subr.mxu0 0.0
    %1641 = vmatpush1.msra.mxu0 0.0
    %1642 = vmatprep.subr.mxu0 0.0
    %1643 = vmatpush1.msra.mxu0 0.0
    %1644 = vmatprep.subr.mxu0 0.0
    %1645 = vmatpush1.msra.mxu0 0.0
    %1646 = vmatprep.subr.mxu0 0.0
    %1647 = vmatpush1.msra.mxu0 0.0
    %1648 = vmatprep.subr.mxu0 0.0
    %1649 = vmatpush1.msra.mxu0 0.0
    %1650 = vmatprep.subr.mxu0 0.0
    %1651 = vmatpush1.msra.mxu0 0.0
    %1652 = vmatprep.subr.mxu0 0.0
    %1653 = vmatpush1.msra.mxu0 0.0
    %1654 = vmatprep.subr.mxu0 0.0
    %1655 = vmatpush1.msra.mxu0 0.0
    %1656 = vmatprep.subr.mxu0 0.0
    %1657 = vmatpush1.msra.mxu0 0.0
    %1658 = vmatprep.subr.mxu0 0.0
    %1659 = vmatpush1.msra.mxu0 0.0
    %1660 = vmatprep.subr.mxu0 0.0
    %1661 = vmatpush1.msra.mxu0 0.0
    %1662 = vmatprep.subr.mxu0 0.0
    %1663 = vmatpush1.msra.mxu0 0.0
    %1664 = vmatprep.subr.mxu0 0.0
    %1665 = vmatpush1.msra.mxu0 %v1629
    %1666 = vmatprep.subr.mxu0 0.0
    %1667 = vmatpush1.msra.mxu0 %v1628
    %1668 = vmatprep.subr.mxu0 0.0
    %1669 = vmatpush1.msra.mxu0 %v1627
    %1670 = vmatprep.subr.mxu0 0.0
    %1671 = vmatpush1.msra.mxu0 %v1626
    %1672 = vmatprep.subr.mxu0 0.0
    %1673 = vmatpush2.msra.mxu0 0.0
    %1674 = vmatprep.subr.mxu0 0.0
    %1675 = vmatpush2.msra.mxu0 0.0
    %1676 = vmatprep.subr.mxu0 0.0
    %1677 = vmatpush2.msra.mxu0 0.0
    %1678 = vmatprep.subr.mxu0 0.0
    %1679 = vmatpush2.msra.mxu0 0.0
    %1680 = vmatprep.subr.mxu0 0.0
    %1681 = vmatpush2.msra.mxu0 0.0
    %1682 = vmatprep.subr.mxu0 0.0
    %1683 = vmatpush2.msra.mxu0 0.0
    %1684 = vmatprep.subr.mxu0 0.0
    %1685 = vmatpush2.msra.mxu0 0.0
    %1686 = vmatprep.subr.mxu0 0.0
    %1687 = vmatpush2.msra.mxu0 0.0
    %1688 = vmatprep.subr.mxu0 0.0
    %1689 = vmatpush2.msra.mxu0 0.0
    %1690 = vmatprep.subr.mxu0 0.0
    %1691 = vmatpush2.msra.mxu0 0.0
    %1692 = vmatprep.subr.mxu0 0.0
    %1693 = vmatpush2.msra.mxu0 0.0
    %1694 = vmatprep.subr.mxu0 0.0
    %1695 = vmatpush2.msra.mxu0 0.0
    %1696 = vmatprep.subr.mxu0 0.0
    %1697 = vmatpush2.msra.mxu0 0.0
    %1698 = vmatprep.subr.mxu0 0.0
    %1699 = vmatpush2.msra.mxu0 0.0
    %1700 = vmatprep.subr.mxu0 0.0
    %1701 = vmatpush2.msra.mxu0 0.0
    %1702 = vmatprep.subr.mxu0 0.0
    %1703 = vmatpush2.msra.mxu0 0.0
    %1704 = vmatprep.mubr.f32.mxu0 0.0
    %1705 = vmatmul.mubr.f32.gmra.mxu0 %v1635
    %v1706 = vpop.f32.mrf.mxu0
    %v1707 = vadd.f32 %v1633, %v1706
    %v1708 = vpop.f32.mrf.mxu0
    %1709 = vmatprep.mubr.f32.mxu0 0.0
    %1710 = vmatmul.mubr.f32.gmra.mxu0 %v1638
    %v1711 = vpop.f32.mrf.mxu0
    %v1712 = vadd.f32 %v1633, %v1711
    %v1713 = vpop.f32.mrf.mxu0
    %1714 = vdwg.mxu0
    %v1715 = vadd.f32 %v137, %v1707
    %v1716 = vadd.f32 %v142, %v1712
    %v1717 = vsel %vm183, %v1715, 0.0
    %1718 = vadd.xlane.f32.xlu0 %v1717
    %v1719 = vpop.xlane.xlu0 %1718
    %v1720 = vsel %vm183, %v1716, 0.0
    %1721 = vadd.xlane.f32.xlu0 %v1720
    %v1722 = vpop.xlane.xlu0 %1721
    %v1723 = vrcp.pop 32.0
    %v1724 = vmul.f32 %v1719, %v1723
    %v1725 = vmul.f32 %v1722, %v1723
    %v1726 = vsub.f32 %v1715, %v1724
    %v1727 = vsub.f32 %v1716, %v1725
    %v1728 = vmul.f32 %v1726, %v1726
    %v1729 = vmul.f32 %v1727, %v1727
    %v1730 = vsel %vm183, %v1728, 0.0
    %1731 = vadd.xlane.f32.xlu0 %v1730
    %v1732 = vpop.xlane.xlu0 %1731
    %v1733 = vsel %vm183, %v1729, 0.0
    %1734 = vadd.xlane.f32.xlu0 %v1733
    %v1735 = vpop.xlane.xlu0 %1734
    %v1736 = vmul.f32 %v1732, %v1723
    %v1737 = vmul.f32 %v1735, %v1723
    %v1738 = vadd.f32 %v1736, 1e-05
    %v1739 = vadd.f32 %v1737, 1e-05
    %v1740 = vrsqrt.pop %v1738
    %v1741 = vrsqrt.pop %v1739
    %v1742 = vmul.f32 %v1726, %v1740
    %v1743 = vmul.f32 %v1727, %v1741
    %v1744 = vlaneseq
    %v1745 = vshrl.u32 %v1744, 7
    %v1746 = vsub.s32 1, %v1745
    %v1747 = vrot.slane %v171, %v1746
    %v1748 = vmul.f32 %v1742, %v1747
    %v1749 = vmul.f32 %v1743, %v1747
    %v1750 = vlaneseq
    %v1751 = vshrl.u32 %v1750, 7
    %v1752 = vsub.s32 2, %v1751
    %v1753 = vrot.slane %v171, %v1752
    %v1754 = vadd.f32 %v1748, %v1753
    %v1755 = vadd.f32 %v1749, %v1753
    %v1756 = vld [vmem:[%s7] sm:$0xff]
    %v1757 = vld [vmem:[%s7 + $0x8] sm:$0xff]
    %v1758 = vld [vmem:[%s7 + $0x10] sm:$0xff]
    %v1759 = vld [vmem:[%s7 + $0x18] sm:$0xff]
    %v1760 = vlaneseq
    %v1761 = vshrl.u32 %v1760, 7
    %v1762 = vsub.s32 3, %v1761
    %v1763 = vrot.slane %v171, %v1762
    %v1765 = vsel %vm183, %v1754, 0
    %v1768 = vsel %vm183, %v1755, 0
    %1770 = vmatprep.subr.mxu0 0.0
    %1771 = vmatpush1.msra.mxu0 0.0
    %1772 = vmatprep.subr.mxu0 0.0
    %1773 = vmatpush1.msra.mxu0 0.0
    %1774 = vmatprep.subr.mxu0 0.0
    %1775 = vmatpush1.msra.mxu0 0.0
    %1776 = vmatprep.subr.mxu0 0.0
    %1777 = vmatpush1.msra.mxu0 0.0
    %1778 = vmatprep.subr.mxu0 0.0
    %1779 = vmatpush1.msra.mxu0 0.0
    %1780 = vmatprep.subr.mxu0 0.0
    %1781 = vmatpush1.msra.mxu0 0.0
    %1782 = vmatprep.subr.mxu0 0.0
    %1783 = vmatpush1.msra.mxu0 0.0
    %1784 = vmatprep.subr.mxu0 0.0
    %1785 = vmatpush1.msra.mxu0 0.0
    %1786 = vmatprep.subr.mxu0 0.0
    %1787 = vmatpush1.msra.mxu0 0.0
    %1788 = vmatprep.subr.mxu0 0.0
    %1789 = vmatpush1.msra.mxu0 0.0
    %1790 = vmatprep.subr.mxu0 0.0
    %1791 = vmatpush1.msra.mxu0 0.0
    %1792 = vmatprep.subr.mxu0 0.0
    %1793 = vmatpush1.msra.mxu0 0.0
    %1794 = vmatprep.subr.mxu0 0.0
    %1795 = vmatpush1.msra.mxu0 %v1759
    %1796 = vmatprep.subr.mxu0 0.0
    %1797 = vmatpush1.msra.mxu0 %v1758
    %1798 = vmatprep.subr.mxu0 0.0
    %1799 = vmatpush1.msra.mxu0 %v1757
    %1800 = vmatprep.subr.mxu0 0.0
    %1801 = vmatpush1.msra.mxu0 %v1756
    %1802 = vmatprep.subr.mxu0 0.0
    %1803 = vmatpush2.msra.mxu0 0.0
    %1804 = vmatprep.subr.mxu0 0.0
    %1805 = vmatpush2.msra.mxu0 0.0
    %1806 = vmatprep.subr.mxu0 0.0
    %1807 = vmatpush2.msra.mxu0 0.0
    %1808 = vmatprep.subr.mxu0 0.0
    %1809 = vmatpush2.msra.mxu0 0.0
    %1810 = vmatprep.subr.mxu0 0.0
    %1811 = vmatpush2.msra.mxu0 0.0
    %1812 = vmatprep.subr.mxu0 0.0
    %1813 = vmatpush2.msra.mxu0 0.0
    %1814 = vmatprep.subr.mxu0 0.0
    %1815 = vmatpush2.msra.mxu0 0.0
    %1816 = vmatprep.subr.mxu0 0.0
    %1817 = vmatpush2.msra.mxu0 0.0
    %1818 = vmatprep.subr.mxu0 0.0
    %1819 = vmatpush2.msra.mxu0 0.0
    %1820 = vmatprep.subr.mxu0 0.0
    %1821 = vmatpush2.msra.mxu0 0.0
    %1822 = vmatprep.subr.mxu0 0.0
    %1823 = vmatpush2.msra.mxu0 0.0
    %1824 = vmatprep.subr.mxu0 0.0
    %1825 = vmatpush2.msra.mxu0 0.0
    %1826 = vmatprep.subr.mxu0 0.0
    %1827 = vmatpush2.msra.mxu0 0.0
    %1828 = vmatprep.subr.mxu0 0.0
    %1829 = vmatpush2.msra.mxu0 0.0
    %1830 = vmatprep.subr.mxu0 0.0
    %1831 = vmatpush2.msra.mxu0 0.0
    %1832 = vmatprep.subr.mxu0 0.0
    %1833 = vmatpush2.msra.mxu0 0.0
    %1834 = vmatprep.mubr.f32.mxu0 0.0
    %1835 = vmatmul.mubr.f32.gmra.mxu0 %v1765
    %v1836 = vpop.f32.mrf.mxu0
    %v1837 = vadd.f32 %v1763, %v1836
    %v1838 = vpop.f32.mrf.mxu0
    %1839 = vmatprep.mubr.f32.mxu0 0.0
    %1840 = vmatmul.mubr.f32.gmra.mxu0 %v1768
    %v1841 = vpop.f32.mrf.mxu0
    %v1842 = vadd.f32 %v1763, %v1841
    %v1843 = vpop.f32.mrf.mxu0
    %1844 = vdwg.mxu0
    %v1845 = vmax.f32 %v1837, 0.0
    %v1846 = vmax.f32 %v1842, 0.0
    %v1847 = vld [vmem:[%s8] sm:$0xff]
    %v1848 = vld [vmem:[%s8 + $0x8] sm:$0xff]
    %v1849 = vld [vmem:[%s8 + $0x10] sm:$0xff]
    %v1850 = vld [vmem:[%s8 + $0x18] sm:$0xff]
    %v1851 = vld [vmem:[%s8 + $0x20] sm:$0xff]
    %v1852 = vld [vmem:[%s8 + $0x28] sm:$0xff]
    %v1853 = vld [vmem:[%s8 + $0x30] sm:$0xff]
    %v1854 = vld [vmem:[%s8 + $0x38] sm:$0xff]
    %v1855 = vlaneseq
    %v1856 = vshrl.u32 %v1855, 7
    %v1857 = vsub.s32 4, %v1856
    %v1858 = vrot.slane %v171, %v1857
    %vm1859 = vcmask 523264
    %v1861 = vsel %vm1859, %v1845, 0
    %v1864 = vsel %vm1859, %v1846, 0
    %1866 = vmatprep.subr.mxu0 0.0
    %1867 = vmatpush1.msra.mxu0 0.0
    %1868 = vmatprep.subr.mxu0 0.0
    %1869 = vmatpush1.msra.mxu0 0.0
    %1870 = vmatprep.subr.mxu0 0.0
    %1871 = vmatpush1.msra.mxu0 0.0
    %1872 = vmatprep.subr.mxu0 0.0
    %1873 = vmatpush1.msra.mxu0 0.0
    %1874 = vmatprep.subr.mxu0 0.0
    %1875 = vmatpush1.msra.mxu0 0.0
    %1876 = vmatprep.subr.mxu0 0.0
    %1877 = vmatpush1.msra.mxu0 0.0
    %1878 = vmatprep.subr.mxu0 0.0
    %1879 = vmatpush1.msra.mxu0 0.0
    %1880 = vmatprep.subr.mxu0 0.0
    %1881 = vmatpush1.msra.mxu0 0.0
    %1882 = vmatprep.subr.mxu0 0.0
    %1883 = vmatpush1.msra.mxu0 %v1854
    %1884 = vmatprep.subr.mxu0 0.0
    %1885 = vmatpush1.msra.mxu0 %v1853
    %1886 = vmatprep.subr.mxu0 0.0
    %1887 = vmatpush1.msra.mxu0 %v1852
    %1888 = vmatprep.subr.mxu0 0.0
    %1889 = vmatpush1.msra.mxu0 %v1851
    %1890 = vmatprep.subr.mxu0 0.0
    %1891 = vmatpush1.msra.mxu0 %v1850
    %1892 = vmatprep.subr.mxu0 0.0
    %1893 = vmatpush1.msra.mxu0 %v1849
    %1894 = vmatprep.subr.mxu0 0.0
    %1895 = vmatpush1.msra.mxu0 %v1848
    %1896 = vmatprep.subr.mxu0 0.0
    %1897 = vmatpush1.msra.mxu0 %v1847
    %1898 = vmatprep.subr.mxu0 0.0
    %1899 = vmatpush2.msra.mxu0 0.0
    %1900 = vmatprep.subr.mxu0 0.0
    %1901 = vmatpush2.msra.mxu0 0.0
    %1902 = vmatprep.subr.mxu0 0.0
    %1903 = vmatpush2.msra.mxu0 0.0
    %1904 = vmatprep.subr.mxu0 0.0
    %1905 = vmatpush2.msra.mxu0 0.0
    %1906 = vmatprep.subr.mxu0 0.0
    %1907 = vmatpush2.msra.mxu0 0.0
    %1908 = vmatprep.subr.mxu0 0.0
    %1909 = vmatpush2.msra.mxu0 0.0
    %1910 = vmatprep.subr.mxu0 0.0
    %1911 = vmatpush2.msra.mxu0 0.0
    %1912 = vmatprep.subr.mxu0 0.0
    %1913 = vmatpush2.msra.mxu0 0.0
    %1914 = vmatprep.subr.mxu0 0.0
    %1915 = vmatpush2.msra.mxu0 0.0
    %1916 = vmatprep.subr.mxu0 0.0
    %1917 = vmatpush2.msra.mxu0 0.0
    %1918 = vmatprep.subr.mxu0 0.0
    %1919 = vmatpush2.msra.mxu0 0.0
    %1920 = vmatprep.subr.mxu0 0.0
    %1921 = vmatpush2.msra.mxu0 0.0
    %1922 = vmatprep.subr.mxu0 0.0
    %1923 = vmatpush2.msra.mxu0 0.0
    %1924 = vmatprep.subr.mxu0 0.0
    %1925 = vmatpush2.msra.mxu0 0.0
    %1926 = vmatprep.subr.mxu0 0.0
    %1927 = vmatpush2.msra.mxu0 0.0
    %1928 = vmatprep.subr.mxu0 0.0
    %1929 = vmatpush2.msra.mxu0 0.0
    %1930 = vmatprep.mubr.f32.mxu0 0.0
    %1931 = vmatmul.mubr.f32.gmra.mxu0 %v1861
    %v1932 = vpop.f32.mrf.mxu0
    %v1933 = vadd.f32 %v1858, %v1932
    %v1934 = vpop.f32.mrf.mxu0
    %1935 = vmatprep.mubr.f32.mxu0 0.0
    %1936 = vmatmul.mubr.f32.gmra.mxu0 %v1864
    %v1937 = vpop.f32.mrf.mxu0
    %v1938 = vadd.f32 %v1858, %v1937
    %v1939 = vpop.f32.mrf.mxu0
    %1940 = vdwg.mxu0
    %v1941 = vadd.f32 %v1754, %v1933
    %v1942 = vadd.f32 %v1755, %v1938
    %v1943 = vsel %vm183, %v1941, 0.0
    %1944 = vadd.xlane.f32.xlu0 %v1943
    %v1945 = vpop.xlane.xlu0 %1944
    %v1946 = vsel %vm183, %v1942, 0.0
    %1947 = vadd.xlane.f32.xlu0 %v1946
    %v1948 = vpop.xlane.xlu0 %1947
    %v1949 = vmul.f32 %v1945, %v1723
    %v1950 = vmul.f32 %v1948, %v1723
    %v1951 = vsub.f32 %v1941, %v1949
    %v1952 = vsub.f32 %v1942, %v1950
    %v1953 = vmul.f32 %v1951, %v1951
    %v1954 = vmul.f32 %v1952, %v1952
    %v1955 = vsel %vm183, %v1953, 0.0
    %1956 = vadd.xlane.f32.xlu0 %v1955
    %v1957 = vpop.xlane.xlu0 %1956
    %v1958 = vsel %vm183, %v1954, 0.0
    %1959 = vadd.xlane.f32.xlu0 %v1958
    %v1960 = vpop.xlane.xlu0 %1959
    %v1961 = vmul.f32 %v1957, %v1723
    %v1962 = vmul.f32 %v1960, %v1723
    %v1963 = vadd.f32 %v1961, 1e-05
    %v1964 = vadd.f32 %v1962, 1e-05
    %v1965 = vrsqrt.pop %v1963
    %v1966 = vrsqrt.pop %v1964
    %v1967 = vmul.f32 %v1951, %v1965
    %v1968 = vmul.f32 %v1952, %v1966
    %v1969 = vlaneseq
    %v1970 = vshrl.u32 %v1969, 7
    %v1971 = vsub.s32 5, %v1970
    %v1972 = vrot.slane %v171, %v1971
    %v1973 = vmul.f32 %v1967, %v1972
    %v1974 = vmul.f32 %v1968, %v1972
    %v1975 = vlaneseq
    %v1976 = vshrl.u32 %v1975, 7
    %v1977 = vsub.s32 6, %v1976
    %v1978 = vrot.slane %v171, %v1977
    %v1979 = vadd.f32 %v1973, %v1978
    %v1980 = vadd.f32 %v1974, %v1978
    %s1981 = scalar_lea.vmem %s9, 8
    %v1982 = vld [vmem:[%s1981] sm:$0xff]
    %s1983 = scalar_lea.vmem %s4, 32
    %v1984 = vld [vmem:[%s1983] sm:$0xff]
    %v1985 = vld [vmem:[%s1983 + $0x8] sm:$0xff]
    %v1986 = vld [vmem:[%s1983 + $0x10] sm:$0xff]
    %v1987 = vld [vmem:[%s1983 + $0x18] sm:$0xff]
    %s1988 = scalar_lea.vmem %s5, 1
    %v1989 = vld [vmem:[%s1988] sm:$0x1]
    %v1991 = vlaneseq
    %v1992 = vshrl.u32 %v1991, 7
    %v1993 = vsub.s32 0, %v1992
    %v1994 = vrot.slane %v1989, %v1993
    %v1997 = vsel %vm183, %v1979, 0
    %v2000 = vsel %vm183, %v1980, 0
    %2002 = vmatprep.subr.mxu0 0.0
    %2003 = vmatpush1.msra.mxu0 0.0
    %2004 = vmatprep.subr.mxu0 0.0
    %2005 = vmatpush1.msra.mxu0 0.0
    %2006 = vmatprep.subr.mxu0 0.0
    %2007 = vmatpush1.msra.mxu0 0.0
    %2008 = vmatprep.subr.mxu0 0.0
    %2009 = vmatpush1.msra.mxu0 0.0
    %2010 = vmatprep.subr.mxu0 0.0
    %2011 = vmatpush1.msra.mxu0 0.0
    %2012 = vmatprep.subr.mxu0 0.0
    %2013 = vmatpush1.msra.mxu0 0.0
    %2014 = vmatprep.subr.mxu0 0.0
    %2015 = vmatpush1.msra.mxu0 0.0
    %2016 = vmatprep.subr.mxu0 0.0
    %2017 = vmatpush1.msra.mxu0 0.0
    %2018 = vmatprep.subr.mxu0 0.0
    %2019 = vmatpush1.msra.mxu0 0.0
    %2020 = vmatprep.subr.mxu0 0.0
    %2021 = vmatpush1.msra.mxu0 0.0
    %2022 = vmatprep.subr.mxu0 0.0
    %2023 = vmatpush1.msra.mxu0 0.0
    %2024 = vmatprep.subr.mxu0 0.0
    %2025 = vmatpush1.msra.mxu0 0.0
    %2026 = vmatprep.subr.mxu0 0.0
    %2027 = vmatpush1.msra.mxu0 %v1987
    %2028 = vmatprep.subr.mxu0 0.0
    %2029 = vmatpush1.msra.mxu0 %v1986
    %2030 = vmatprep.subr.mxu0 0.0
    %2031 = vmatpush1.msra.mxu0 %v1985
    %2032 = vmatprep.subr.mxu0 0.0
    %2033 = vmatpush1.msra.mxu0 %v1984
    %2034 = vmatprep.subr.mxu0 0.0
    %2035 = vmatpush2.msra.mxu0 0.0
    %2036 = vmatprep.subr.mxu0 0.0
    %2037 = vmatpush2.msra.mxu0 0.0
    %2038 = vmatprep.subr.mxu0 0.0
    %2039 = vmatpush2.msra.mxu0 0.0
    %2040 = vmatprep.subr.mxu0 0.0
    %2041 = vmatpush2.msra.mxu0 0.0
    %2042 = vmatprep.subr.mxu0 0.0
    %2043 = vmatpush2.msra.mxu0 0.0
    %2044 = vmatprep.subr.mxu0 0.0
    %2045 = vmatpush2.msra.mxu0 0.0
    %2046 = vmatprep.subr.mxu0 0.0
    %2047 = vmatpush2.msra.mxu0 0.0
    %2048 = vmatprep.subr.mxu0 0.0
    %2049 = vmatpush2.msra.mxu0 0.0
    %2050 = vmatprep.subr.mxu0 0.0
    %2051 = vmatpush2.msra.mxu0 0.0
    %2052 = vmatprep.subr.mxu0 0.0
    %2053 = vmatpush2.msra.mxu0 0.0
    %2054 = vmatprep.subr.mxu0 0.0
    %2055 = vmatpush2.msra.mxu0 0.0
    %2056 = vmatprep.subr.mxu0 0.0
    %2057 = vmatpush2.msra.mxu0 0.0
    %2058 = vmatprep.subr.mxu0 0.0
    %2059 = vmatpush2.msra.mxu0 0.0
    %2060 = vmatprep.subr.mxu0 0.0
    %2061 = vmatpush2.msra.mxu0 0.0
    %2062 = vmatprep.subr.mxu0 0.0
    %2063 = vmatpush2.msra.mxu0 0.0
    %2064 = vmatprep.subr.mxu0 0.0
    %2065 = vmatpush2.msra.mxu0 0.0
    %2066 = vmatprep.mubr.f32.mxu0 0.0
    %2067 = vmatmul.mubr.f32.gmra.mxu0 %v1997
    %v2068 = vpop.f32.mrf.mxu0
    %v2069 = vadd.f32 %v1994, %v2068
    %v2070 = vpop.f32.mrf.mxu0
    %2071 = vmatprep.mubr.f32.mxu0 0.0
    %2072 = vmatmul.mubr.f32.gmra.mxu0 %v2000
    %v2073 = vpop.f32.mrf.mxu0
    %v2074 = vadd.f32 %v1994, %v2073
    %v2075 = vpop.f32.mrf.mxu0
    %2076 = vdwg.mxu0
    %2078 = vrot.lane.b32.xlu0 %v2069, 96
    %v2079 = vpop.permute.xlu0 %2078
    %v2080 = vsel %vm278, %v2069, 0
    %v2082 = vsel %vm278, %v2079, 0
    %2084 = vmatprep.subr.mxu0 0.0
    %2085 = vmatpush1.xpose.msra.mxu0 0.0
    %2086 = vmatprep.subr.mxu0 0.0
    %2087 = vmatpush1.xpose.msra.mxu0 0.0
    %2088 = vmatprep.subr.mxu0 0.0
    %2089 = vmatpush1.xpose.msra.mxu0 0.0
    %2090 = vmatprep.subr.mxu0 0.0
    %2091 = vmatpush1.xpose.msra.mxu0 0.0
    %2092 = vmatprep.subr.mxu0 0.0
    %2093 = vmatpush1.xpose.msra.mxu0 0.0
    %2094 = vmatprep.subr.mxu0 0.0
    %2095 = vmatpush1.xpose.msra.mxu0 0.0
    %2096 = vmatprep.subr.mxu0 0.0
    %2097 = vmatpush1.xpose.msra.mxu0 0.0
    %2098 = vmatprep.subr.mxu0 0.0
    %2099 = vmatpush1.xpose.msra.mxu0 0.0
    %2100 = vmatprep.subr.mxu0 0.0
    %2101 = vmatpush1.xpose.msra.mxu0 0.0
    %2102 = vmatprep.subr.mxu0 0.0
    %2103 = vmatpush1.xpose.msra.mxu0 0.0
    %2104 = vmatprep.subr.mxu0 0.0
    %2105 = vmatpush1.xpose.msra.mxu0 0.0
    %2106 = vmatprep.subr.mxu0 0.0
    %2107 = vmatpush1.xpose.msra.mxu0 0.0
    %2108 = vmatprep.subr.mxu0 0.0
    %2109 = vmatpush1.xpose.msra.mxu0 0.0
    %2110 = vmatprep.subr.mxu0 0.0
    %2111 = vmatpush1.xpose.msra.mxu0 0.0
    %2112 = vmatprep.subr.mxu0 0.0
    %2113 = vmatpush1.xpose.msra.mxu0 0.0
    %2114 = vmatprep.subr.mxu0 0.0
    %2115 = vmatpush1.xpose.msra.mxu0 %v2082
    %2116 = vmatprep.subr.mxu0 0.0
    %2117 = vmatpush2.xpose.msra.mxu0 0.0
    %2118 = vmatprep.subr.mxu0 0.0
    %2119 = vmatpush2.xpose.msra.mxu0 0.0
    %2120 = vmatprep.subr.mxu0 0.0
    %2121 = vmatpush2.xpose.msra.mxu0 0.0
    %2122 = vmatprep.subr.mxu0 0.0
    %2123 = vmatpush2.xpose.msra.mxu0 0.0
    %2124 = vmatprep.subr.mxu0 0.0
    %2125 = vmatpush2.xpose.msra.mxu0 0.0
    %2126 = vmatprep.subr.mxu0 0.0
    %2127 = vmatpush2.xpose.msra.mxu0 0.0
    %2128 = vmatprep.subr.mxu0 0.0
    %2129 = vmatpush2.xpose.msra.mxu0 0.0
    %2130 = vmatprep.subr.mxu0 0.0
    %2131 = vmatpush2.xpose.msra.mxu0 0.0
    %2132 = vmatprep.subr.mxu0 0.0
    %2133 = vmatpush2.xpose.msra.mxu0 0.0
    %2134 = vmatprep.subr.mxu0 0.0
    %2135 = vmatpush2.xpose.msra.mxu0 0.0
    %2136 = vmatprep.subr.mxu0 0.0
    %2137 = vmatpush2.xpose.msra.mxu0 0.0
    %2138 = vmatprep.subr.mxu0 0.0
    %2139 = vmatpush2.xpose.msra.mxu0 0.0
    %2140 = vmatprep.subr.mxu0 0.0
    %2141 = vmatpush2.xpose.msra.mxu0 0.0
    %2142 = vmatprep.subr.mxu0 0.0
    %2143 = vmatpush2.xpose.msra.mxu0 0.0
    %2144 = vmatprep.subr.mxu0 0.0
    %2145 = vmatpush2.xpose.msra.mxu0 0.0
    %2146 = vmatprep.subr.mxu0 0.0
    %2147 = vmatpush2.xpose.msra.mxu0 0.0
    %2148 = vmatprep.mubr.f32.mxu0 0.0
    %2149 = vmatmul.mubr.f32.gmra.mxu0 %v2080
    %v2150 = vpop.f32.mrf.mxu0
    %v2151 = vadd.f32 %v268, %v2150
    %v2152 = vpop.f32.mrf.mxu0
    %2153 = vdwg.mxu0
    %2155 = vrot.lane.b32.xlu0 %v2074, 96
    %v2156 = vpop.permute.xlu0 %2155
    %v2157 = vsel %vm278, %v2074, 0
    %v2159 = vsel %vm278, %v2156, 0
    %2161 = vmatprep.subr.mxu0 0.0
    %2162 = vmatpush1.xpose.msra.mxu0 0.0
    %2163 = vmatprep.subr.mxu0 0.0
    %2164 = vmatpush1.xpose.msra.mxu0 0.0
    %2165 = vmatprep.subr.mxu0 0.0
    %2166 = vmatpush1.xpose.msra.mxu0 0.0
    %2167 = vmatprep.subr.mxu0 0.0
    %2168 = vmatpush1.xpose.msra.mxu0 0.0
    %2169 = vmatprep.subr.mxu0 0.0
    %2170 = vmatpush1.xpose.msra.mxu0 0.0
    %2171 = vmatprep.subr.mxu0 0.0
    %2172 = vmatpush1.xpose.msra.mxu0 0.0
    %2173 = vmatprep.subr.mxu0 0.0
    %2174 = vmatpush1.xpose.msra.mxu0 0.0
    %2175 = vmatprep.subr.mxu0 0.0
    %2176 = vmatpush1.xpose.msra.mxu0 0.0
    %2177 = vmatprep.subr.mxu0 0.0
    %2178 = vmatpush1.xpose.msra.mxu0 0.0
    %2179 = vmatprep.subr.mxu0 0.0
    %2180 = vmatpush1.xpose.msra.mxu0 0.0
    %2181 = vmatprep.subr.mxu0 0.0
    %2182 = vmatpush1.xpose.msra.mxu0 0.0
    %2183 = vmatprep.subr.mxu0 0.0
    %2184 = vmatpush1.xpose.msra.mxu0 0.0
    %2185 = vmatprep.subr.mxu0 0.0
    %2186 = vmatpush1.xpose.msra.mxu0 0.0
    %2187 = vmatprep.subr.mxu0 0.0
    %2188 = vmatpush1.xpose.msra.mxu0 0.0
    %2189 = vmatprep.subr.mxu0 0.0
    %2190 = vmatpush1.xpose.msra.mxu0 0.0
    %2191 = vmatprep.subr.mxu0 0.0
    %2192 = vmatpush1.xpose.msra.mxu0 %v2159
    %2193 = vmatprep.subr.mxu0 0.0
    %2194 = vmatpush2.xpose.msra.mxu0 0.0
    %2195 = vmatprep.subr.mxu0 0.0
    %2196 = vmatpush2.xpose.msra.mxu0 0.0
    %2197 = vmatprep.subr.mxu0 0.0
    %2198 = vmatpush2.xpose.msra.mxu0 0.0
    %2199 = vmatprep.subr.mxu0 0.0
    %2200 = vmatpush2.xpose.msra.mxu0 0.0
    %2201 = vmatprep.subr.mxu0 0.0
    %2202 = vmatpush2.xpose.msra.mxu0 0.0
    %2203 = vmatprep.subr.mxu0 0.0
    %2204 = vmatpush2.xpose.msra.mxu0 0.0
    %2205 = vmatprep.subr.mxu0 0.0
    %2206 = vmatpush2.xpose.msra.mxu0 0.0
    %2207 = vmatprep.subr.mxu0 0.0
    %2208 = vmatpush2.xpose.msra.mxu0 0.0
    %2209 = vmatprep.subr.mxu0 0.0
    %2210 = vmatpush2.xpose.msra.mxu0 0.0
    %2211 = vmatprep.subr.mxu0 0.0
    %2212 = vmatpush2.xpose.msra.mxu0 0.0
    %2213 = vmatprep.subr.mxu0 0.0
    %2214 = vmatpush2.xpose.msra.mxu0 0.0
    %2215 = vmatprep.subr.mxu0 0.0
    %2216 = vmatpush2.xpose.msra.mxu0 0.0
    %2217 = vmatprep.subr.mxu0 0.0
    %2218 = vmatpush2.xpose.msra.mxu0 0.0
    %2219 = vmatprep.subr.mxu0 0.0
    %2220 = vmatpush2.xpose.msra.mxu0 0.0
    %2221 = vmatprep.subr.mxu0 0.0
    %2222 = vmatpush2.xpose.msra.mxu0 0.0
    %2223 = vmatprep.subr.mxu0 0.0
    %2224 = vmatpush2.xpose.msra.mxu0 0.0
    %2225 = vmatprep.mubr.f32.mxu0 0.0
    %2226 = vmatmul.mubr.f32.gmra.mxu0 %v2157
    %v2227 = vpop.f32.mrf.mxu0
    %v2228 = vadd.f32 %v272, %v2227
    %v2229 = vpop.f32.mrf.mxu0
    %2230 = vdwg.mxu0
    %v2231 = vsel %vm278, %v2151, -inf
    %2232 = vmax.xlane.f32.xlu0 %v2231
    %v2233 = vpop.xlane.xlu0 %2232
    %v2234 = vsel %vm278, %v2228, -inf
    %2235 = vmax.xlane.f32.xlu0 %v2234
    %v2236 = vpop.xlane.xlu0 %2235
    %v2237 = vsub.f32 %v2151, %v2233
    %v2238 = vsub.f32 %v2228, %v2236
    %v2239 = vmul.f32 %v2237, 1.442695
    %v2240 = vpow.pop %v2239
    %v2241 = vmul.f32 %v2238, 1.442695
    %v2242 = vpow.pop %v2241
    %v2243 = vsel %vm278, %v2240, 0.0
    %2244 = vadd.xlane.f32.xlu0 %v2243
    %v2245 = vpop.xlane.xlu0 %2244
    %v2246 = vsel %vm278, %v2242, 0.0
    %2247 = vadd.xlane.f32.xlu0 %v2246
    %v2248 = vpop.xlane.xlu0 %2247
    %v2249 = vrcp.pop %v2245
    %v2250 = vmul.f32 %v2240, %v2249
    %v2251 = vrcp.pop %v2248
    %v2252 = vmul.f32 %v2242, %v2251
    %2253 = vrot.lane.b32.xlu0 %v2069, 64
    %v2254 = vpop.permute.xlu0 %2253
    %v2257 = vsel %vm278, %v2250, 0
    %2259 = vmatprep.subr.mxu0 0.0
    %2260 = vmatpush1.msra.mxu0 0.0
    %2261 = vmatprep.subr.mxu0 0.0
    %2262 = vmatpush1.msra.mxu0 0.0
    %2263 = vmatprep.subr.mxu0 0.0
    %2264 = vmatpush1.msra.mxu0 0.0
    %2265 = vmatprep.subr.mxu0 0.0
    %2266 = vmatpush1.msra.mxu0 0.0
    %2267 = vmatprep.subr.mxu0 0.0
    %2268 = vmatpush1.msra.mxu0 0.0
    %2269 = vmatprep.subr.mxu0 0.0
    %2270 = vmatpush1.msra.mxu0 0.0
    %2271 = vmatprep.subr.mxu0 0.0
    %2272 = vmatpush1.msra.mxu0 0.0
    %2273 = vmatprep.subr.mxu0 0.0
    %2274 = vmatpush1.msra.mxu0 0.0
    %2275 = vmatprep.subr.mxu0 0.0
    %2276 = vmatpush1.msra.mxu0 0.0
    %2277 = vmatprep.subr.mxu0 0.0
    %2278 = vmatpush1.msra.mxu0 0.0
    %2279 = vmatprep.subr.mxu0 0.0
    %2280 = vmatpush1.msra.mxu0 0.0
    %2281 = vmatprep.subr.mxu0 0.0
    %2282 = vmatpush1.msra.mxu0 0.0
    %2283 = vmatprep.subr.mxu0 0.0
    %2284 = vmatpush1.msra.mxu0 0.0
    %2285 = vmatprep.subr.mxu0 0.0
    %2286 = vmatpush1.msra.mxu0 0.0
    %2287 = vmatprep.subr.mxu0 0.0
    %2288 = vmatpush1.msra.mxu0 0.0
    %2289 = vmatprep.subr.mxu0 0.0
    %2290 = vmatpush1.msra.mxu0 %v2254
    %2291 = vmatprep.subr.mxu0 0.0
    %2292 = vmatpush2.msra.mxu0 0.0
    %2293 = vmatprep.subr.mxu0 0.0
    %2294 = vmatpush2.msra.mxu0 0.0
    %2295 = vmatprep.subr.mxu0 0.0
    %2296 = vmatpush2.msra.mxu0 0.0
    %2297 = vmatprep.subr.mxu0 0.0
    %2298 = vmatpush2.msra.mxu0 0.0
    %2299 = vmatprep.subr.mxu0 0.0
    %2300 = vmatpush2.msra.mxu0 0.0
    %2301 = vmatprep.subr.mxu0 0.0
    %2302 = vmatpush2.msra.mxu0 0.0
    %2303 = vmatprep.subr.mxu0 0.0
    %2304 = vmatpush2.msra.mxu0 0.0
    %2305 = vmatprep.subr.mxu0 0.0
    %2306 = vmatpush2.msra.mxu0 0.0
    %2307 = vmatprep.subr.mxu0 0.0
    %2308 = vmatpush2.msra.mxu0 0.0
    %2309 = vmatprep.subr.mxu0 0.0
    %2310 = vmatpush2.msra.mxu0 0.0
    %2311 = vmatprep.subr.mxu0 0.0
    %2312 = vmatpush2.msra.mxu0 0.0
    %2313 = vmatprep.subr.mxu0 0.0
    %2314 = vmatpush2.msra.mxu0 0.0
    %2315 = vmatprep.subr.mxu0 0.0
    %2316 = vmatpush2.msra.mxu0 0.0
    %2317 = vmatprep.subr.mxu0 0.0
    %2318 = vmatpush2.msra.mxu0 0.0
    %2319 = vmatprep.subr.mxu0 0.0
    %2320 = vmatpush2.msra.mxu0 0.0
    %2321 = vmatprep.subr.mxu0 0.0
    %2322 = vmatpush2.msra.mxu0 0.0
    %2323 = vmatprep.mubr.f32.mxu0 0.0
    %2324 = vmatmul.mubr.f32.gmra.mxu0 %v2257
    %v2325 = vpop.f32.mrf.mxu0
    %v2326 = vadd.f32 0.0, %v2325
    %v2327 = vpop.f32.mrf.mxu0
    %2328 = vdwg.mxu0
    %2329 = vrot.lane.b32.xlu0 %v2074, 64
    %v2330 = vpop.permute.xlu0 %2329
    %v2333 = vsel %vm278, %v2252, 0
    %2335 = vmatprep.subr.mxu0 0.0
    %2336 = vmatpush1.msra.mxu0 0.0
    %2337 = vmatprep.subr.mxu0 0.0
    %2338 = vmatpush1.msra.mxu0 0.0
    %2339 = vmatprep.subr.mxu0 0.0
    %2340 = vmatpush1.msra.mxu0 0.0
    %2341 = vmatprep.subr.mxu0 0.0
    %2342 = vmatpush1.msra.mxu0 0.0
    %2343 = vmatprep.subr.mxu0 0.0
    %2344 = vmatpush1.msra.mxu0 0.0
    %2345 = vmatprep.subr.mxu0 0.0
    %2346 = vmatpush1.msra.mxu0 0.0
    %2347 = vmatprep.subr.mxu0 0.0
    %2348 = vmatpush1.msra.mxu0 0.0
    %2349 = vmatprep.subr.mxu0 0.0
    %2350 = vmatpush1.msra.mxu0 0.0
    %2351 = vmatprep.subr.mxu0 0.0
    %2352 = vmatpush1.msra.mxu0 0.0
    %2353 = vmatprep.subr.mxu0 0.0
    %2354 = vmatpush1.msra.mxu0 0.0
    %2355 = vmatprep.subr.mxu0 0.0
    %2356 = vmatpush1.msra.mxu0 0.0
    %2357 = vmatprep.subr.mxu0 0.0
    %2358 = vmatpush1.msra.mxu0 0.0
    %2359 = vmatprep.subr.mxu0 0.0
    %2360 = vmatpush1.msra.mxu0 0.0
    %2361 = vmatprep.subr.mxu0 0.0
    %2362 = vmatpush1.msra.mxu0 0.0
    %2363 = vmatprep.subr.mxu0 0.0
    %2364 = vmatpush1.msra.mxu0 0.0
    %2365 = vmatprep.subr.mxu0 0.0
    %2366 = vmatpush1.msra.mxu0 %v2330
    %2367 = vmatprep.subr.mxu0 0.0
    %2368 = vmatpush2.msra.mxu0 0.0
    %2369 = vmatprep.subr.mxu0 0.0
    %2370 = vmatpush2.msra.mxu0 0.0
    %2371 = vmatprep.subr.mxu0 0.0
    %2372 = vmatpush2.msra.mxu0 0.0
    %2373 = vmatprep.subr.mxu0 0.0
    %2374 = vmatpush2.msra.mxu0 0.0
    %2375 = vmatprep.subr.mxu0 0.0
    %2376 = vmatpush2.msra.mxu0 0.0
    %2377 = vmatprep.subr.mxu0 0.0
    %2378 = vmatpush2.msra.mxu0 0.0
    %2379 = vmatprep.subr.mxu0 0.0
    %2380 = vmatpush2.msra.mxu0 0.0
    %2381 = vmatprep.subr.mxu0 0.0
    %2382 = vmatpush2.msra.mxu0 0.0
    %2383 = vmatprep.subr.mxu0 0.0
    %2384 = vmatpush2.msra.mxu0 0.0
    %2385 = vmatprep.subr.mxu0 0.0
    %2386 = vmatpush2.msra.mxu0 0.0
    %2387 = vmatprep.subr.mxu0 0.0
    %2388 = vmatpush2.msra.mxu0 0.0
    %2389 = vmatprep.subr.mxu0 0.0
    %2390 = vmatpush2.msra.mxu0 0.0
    %2391 = vmatprep.subr.mxu0 0.0
    %2392 = vmatpush2.msra.mxu0 0.0
    %2393 = vmatprep.subr.mxu0 0.0
    %2394 = vmatpush2.msra.mxu0 0.0
    %2395 = vmatprep.subr.mxu0 0.0
    %2396 = vmatpush2.msra.mxu0 0.0
    %2397 = vmatprep.subr.mxu0 0.0
    %2398 = vmatpush2.msra.mxu0 0.0
    %2399 = vmatprep.mubr.f32.mxu0 0.0
    %2400 = vmatmul.mubr.f32.gmra.mxu0 %v2333
    %v2401 = vpop.f32.mrf.mxu0
    %v2402 = vadd.f32 0.0, %v2401
    %v2403 = vpop.f32.mrf.mxu0
    %2404 = vdwg.mxu0
    %2405 = vrot.lane.b32.xlu0 %v2069, 120
    %v2406 = vpop.permute.xlu0 %2405
    %2407 = vrot.lane.b32.xlu0 %v2069, 88
    %v2408 = vpop.permute.xlu0 %2407
    %v2409 = vsel %vm278, %v2406, 0
    %v2411 = vsel %vm278, %v2408, 0
    %2413 = vmatprep.subr.mxu0 0.0
    %2414 = vmatpush1.xpose.msra.mxu0 0.0
    %2415 = vmatprep.subr.mxu0 0.0
    %2416 = vmatpush1.xpose.msra.mxu0 0.0
    %2417 = vmatprep.subr.mxu0 0.0
    %2418 = vmatpush1.xpose.msra.mxu0 0.0
    %2419 = vmatprep.subr.mxu0 0.0
    %2420 = vmatpush1.xpose.msra.mxu0 0.0
    %2421 = vmatprep.subr.mxu0 0.0
    %2422 = vmatpush1.xpose.msra.mxu0 0.0
    %2423 = vmatprep.subr.mxu0 0.0
    %2424 = vmatpush1.xpose.msra.mxu0 0.0
    %2425 = vmatprep.subr.mxu0 0.0
    %2426 = vmatpush1.xpose.msra.mxu0 0.0
    %2427 = vmatprep.subr.mxu0 0.0
    %2428 = vmatpush1.xpose.msra.mxu0 0.0
    %2429 = vmatprep.subr.mxu0 0.0
    %2430 = vmatpush1.xpose.msra.mxu0 0.0
    %2431 = vmatprep.subr.mxu0 0.0
    %2432 = vmatpush1.xpose.msra.mxu0 0.0
    %2433 = vmatprep.subr.mxu0 0.0
    %2434 = vmatpush1.xpose.msra.mxu0 0.0
    %2435 = vmatprep.subr.mxu0 0.0
    %2436 = vmatpush1.xpose.msra.mxu0 0.0
    %2437 = vmatprep.subr.mxu0 0.0
    %2438 = vmatpush1.xpose.msra.mxu0 0.0
    %2439 = vmatprep.subr.mxu0 0.0
    %2440 = vmatpush1.xpose.msra.mxu0 0.0
    %2441 = vmatprep.subr.mxu0 0.0
    %2442 = vmatpush1.xpose.msra.mxu0 0.0
    %2443 = vmatprep.subr.mxu0 0.0
    %2444 = vmatpush1.xpose.msra.mxu0 %v2411
    %2445 = vmatprep.subr.mxu0 0.0
    %2446 = vmatpush2.xpose.msra.mxu0 0.0
    %2447 = vmatprep.subr.mxu0 0.0
    %2448 = vmatpush2.xpose.msra.mxu0 0.0
    %2449 = vmatprep.subr.mxu0 0.0
    %2450 = vmatpush2.xpose.msra.mxu0 0.0
    %2451 = vmatprep.subr.mxu0 0.0
    %2452 = vmatpush2.xpose.msra.mxu0 0.0
    %2453 = vmatprep.subr.mxu0 0.0
    %2454 = vmatpush2.xpose.msra.mxu0 0.0
    %2455 = vmatprep.subr.mxu0 0.0
    %2456 = vmatpush2.xpose.msra.mxu0 0.0
    %2457 = vmatprep.subr.mxu0 0.0
    %2458 = vmatpush2.xpose.msra.mxu0 0.0
    %2459 = vmatprep.subr.mxu0 0.0
    %2460 = vmatpush2.xpose.msra.mxu0 0.0
    %2461 = vmatprep.subr.mxu0 0.0
    %2462 = vmatpush2.xpose.msra.mxu0 0.0
    %2463 = vmatprep.subr.mxu0 0.0
    %2464 = vmatpush2.xpose.msra.mxu0 0.0
    %2465 = vmatprep.subr.mxu0 0.0
    %2466 = vmatpush2.xpose.msra.mxu0 0.0
    %2467 = vmatprep.subr.mxu0 0.0
    %2468 = vmatpush2.xpose.msra.mxu0 0.0
    %2469 = vmatprep.subr.mxu0 0.0
    %2470 = vmatpush2.xpose.msra.mxu0 0.0
    %2471 = vmatprep.subr.mxu0 0.0
    %2472 = vmatpush2.xpose.msra.mxu0 0.0
    %2473 = vmatprep.subr.mxu0 0.0
    %2474 = vmatpush2.xpose.msra.mxu0 0.0
    %2475 = vmatprep.subr.mxu0 0.0
    %2476 = vmatpush2.xpose.msra.mxu0 0.0
    %2477 = vmatprep.mubr.f32.mxu0 0.0
    %2478 = vmatmul.mubr.f32.gmra.mxu0 %v2409
    %v2479 = vpop.f32.mrf.mxu0
    %v2480 = vadd.f32 %v268, %v2479
    %v2481 = vpop.f32.mrf.mxu0
    %2482 = vdwg.mxu0
    %2483 = vrot.lane.b32.xlu0 %v2074, 120
    %v2484 = vpop.permute.xlu0 %2483
    %2485 = vrot.lane.b32.xlu0 %v2074, 88
    %v2486 = vpop.permute.xlu0 %2485
    %v2487 = vsel %vm278, %v2484, 0
    %v2489 = vsel %vm278, %v2486, 0
    %2491 = vmatprep.subr.mxu0 0.0
    %2492 = vmatpush1.xpose.msra.mxu0 0.0
    %2493 = vmatprep.subr.mxu0 0.0
    %2494 = vmatpush1.xpose.msra.mxu0 0.0
    %2495 = vmatprep.subr.mxu0 0.0
    %2496 = vmatpush1.xpose.msra.mxu0 0.0
    %2497 = vmatprep.subr.mxu0 0.0
    %2498 = vmatpush1.xpose.msra.mxu0 0.0
    %2499 = vmatprep.subr.mxu0 0.0
    %2500 = vmatpush1.xpose.msra.mxu0 0.0
    %2501 = vmatprep.subr.mxu0 0.0
    %2502 = vmatpush1.xpose.msra.mxu0 0.0
    %2503 = vmatprep.subr.mxu0 0.0
    %2504 = vmatpush1.xpose.msra.mxu0 0.0
    %2505 = vmatprep.subr.mxu0 0.0
    %2506 = vmatpush1.xpose.msra.mxu0 0.0
    %2507 = vmatprep.subr.mxu0 0.0
    %2508 = vmatpush1.xpose.msra.mxu0 0.0
    %2509 = vmatprep.subr.mxu0 0.0
    %2510 = vmatpush1.xpose.msra.mxu0 0.0
    %2511 = vmatprep.subr.mxu0 0.0
    %2512 = vmatpush1.xpose.msra.mxu0 0.0
    %2513 = vmatprep.subr.mxu0 0.0
    %2514 = vmatpush1.xpose.msra.mxu0 0.0
    %2515 = vmatprep.subr.mxu0 0.0
    %2516 = vmatpush1.xpose.msra.mxu0 0.0
    %2517 = vmatprep.subr.mxu0 0.0
    %2518 = vmatpush1.xpose.msra.mxu0 0.0
    %2519 = vmatprep.subr.mxu0 0.0
    %2520 = vmatpush1.xpose.msra.mxu0 0.0
    %2521 = vmatprep.subr.mxu0 0.0
    %2522 = vmatpush1.xpose.msra.mxu0 %v2489
    %2523 = vmatprep.subr.mxu0 0.0
    %2524 = vmatpush2.xpose.msra.mxu0 0.0
    %2525 = vmatprep.subr.mxu0 0.0
    %2526 = vmatpush2.xpose.msra.mxu0 0.0
    %2527 = vmatprep.subr.mxu0 0.0
    %2528 = vmatpush2.xpose.msra.mxu0 0.0
    %2529 = vmatprep.subr.mxu0 0.0
    %2530 = vmatpush2.xpose.msra.mxu0 0.0
    %2531 = vmatprep.subr.mxu0 0.0
    %2532 = vmatpush2.xpose.msra.mxu0 0.0
    %2533 = vmatprep.subr.mxu0 0.0
    %2534 = vmatpush2.xpose.msra.mxu0 0.0
    %2535 = vmatprep.subr.mxu0 0.0
    %2536 = vmatpush2.xpose.msra.mxu0 0.0
    %2537 = vmatprep.subr.mxu0 0.0
    %2538 = vmatpush2.xpose.msra.mxu0 0.0
    %2539 = vmatprep.subr.mxu0 0.0
    %2540 = vmatpush2.xpose.msra.mxu0 0.0
    %2541 = vmatprep.subr.mxu0 0.0
    %2542 = vmatpush2.xpose.msra.mxu0 0.0
    %2543 = vmatprep.subr.mxu0 0.0
    %2544 = vmatpush2.xpose.msra.mxu0 0.0
    %2545 = vmatprep.subr.mxu0 0.0
    %2546 = vmatpush2.xpose.msra.mxu0 0.0
    %2547 = vmatprep.subr.mxu0 0.0
    %2548 = vmatpush2.xpose.msra.mxu0 0.0
    %2549 = vmatprep.subr.mxu0 0.0
    %2550 = vmatpush2.xpose.msra.mxu0 0.0
    %2551 = vmatprep.subr.mxu0 0.0
    %2552 = vmatpush2.xpose.msra.mxu0 0.0
    %2553 = vmatprep.subr.mxu0 0.0
    %2554 = vmatpush2.xpose.msra.mxu0 0.0
    %2555 = vmatprep.mubr.f32.mxu0 0.0
    %2556 = vmatmul.mubr.f32.gmra.mxu0 %v2487
    %v2557 = vpop.f32.mrf.mxu0
    %v2558 = vadd.f32 %v272, %v2557
    %v2559 = vpop.f32.mrf.mxu0
    %2560 = vdwg.mxu0
    %v2561 = vsel %vm278, %v2480, -inf
    %2562 = vmax.xlane.f32.xlu0 %v2561
    %v2563 = vpop.xlane.xlu0 %2562
    %v2564 = vsel %vm278, %v2558, -inf
    %2565 = vmax.xlane.f32.xlu0 %v2564
    %v2566 = vpop.xlane.xlu0 %2565
    %v2567 = vsub.f32 %v2480, %v2563
    %v2568 = vsub.f32 %v2558, %v2566
    %v2569 = vmul.f32 %v2567, 1.442695
    %v2570 = vpow.pop %v2569
    %v2571 = vmul.f32 %v2568, 1.442695
    %v2572 = vpow.pop %v2571
    %v2573 = vsel %vm278, %v2570, 0.0
    %2574 = vadd.xlane.f32.xlu0 %v2573
    %v2575 = vpop.xlane.xlu0 %2574
    %v2576 = vsel %vm278, %v2572, 0.0
    %2577 = vadd.xlane.f32.xlu0 %v2576
    %v2578 = vpop.xlane.xlu0 %2577
    %v2579 = vrcp.pop %v2575
    %v2580 = vmul.f32 %v2570, %v2579
    %v2581 = vrcp.pop %v2578
    %v2582 = vmul.f32 %v2572, %v2581
    %2583 = vrot.lane.b32.xlu0 %v2069, 56
    %v2584 = vpop.permute.xlu0 %2583
    %v2587 = vsel %vm278, %v2580, 0
    %2589 = vmatprep.subr.mxu0 0.0
    %2590 = vmatpush1.msra.mxu0 0.0
    %2591 = vmatprep.subr.mxu0 0.0
    %2592 = vmatpush1.msra.mxu0 0.0
    %2593 = vmatprep.subr.mxu0 0.0
    %2594 = vmatpush1.msra.mxu0 0.0
    %2595 = vmatprep.subr.mxu0 0.0
    %2596 = vmatpush1.msra.mxu0 0.0
    %2597 = vmatprep.subr.mxu0 0.0
    %2598 = vmatpush1.msra.mxu0 0.0
    %2599 = vmatprep.subr.mxu0 0.0
    %2600 = vmatpush1.msra.mxu0 0.0
    %2601 = vmatprep.subr.mxu0 0.0
    %2602 = vmatpush1.msra.mxu0 0.0
    %2603 = vmatprep.subr.mxu0 0.0
    %2604 = vmatpush1.msra.mxu0 0.0
    %2605 = vmatprep.subr.mxu0 0.0
    %2606 = vmatpush1.msra.mxu0 0.0
    %2607 = vmatprep.subr.mxu0 0.0
    %2608 = vmatpush1.msra.mxu0 0.0
    %2609 = vmatprep.subr.mxu0 0.0
    %2610 = vmatpush1.msra.mxu0 0.0
    %2611 = vmatprep.subr.mxu0 0.0
    %2612 = vmatpush1.msra.mxu0 0.0
    %2613 = vmatprep.subr.mxu0 0.0
    %2614 = vmatpush1.msra.mxu0 0.0
    %2615 = vmatprep.subr.mxu0 0.0
    %2616 = vmatpush1.msra.mxu0 0.0
    %2617 = vmatprep.subr.mxu0 0.0
    %2618 = vmatpush1.msra.mxu0 0.0
    %2619 = vmatprep.subr.mxu0 0.0
    %2620 = vmatpush1.msra.mxu0 %v2584
    %2621 = vmatprep.subr.mxu0 0.0
    %2622 = vmatpush2.msra.mxu0 0.0
    %2623 = vmatprep.subr.mxu0 0.0
    %2624 = vmatpush2.msra.mxu0 0.0
    %2625 = vmatprep.subr.mxu0 0.0
    %2626 = vmatpush2.msra.mxu0 0.0
    %2627 = vmatprep.subr.mxu0 0.0
    %2628 = vmatpush2.msra.mxu0 0.0
    %2629 = vmatprep.subr.mxu0 0.0
    %2630 = vmatpush2.msra.mxu0 0.0
    %2631 = vmatprep.subr.mxu0 0.0
    %2632 = vmatpush2.msra.mxu0 0.0
    %2633 = vmatprep.subr.mxu0 0.0
    %2634 = vmatpush2.msra.mxu0 0.0
    %2635 = vmatprep.subr.mxu0 0.0
    %2636 = vmatpush2.msra.mxu0 0.0
    %2637 = vmatprep.subr.mxu0 0.0
    %2638 = vmatpush2.msra.mxu0 0.0
    %2639 = vmatprep.subr.mxu0 0.0
    %2640 = vmatpush2.msra.mxu0 0.0
    %2641 = vmatprep.subr.mxu0 0.0
    %2642 = vmatpush2.msra.mxu0 0.0
    %2643 = vmatprep.subr.mxu0 0.0
    %2644 = vmatpush2.msra.mxu0 0.0
    %2645 = vmatprep.subr.mxu0 0.0
    %2646 = vmatpush2.msra.mxu0 0.0
    %2647 = vmatprep.subr.mxu0 0.0
    %2648 = vmatpush2.msra.mxu0 0.0
    %2649 = vmatprep.subr.mxu0 0.0
    %2650 = vmatpush2.msra.mxu0 0.0
    %2651 = vmatprep.subr.mxu0 0.0
    %2652 = vmatpush2.msra.mxu0 0.0
    %2653 = vmatprep.mubr.f32.mxu0 0.0
    %2654 = vmatmul.mubr.f32.gmra.mxu0 %v2587
    %v2655 = vpop.f32.mrf.mxu0
    %v2656 = vadd.f32 0.0, %v2655
    %v2657 = vpop.f32.mrf.mxu0
    %2658 = vdwg.mxu0
    %2659 = vrot.lane.b32.xlu0 %v2074, 56
    %v2660 = vpop.permute.xlu0 %2659
    %v2663 = vsel %vm278, %v2582, 0
    %2665 = vmatprep.subr.mxu0 0.0
    %2666 = vmatpush1.msra.mxu0 0.0
    %2667 = vmatprep.subr.mxu0 0.0
    %2668 = vmatpush1.msra.mxu0 0.0
    %2669 = vmatprep.subr.mxu0 0.0
    %2670 = vmatpush1.msra.mxu0 0.0
    %2671 = vmatprep.subr.mxu0 0.0
    %2672 = vmatpush1.msra.mxu0 0.0
    %2673 = vmatprep.subr.mxu0 0.0
    %2674 = vmatpush1.msra.mxu0 0.0
    %2675 = vmatprep.subr.mxu0 0.0
    %2676 = vmatpush1.msra.mxu0 0.0
    %2677 = vmatprep.subr.mxu0 0.0
    %2678 = vmatpush1.msra.mxu0 0.0
    %2679 = vmatprep.subr.mxu0 0.0
    %2680 = vmatpush1.msra.mxu0 0.0
    %2681 = vmatprep.subr.mxu0 0.0
    %2682 = vmatpush1.msra.mxu0 0.0
    %2683 = vmatprep.subr.mxu0 0.0
    %2684 = vmatpush1.msra.mxu0 0.0
    %2685 = vmatprep.subr.mxu0 0.0
    %2686 = vmatpush1.msra.mxu0 0.0
    %2687 = vmatprep.subr.mxu0 0.0
    %2688 = vmatpush1.msra.mxu0 0.0
    %2689 = vmatprep.subr.mxu0 0.0
    %2690 = vmatpush1.msra.mxu0 0.0
    %2691 = vmatprep.subr.mxu0 0.0
    %2692 = vmatpush1.msra.mxu0 0.0
    %2693 = vmatprep.subr.mxu0 0.0
    %2694 = vmatpush1.msra.mxu0 0.0
    %2695 = vmatprep.subr.mxu0 0.0
    %2696 = vmatpush1.msra.mxu0 %v2660
    %2697 = vmatprep.subr.mxu0 0.0
    %2698 = vmatpush2.msra.mxu0 0.0
    %2699 = vmatprep.subr.mxu0 0.0
    %2700 = vmatpush2.msra.mxu0 0.0
    %2701 = vmatprep.subr.mxu0 0.0
    %2702 = vmatpush2.msra.mxu0 0.0
    %2703 = vmatprep.subr.mxu0 0.0
    %2704 = vmatpush2.msra.mxu0 0.0
    %2705 = vmatprep.subr.mxu0 0.0
    %2706 = vmatpush2.msra.mxu0 0.0
    %2707 = vmatprep.subr.mxu0 0.0
    %2708 = vmatpush2.msra.mxu0 0.0
    %2709 = vmatprep.subr.mxu0 0.0
    %2710 = vmatpush2.msra.mxu0 0.0
    %2711 = vmatprep.subr.mxu0 0.0
    %2712 = vmatpush2.msra.mxu0 0.0
    %2713 = vmatprep.subr.mxu0 0.0
    %2714 = vmatpush2.msra.mxu0 0.0
    %2715 = vmatprep.subr.mxu0 0.0
    %2716 = vmatpush2.msra.mxu0 0.0
    %2717 = vmatprep.subr.mxu0 0.0
    %2718 = vmatpush2.msra.mxu0 0.0
    %2719 = vmatprep.subr.mxu0 0.0
    %2720 = vmatpush2.msra.mxu0 0.0
    %2721 = vmatprep.subr.mxu0 0.0
    %2722 = vmatpush2.msra.mxu0 0.0
    %2723 = vmatprep.subr.mxu0 0.0
    %2724 = vmatpush2.msra.mxu0 0.0
    %2725 = vmatprep.subr.mxu0 0.0
    %2726 = vmatpush2.msra.mxu0 0.0
    %2727 = vmatprep.subr.mxu0 0.0
    %2728 = vmatpush2.msra.mxu0 0.0
    %2729 = vmatprep.mubr.f32.mxu0 0.0
    %2730 = vmatmul.mubr.f32.gmra.mxu0 %v2663
    %v2731 = vpop.f32.mrf.mxu0
    %v2732 = vadd.f32 0.0, %v2731
    %v2733 = vpop.f32.mrf.mxu0
    %2734 = vdwg.mxu0
    %2735 = vrot.lane.b32.xlu0 %v2069, 112
    %v2736 = vpop.permute.xlu0 %2735
    %2737 = vrot.lane.b32.xlu0 %v2069, 80
    %v2738 = vpop.permute.xlu0 %2737
    %v2739 = vsel %vm278, %v2736, 0
    %v2741 = vsel %vm278, %v2738, 0
    %2743 = vmatprep.subr.mxu0 0.0
    %2744 = vmatpush1.xpose.msra.mxu0 0.0
    %2745 = vmatprep.subr.mxu0 0.0
    %2746 = vmatpush1.xpose.msra.mxu0 0.0
    %2747 = vmatprep.subr.mxu0 0.0
    %2748 = vmatpush1.xpose.msra.mxu0 0.0
    %2749 = vmatprep.subr.mxu0 0.0
    %2750 = vmatpush1.xpose.msra.mxu0 0.0
    %2751 = vmatprep.subr.mxu0 0.0
    %2752 = vmatpush1.xpose.msra.mxu0 0.0
    %2753 = vmatprep.subr.mxu0 0.0
    %2754 = vmatpush1.xpose.msra.mxu0 0.0
    %2755 = vmatprep.subr.mxu0 0.0
    %2756 = vmatpush1.xpose.msra.mxu0 0.0
    %2757 = vmatprep.subr.mxu0 0.0
    %2758 = vmatpush1.xpose.msra.mxu0 0.0
    %2759 = vmatprep.subr.mxu0 0.0
    %2760 = vmatpush1.xpose.msra.mxu0 0.0
    %2761 = vmatprep.subr.mxu0 0.0
    %2762 = vmatpush1.xpose.msra.mxu0 0.0
    %2763 = vmatprep.subr.mxu0 0.0
    %2764 = vmatpush1.xpose.msra.mxu0 0.0
    %2765 = vmatprep.subr.mxu0 0.0
    %2766 = vmatpush1.xpose.msra.mxu0 0.0
    %2767 = vmatprep.subr.mxu0 0.0
    %2768 = vmatpush1.xpose.msra.mxu0 0.0
    %2769 = vmatprep.subr.mxu0 0.0
    %2770 = vmatpush1.xpose.msra.mxu0 0.0
    %2771 = vmatprep.subr.mxu0 0.0
    %2772 = vmatpush1.xpose.msra.mxu0 0.0
    %2773 = vmatprep.subr.mxu0 0.0
    %2774 = vmatpush1.xpose.msra.mxu0 %v2741
    %2775 = vmatprep.subr.mxu0 0.0
    %2776 = vmatpush2.xpose.msra.mxu0 0.0
    %2777 = vmatprep.subr.mxu0 0.0
    %2778 = vmatpush2.xpose.msra.mxu0 0.0
    %2779 = vmatprep.subr.mxu0 0.0
    %2780 = vmatpush2.xpose.msra.mxu0 0.0
    %2781 = vmatprep.subr.mxu0 0.0
    %2782 = vmatpush2.xpose.msra.mxu0 0.0
    %2783 = vmatprep.subr.mxu0 0.0
    %2784 = vmatpush2.xpose.msra.mxu0 0.0
    %2785 = vmatprep.subr.mxu0 0.0
    %2786 = vmatpush2.xpose.msra.mxu0 0.0
    %2787 = vmatprep.subr.mxu0 0.0
    %2788 = vmatpush2.xpose.msra.mxu0 0.0
    %2789 = vmatprep.subr.mxu0 0.0
    %2790 = vmatpush2.xpose.msra.mxu0 0.0
    %2791 = vmatprep.subr.mxu0 0.0
    %2792 = vmatpush2.xpose.msra.mxu0 0.0
    %2793 = vmatprep.subr.mxu0 0.0
    %2794 = vmatpush2.xpose.msra.mxu0 0.0
    %2795 = vmatprep.subr.mxu0 0.0
    %2796 = vmatpush2.xpose.msra.mxu0 0.0
    %2797 = vmatprep.subr.mxu0 0.0
    %2798 = vmatpush2.xpose.msra.mxu0 0.0
    %2799 = vmatprep.subr.mxu0 0.0
    %2800 = vmatpush2.xpose.msra.mxu0 0.0
    %2801 = vmatprep.subr.mxu0 0.0
    %2802 = vmatpush2.xpose.msra.mxu0 0.0
    %2803 = vmatprep.subr.mxu0 0.0
    %2804 = vmatpush2.xpose.msra.mxu0 0.0
    %2805 = vmatprep.subr.mxu0 0.0
    %2806 = vmatpush2.xpose.msra.mxu0 0.0
    %2807 = vmatprep.mubr.f32.mxu0 0.0
    %2808 = vmatmul.mubr.f32.gmra.mxu0 %v2739
    %v2809 = vpop.f32.mrf.mxu0
    %v2810 = vadd.f32 %v268, %v2809
    %v2811 = vpop.f32.mrf.mxu0
    %2812 = vdwg.mxu0
    %2813 = vrot.lane.b32.xlu0 %v2074, 112
    %v2814 = vpop.permute.xlu0 %2813
    %2815 = vrot.lane.b32.xlu0 %v2074, 80
    %v2816 = vpop.permute.xlu0 %2815
    %v2817 = vsel %vm278, %v2814, 0
    %v2819 = vsel %vm278, %v2816, 0
    %2821 = vmatprep.subr.mxu0 0.0
    %2822 = vmatpush1.xpose.msra.mxu0 0.0
    %2823 = vmatprep.subr.mxu0 0.0
    %2824 = vmatpush1.xpose.msra.mxu0 0.0
    %2825 = vmatprep.subr.mxu0 0.0
    %2826 = vmatpush1.xpose.msra.mxu0 0.0
    %2827 = vmatprep.subr.mxu0 0.0
    %2828 = vmatpush1.xpose.msra.mxu0 0.0
    %2829 = vmatprep.subr.mxu0 0.0
    %2830 = vmatpush1.xpose.msra.mxu0 0.0
    %2831 = vmatprep.subr.mxu0 0.0
    %2832 = vmatpush1.xpose.msra.mxu0 0.0
    %2833 = vmatprep.subr.mxu0 0.0
    %2834 = vmatpush1.xpose.msra.mxu0 0.0
    %2835 = vmatprep.subr.mxu0 0.0
    %2836 = vmatpush1.xpose.msra.mxu0 0.0
    %2837 = vmatprep.subr.mxu0 0.0
    %2838 = vmatpush1.xpose.msra.mxu0 0.0
    %2839 = vmatprep.subr.mxu0 0.0
    %2840 = vmatpush1.xpose.msra.mxu0 0.0
    %2841 = vmatprep.subr.mxu0 0.0
    %2842 = vmatpush1.xpose.msra.mxu0 0.0
    %2843 = vmatprep.subr.mxu0 0.0
    %2844 = vmatpush1.xpose.msra.mxu0 0.0
    %2845 = vmatprep.subr.mxu0 0.0
    %2846 = vmatpush1.xpose.msra.mxu0 0.0
    %2847 = vmatprep.subr.mxu0 0.0
    %2848 = vmatpush1.xpose.msra.mxu0 0.0
    %2849 = vmatprep.subr.mxu0 0.0
    %2850 = vmatpush1.xpose.msra.mxu0 0.0
    %2851 = vmatprep.subr.mxu0 0.0
    %2852 = vmatpush1.xpose.msra.mxu0 %v2819
    %2853 = vmatprep.subr.mxu0 0.0
    %2854 = vmatpush2.xpose.msra.mxu0 0.0
    %2855 = vmatprep.subr.mxu0 0.0
    %2856 = vmatpush2.xpose.msra.mxu0 0.0
    %2857 = vmatprep.subr.mxu0 0.0
    %2858 = vmatpush2.xpose.msra.mxu0 0.0
    %2859 = vmatprep.subr.mxu0 0.0
    %2860 = vmatpush2.xpose.msra.mxu0 0.0
    %2861 = vmatprep.subr.mxu0 0.0
    %2862 = vmatpush2.xpose.msra.mxu0 0.0
    %2863 = vmatprep.subr.mxu0 0.0
    %2864 = vmatpush2.xpose.msra.mxu0 0.0
    %2865 = vmatprep.subr.mxu0 0.0
    %2866 = vmatpush2.xpose.msra.mxu0 0.0
    %2867 = vmatprep.subr.mxu0 0.0
    %2868 = vmatpush2.xpose.msra.mxu0 0.0
    %2869 = vmatprep.subr.mxu0 0.0
    %2870 = vmatpush2.xpose.msra.mxu0 0.0
    %2871 = vmatprep.subr.mxu0 0.0
    %2872 = vmatpush2.xpose.msra.mxu0 0.0
    %2873 = vmatprep.subr.mxu0 0.0
    %2874 = vmatpush2.xpose.msra.mxu0 0.0
    %2875 = vmatprep.subr.mxu0 0.0
    %2876 = vmatpush2.xpose.msra.mxu0 0.0
    %2877 = vmatprep.subr.mxu0 0.0
    %2878 = vmatpush2.xpose.msra.mxu0 0.0
    %2879 = vmatprep.subr.mxu0 0.0
    %2880 = vmatpush2.xpose.msra.mxu0 0.0
    %2881 = vmatprep.subr.mxu0 0.0
    %2882 = vmatpush2.xpose.msra.mxu0 0.0
    %2883 = vmatprep.subr.mxu0 0.0
    %2884 = vmatpush2.xpose.msra.mxu0 0.0
    %2885 = vmatprep.mubr.f32.mxu0 0.0
    %2886 = vmatmul.mubr.f32.gmra.mxu0 %v2817
    %v2887 = vpop.f32.mrf.mxu0
    %v2888 = vadd.f32 %v272, %v2887
    %v2889 = vpop.f32.mrf.mxu0
    %2890 = vdwg.mxu0
    %v2891 = vsel %vm278, %v2810, -inf
    %2892 = vmax.xlane.f32.xlu0 %v2891
    %v2893 = vpop.xlane.xlu0 %2892
    %v2894 = vsel %vm278, %v2888, -inf
    %2895 = vmax.xlane.f32.xlu0 %v2894
    %v2896 = vpop.xlane.xlu0 %2895
    %v2897 = vsub.f32 %v2810, %v2893
    %v2898 = vsub.f32 %v2888, %v2896
    %v2899 = vmul.f32 %v2897, 1.442695
    %v2900 = vpow.pop %v2899
    %v2901 = vmul.f32 %v2898, 1.442695
    %v2902 = vpow.pop %v2901
    %v2903 = vsel %vm278, %v2900, 0.0
    %2904 = vadd.xlane.f32.xlu0 %v2903
    %v2905 = vpop.xlane.xlu0 %2904
    %v2906 = vsel %vm278, %v2902, 0.0
    %2907 = vadd.xlane.f32.xlu0 %v2906
    %v2908 = vpop.xlane.xlu0 %2907
    %v2909 = vrcp.pop %v2905
    %v2910 = vmul.f32 %v2900, %v2909
    %v2911 = vrcp.pop %v2908
    %v2912 = vmul.f32 %v2902, %v2911
    %2913 = vrot.lane.b32.xlu0 %v2069, 48
    %v2914 = vpop.permute.xlu0 %2913
    %v2917 = vsel %vm278, %v2910, 0
    %2919 = vmatprep.subr.mxu0 0.0
    %2920 = vmatpush1.msra.mxu0 0.0
    %2921 = vmatprep.subr.mxu0 0.0
    %2922 = vmatpush1.msra.mxu0 0.0
    %2923 = vmatprep.subr.mxu0 0.0
    %2924 = vmatpush1.msra.mxu0 0.0
    %2925 = vmatprep.subr.mxu0 0.0
    %2926 = vmatpush1.msra.mxu0 0.0
    %2927 = vmatprep.subr.mxu0 0.0
    %2928 = vmatpush1.msra.mxu0 0.0
    %2929 = vmatprep.subr.mxu0 0.0
    %2930 = vmatpush1.msra.mxu0 0.0
    %2931 = vmatprep.subr.mxu0 0.0
    %2932 = vmatpush1.msra.mxu0 0.0
    %2933 = vmatprep.subr.mxu0 0.0
    %2934 = vmatpush1.msra.mxu0 0.0
    %2935 = vmatprep.subr.mxu0 0.0
    %2936 = vmatpush1.msra.mxu0 0.0
    %2937 = vmatprep.subr.mxu0 0.0
    %2938 = vmatpush1.msra.mxu0 0.0
    %2939 = vmatprep.subr.mxu0 0.0
    %2940 = vmatpush1.msra.mxu0 0.0
    %2941 = vmatprep.subr.mxu0 0.0
    %2942 = vmatpush1.msra.mxu0 0.0
    %2943 = vmatprep.subr.mxu0 0.0
    %2944 = vmatpush1.msra.mxu0 0.0
    %2945 = vmatprep.subr.mxu0 0.0
    %2946 = vmatpush1.msra.mxu0 0.0
    %2947 = vmatprep.subr.mxu0 0.0
    %2948 = vmatpush1.msra.mxu0 0.0
    %2949 = vmatprep.subr.mxu0 0.0
    %2950 = vmatpush1.msra.mxu0 %v2914
    %2951 = vmatprep.subr.mxu0 0.0
    %2952 = vmatpush2.msra.mxu0 0.0
    %2953 = vmatprep.subr.mxu0 0.0
    %2954 = vmatpush2.msra.mxu0 0.0
    %2955 = vmatprep.subr.mxu0 0.0
    %2956 = vmatpush2.msra.mxu0 0.0
    %2957 = vmatprep.subr.mxu0 0.0
    %2958 = vmatpush2.msra.mxu0 0.0
    %2959 = vmatprep.subr.mxu0 0.0
    %2960 = vmatpush2.msra.mxu0 0.0
    %2961 = vmatprep.subr.mxu0 0.0
    %2962 = vmatpush2.msra.mxu0 0.0
    %2963 = vmatprep.subr.mxu0 0.0
    %2964 = vmatpush2.msra.mxu0 0.0
    %2965 = vmatprep.subr.mxu0 0.0
    %2966 = vmatpush2.msra.mxu0 0.0
    %2967 = vmatprep.subr.mxu0 0.0
    %2968 = vmatpush2.msra.mxu0 0.0
    %2969 = vmatprep.subr.mxu0 0.0
    %2970 = vmatpush2.msra.mxu0 0.0
    %2971 = vmatprep.subr.mxu0 0.0
    %2972 = vmatpush2.msra.mxu0 0.0
    %2973 = vmatprep.subr.mxu0 0.0
    %2974 = vmatpush2.msra.mxu0 0.0
    %2975 = vmatprep.subr.mxu0 0.0
    %2976 = vmatpush2.msra.mxu0 0.0
    %2977 = vmatprep.subr.mxu0 0.0
    %2978 = vmatpush2.msra.mxu0 0.0
    %2979 = vmatprep.subr.mxu0 0.0
    %2980 = vmatpush2.msra.mxu0 0.0
    %2981 = vmatprep.subr.mxu0 0.0
    %2982 = vmatpush2.msra.mxu0 0.0
    %2983 = vmatprep.mubr.f32.mxu0 0.0
    %2984 = vmatmul.mubr.f32.gmra.mxu0 %v2917
    %v2985 = vpop.f32.mrf.mxu0
    %v2986 = vadd.f32 0.0, %v2985
    %v2987 = vpop.f32.mrf.mxu0
    %2988 = vdwg.mxu0
    %2989 = vrot.lane.b32.xlu0 %v2074, 48
    %v2990 = vpop.permute.xlu0 %2989
    %v2993 = vsel %vm278, %v2912, 0
    %2995 = vmatprep.subr.mxu0 0.0
    %2996 = vmatpush1.msra.mxu0 0.0
    %2997 = vmatprep.subr.mxu0 0.0
    %2998 = vmatpush1.msra.mxu0 0.0
    %2999 = vmatprep.subr.mxu0 0.0
    %3000 = vmatpush1.msra.mxu0 0.0
    %3001 = vmatprep.subr.mxu0 0.0
    %3002 = vmatpush1.msra.mxu0 0.0
    %3003 = vmatprep.subr.mxu0 0.0
    %3004 = vmatpush1.msra.mxu0 0.0
    %3005 = vmatprep.subr.mxu0 0.0
    %3006 = vmatpush1.msra.mxu0 0.0
    %3007 = vmatprep.subr.mxu0 0.0
    %3008 = vmatpush1.msra.mxu0 0.0
    %3009 = vmatprep.subr.mxu0 0.0
    %3010 = vmatpush1.msra.mxu0 0.0
    %3011 = vmatprep.subr.mxu0 0.0
    %3012 = vmatpush1.msra.mxu0 0.0
    %3013 = vmatprep.subr.mxu0 0.0
    %3014 = vmatpush1.msra.mxu0 0.0
    %3015 = vmatprep.subr.mxu0 0.0
    %3016 = vmatpush1.msra.mxu0 0.0
    %3017 = vmatprep.subr.mxu0 0.0
    %3018 = vmatpush1.msra.mxu0 0.0
    %3019 = vmatprep.subr.mxu0 0.0
    %3020 = vmatpush1.msra.mxu0 0.0
    %3021 = vmatprep.subr.mxu0 0.0
    %3022 = vmatpush1.msra.mxu0 0.0
    %3023 = vmatprep.subr.mxu0 0.0
    %3024 = vmatpush1.msra.mxu0 0.0
    %3025 = vmatprep.subr.mxu0 0.0
    %3026 = vmatpush1.msra.mxu0 %v2990
    %3027 = vmatprep.subr.mxu0 0.0
    %3028 = vmatpush2.msra.mxu0 0.0
    %3029 = vmatprep.subr.mxu0 0.0
    %3030 = vmatpush2.msra.mxu0 0.0
    %3031 = vmatprep.subr.mxu0 0.0
    %3032 = vmatpush2.msra.mxu0 0.0
    %3033 = vmatprep.subr.mxu0 0.0
    %3034 = vmatpush2.msra.mxu0 0.0
    %3035 = vmatprep.subr.mxu0 0.0
    %3036 = vmatpush2.msra.mxu0 0.0
    %3037 = vmatprep.subr.mxu0 0.0
    %3038 = vmatpush2.msra.mxu0 0.0
    %3039 = vmatprep.subr.mxu0 0.0
    %3040 = vmatpush2.msra.mxu0 0.0
    %3041 = vmatprep.subr.mxu0 0.0
    %3042 = vmatpush2.msra.mxu0 0.0
    %3043 = vmatprep.subr.mxu0 0.0
    %3044 = vmatpush2.msra.mxu0 0.0
    %3045 = vmatprep.subr.mxu0 0.0
    %3046 = vmatpush2.msra.mxu0 0.0
    %3047 = vmatprep.subr.mxu0 0.0
    %3048 = vmatpush2.msra.mxu0 0.0
    %3049 = vmatprep.subr.mxu0 0.0
    %3050 = vmatpush2.msra.mxu0 0.0
    %3051 = vmatprep.subr.mxu0 0.0
    %3052 = vmatpush2.msra.mxu0 0.0
    %3053 = vmatprep.subr.mxu0 0.0
    %3054 = vmatpush2.msra.mxu0 0.0
    %3055 = vmatprep.subr.mxu0 0.0
    %3056 = vmatpush2.msra.mxu0 0.0
    %3057 = vmatprep.subr.mxu0 0.0
    %3058 = vmatpush2.msra.mxu0 0.0
    %3059 = vmatprep.mubr.f32.mxu0 0.0
    %3060 = vmatmul.mubr.f32.gmra.mxu0 %v2993
    %v3061 = vpop.f32.mrf.mxu0
    %v3062 = vadd.f32 0.0, %v3061
    %v3063 = vpop.f32.mrf.mxu0
    %3064 = vdwg.mxu0
    %3065 = vrot.lane.b32.xlu0 %v2069, 104
    %v3066 = vpop.permute.xlu0 %3065
    %3067 = vrot.lane.b32.xlu0 %v2069, 72
    %v3068 = vpop.permute.xlu0 %3067
    %v3069 = vsel %vm278, %v3066, 0
    %v3071 = vsel %vm278, %v3068, 0
    %3073 = vmatprep.subr.mxu0 0.0
    %3074 = vmatpush1.xpose.msra.mxu0 0.0
    %3075 = vmatprep.subr.mxu0 0.0
    %3076 = vmatpush1.xpose.msra.mxu0 0.0
    %3077 = vmatprep.subr.mxu0 0.0
    %3078 = vmatpush1.xpose.msra.mxu0 0.0
    %3079 = vmatprep.subr.mxu0 0.0
    %3080 = vmatpush1.xpose.msra.mxu0 0.0
    %3081 = vmatprep.subr.mxu0 0.0
    %3082 = vmatpush1.xpose.msra.mxu0 0.0
    %3083 = vmatprep.subr.mxu0 0.0
    %3084 = vmatpush1.xpose.msra.mxu0 0.0
    %3085 = vmatprep.subr.mxu0 0.0
    %3086 = vmatpush1.xpose.msra.mxu0 0.0
    %3087 = vmatprep.subr.mxu0 0.0
    %3088 = vmatpush1.xpose.msra.mxu0 0.0
    %3089 = vmatprep.subr.mxu0 0.0
    %3090 = vmatpush1.xpose.msra.mxu0 0.0
    %3091 = vmatprep.subr.mxu0 0.0
    %3092 = vmatpush1.xpose.msra.mxu0 0.0
    %3093 = vmatprep.subr.mxu0 0.0
    %3094 = vmatpush1.xpose.msra.mxu0 0.0
    %3095 = vmatprep.subr.mxu0 0.0
    %3096 = vmatpush1.xpose.msra.mxu0 0.0
    %3097 = vmatprep.subr.mxu0 0.0
    %3098 = vmatpush1.xpose.msra.mxu0 0.0
    %3099 = vmatprep.subr.mxu0 0.0
    %3100 = vmatpush1.xpose.msra.mxu0 0.0
    %3101 = vmatprep.subr.mxu0 0.0
    %3102 = vmatpush1.xpose.msra.mxu0 0.0
    %3103 = vmatprep.subr.mxu0 0.0
    %3104 = vmatpush1.xpose.msra.mxu0 %v3071
    %3105 = vmatprep.subr.mxu0 0.0
    %3106 = vmatpush2.xpose.msra.mxu0 0.0
    %3107 = vmatprep.subr.mxu0 0.0
    %3108 = vmatpush2.xpose.msra.mxu0 0.0
    %3109 = vmatprep.subr.mxu0 0.0
    %3110 = vmatpush2.xpose.msra.mxu0 0.0
    %3111 = vmatprep.subr.mxu0 0.0
    %3112 = vmatpush2.xpose.msra.mxu0 0.0
    %3113 = vmatprep.subr.mxu0 0.0
    %3114 = vmatpush2.xpose.msra.mxu0 0.0
    %3115 = vmatprep.subr.mxu0 0.0
    %3116 = vmatpush2.xpose.msra.mxu0 0.0
    %3117 = vmatprep.subr.mxu0 0.0
    %3118 = vmatpush2.xpose.msra.mxu0 0.0
    %3119 = vmatprep.subr.mxu0 0.0
    %3120 = vmatpush2.xpose.msra.mxu0 0.0
    %3121 = vmatprep.subr.mxu0 0.0
    %3122 = vmatpush2.xpose.msra.mxu0 0.0
    %3123 = vmatprep.subr.mxu0 0.0
    %3124 = vmatpush2.xpose.msra.mxu0 0.0
    %3125 = vmatprep.subr.mxu0 0.0
    %3126 = vmatpush2.xpose.msra.mxu0 0.0
    %3127 = vmatprep.subr.mxu0 0.0
    %3128 = vmatpush2.xpose.msra.mxu0 0.0
    %3129 = vmatprep.subr.mxu0 0.0
    %3130 = vmatpush2.xpose.msra.mxu0 0.0
    %3131 = vmatprep.subr.mxu0 0.0
    %3132 = vmatpush2.xpose.msra.mxu0 0.0
    %3133 = vmatprep.subr.mxu0 0.0
    %3134 = vmatpush2.xpose.msra.mxu0 0.0
    %3135 = vmatprep.subr.mxu0 0.0
    %3136 = vmatpush2.xpose.msra.mxu0 0.0
    %3137 = vmatprep.mubr.f32.mxu0 0.0
    %3138 = vmatmul.mubr.f32.gmra.mxu0 %v3069
    %v3139 = vpop.f32.mrf.mxu0
    %v3140 = vadd.f32 %v268, %v3139
    %v3141 = vpop.f32.mrf.mxu0
    %3142 = vdwg.mxu0
    %3143 = vrot.lane.b32.xlu0 %v2074, 104
    %v3144 = vpop.permute.xlu0 %3143
    %3145 = vrot.lane.b32.xlu0 %v2074, 72
    %v3146 = vpop.permute.xlu0 %3145
    %v3147 = vsel %vm278, %v3144, 0
    %v3149 = vsel %vm278, %v3146, 0
    %3151 = vmatprep.subr.mxu0 0.0
    %3152 = vmatpush1.xpose.msra.mxu0 0.0
    %3153 = vmatprep.subr.mxu0 0.0
    %3154 = vmatpush1.xpose.msra.mxu0 0.0
    %3155 = vmatprep.subr.mxu0 0.0
    %3156 = vmatpush1.xpose.msra.mxu0 0.0
    %3157 = vmatprep.subr.mxu0 0.0
    %3158 = vmatpush1.xpose.msra.mxu0 0.0
    %3159 = vmatprep.subr.mxu0 0.0
    %3160 = vmatpush1.xpose.msra.mxu0 0.0
    %3161 = vmatprep.subr.mxu0 0.0
    %3162 = vmatpush1.xpose.msra.mxu0 0.0
    %3163 = vmatprep.subr.mxu0 0.0
    %3164 = vmatpush1.xpose.msra.mxu0 0.0
    %3165 = vmatprep.subr.mxu0 0.0
    %3166 = vmatpush1.xpose.msra.mxu0 0.0
    %3167 = vmatprep.subr.mxu0 0.0
    %3168 = vmatpush1.xpose.msra.mxu0 0.0
    %3169 = vmatprep.subr.mxu0 0.0
    %3170 = vmatpush1.xpose.msra.mxu0 0.0
    %3171 = vmatprep.subr.mxu0 0.0
    %3172 = vmatpush1.xpose.msra.mxu0 0.0
    %3173 = vmatprep.subr.mxu0 0.0
    %3174 = vmatpush1.xpose.msra.mxu0 0.0
    %3175 = vmatprep.subr.mxu0 0.0
    %3176 = vmatpush1.xpose.msra.mxu0 0.0
    %3177 = vmatprep.subr.mxu0 0.0
    %3178 = vmatpush1.xpose.msra.mxu0 0.0
    %3179 = vmatprep.subr.mxu0 0.0
    %3180 = vmatpush1.xpose.msra.mxu0 0.0
    %3181 = vmatprep.subr.mxu0 0.0
    %3182 = vmatpush1.xpose.msra.mxu0 %v3149
    %3183 = vmatprep.subr.mxu0 0.0
    %3184 = vmatpush2.xpose.msra.mxu0 0.0
    %3185 = vmatprep.subr.mxu0 0.0
    %3186 = vmatpush2.xpose.msra.mxu0 0.0
    %3187 = vmatprep.subr.mxu0 0.0
    %3188 = vmatpush2.xpose.msra.mxu0 0.0
    %3189 = vmatprep.subr.mxu0 0.0
    %3190 = vmatpush2.xpose.msra.mxu0 0.0
    %3191 = vmatprep.subr.mxu0 0.0
    %3192 = vmatpush2.xpose.msra.mxu0 0.0
    %3193 = vmatprep.subr.mxu0 0.0
    %3194 = vmatpush2.xpose.msra.mxu0 0.0
    %3195 = vmatprep.subr.mxu0 0.0
    %3196 = vmatpush2.xpose.msra.mxu0 0.0
    %3197 = vmatprep.subr.mxu0 0.0
    %3198 = vmatpush2.xpose.msra.mxu0 0.0
    %3199 = vmatprep.subr.mxu0 0.0
    %3200 = vmatpush2.xpose.msra.mxu0 0.0
    %3201 = vmatprep.subr.mxu0 0.0
    %3202 = vmatpush2.xpose.msra.mxu0 0.0
    %3203 = vmatprep.subr.mxu0 0.0
    %3204 = vmatpush2.xpose.msra.mxu0 0.0
    %3205 = vmatprep.subr.mxu0 0.0
    %3206 = vmatpush2.xpose.msra.mxu0 0.0
    %3207 = vmatprep.subr.mxu0 0.0
    %3208 = vmatpush2.xpose.msra.mxu0 0.0
    %3209 = vmatprep.subr.mxu0 0.0
    %3210 = vmatpush2.xpose.msra.mxu0 0.0
    %3211 = vmatprep.subr.mxu0 0.0
    %3212 = vmatpush2.xpose.msra.mxu0 0.0
    %3213 = vmatprep.subr.mxu0 0.0
    %3214 = vmatpush2.xpose.msra.mxu0 0.0
    %3215 = vmatprep.mubr.f32.mxu0 0.0
    %3216 = vmatmul.mubr.f32.gmra.mxu0 %v3147
    %v3217 = vpop.f32.mrf.mxu0
    %v3218 = vadd.f32 %v272, %v3217
    %v3219 = vpop.f32.mrf.mxu0
    %3220 = vdwg.mxu0
    %v3221 = vsel %vm278, %v3140, -inf
    %3222 = vmax.xlane.f32.xlu0 %v3221
    %v3223 = vpop.xlane.xlu0 %3222
    %v3224 = vsel %vm278, %v3218, -inf
    %3225 = vmax.xlane.f32.xlu0 %v3224
    %v3226 = vpop.xlane.xlu0 %3225
    %v3227 = vsub.f32 %v3140, %v3223
    %v3228 = vsub.f32 %v3218, %v3226
    %v3229 = vmul.f32 %v3227, 1.442695
    %v3230 = vpow.pop %v3229
    %v3231 = vmul.f32 %v3228, 1.442695
    %v3232 = vpow.pop %v3231
    %v3233 = vsel %vm278, %v3230, 0.0
    %3234 = vadd.xlane.f32.xlu0 %v3233
    %v3235 = vpop.xlane.xlu0 %3234
    %v3236 = vsel %vm278, %v3232, 0.0
    %3237 = vadd.xlane.f32.xlu0 %v3236
    %v3238 = vpop.xlane.xlu0 %3237
    %v3239 = vrcp.pop %v3235
    %v3240 = vmul.f32 %v3230, %v3239
    %v3241 = vrcp.pop %v3238
    %v3242 = vmul.f32 %v3232, %v3241
    %3243 = vrot.lane.b32.xlu0 %v2069, 40
    %v3244 = vpop.permute.xlu0 %3243
    %v3247 = vsel %vm278, %v3240, 0
    %3249 = vmatprep.subr.mxu0 0.0
    %3250 = vmatpush1.msra.mxu0 0.0
    %3251 = vmatprep.subr.mxu0 0.0
    %3252 = vmatpush1.msra.mxu0 0.0
    %3253 = vmatprep.subr.mxu0 0.0
    %3254 = vmatpush1.msra.mxu0 0.0
    %3255 = vmatprep.subr.mxu0 0.0
    %3256 = vmatpush1.msra.mxu0 0.0
    %3257 = vmatprep.subr.mxu0 0.0
    %3258 = vmatpush1.msra.mxu0 0.0
    %3259 = vmatprep.subr.mxu0 0.0
    %3260 = vmatpush1.msra.mxu0 0.0
    %3261 = vmatprep.subr.mxu0 0.0
    %3262 = vmatpush1.msra.mxu0 0.0
    %3263 = vmatprep.subr.mxu0 0.0
    %3264 = vmatpush1.msra.mxu0 0.0
    %3265 = vmatprep.subr.mxu0 0.0
    %3266 = vmatpush1.msra.mxu0 0.0
    %3267 = vmatprep.subr.mxu0 0.0
    %3268 = vmatpush1.msra.mxu0 0.0
    %3269 = vmatprep.subr.mxu0 0.0
    %3270 = vmatpush1.msra.mxu0 0.0
    %3271 = vmatprep.subr.mxu0 0.0
    %3272 = vmatpush1.msra.mxu0 0.0
    %3273 = vmatprep.subr.mxu0 0.0
    %3274 = vmatpush1.msra.mxu0 0.0
    %3275 = vmatprep.subr.mxu0 0.0
    %3276 = vmatpush1.msra.mxu0 0.0
    %3277 = vmatprep.subr.mxu0 0.0
    %3278 = vmatpush1.msra.mxu0 0.0
    %3279 = vmatprep.subr.mxu0 0.0
    %3280 = vmatpush1.msra.mxu0 %v3244
    %3281 = vmatprep.subr.mxu0 0.0
    %3282 = vmatpush2.msra.mxu0 0.0
    %3283 = vmatprep.subr.mxu0 0.0
    %3284 = vmatpush2.msra.mxu0 0.0
    %3285 = vmatprep.subr.mxu0 0.0
    %3286 = vmatpush2.msra.mxu0 0.0
    %3287 = vmatprep.subr.mxu0 0.0
    %3288 = vmatpush2.msra.mxu0 0.0
    %3289 = vmatprep.subr.mxu0 0.0
    %3290 = vmatpush2.msra.mxu0 0.0
    %3291 = vmatprep.subr.mxu0 0.0
    %3292 = vmatpush2.msra.mxu0 0.0
    %3293 = vmatprep.subr.mxu0 0.0
    %3294 = vmatpush2.msra.mxu0 0.0
    %3295 = vmatprep.subr.mxu0 0.0
    %3296 = vmatpush2.msra.mxu0 0.0
    %3297 = vmatprep.subr.mxu0 0.0
    %3298 = vmatpush2.msra.mxu0 0.0
    %3299 = vmatprep.subr.mxu0 0.0
    %3300 = vmatpush2.msra.mxu0 0.0
    %3301 = vmatprep.subr.mxu0 0.0
    %3302 = vmatpush2.msra.mxu0 0.0
    %3303 = vmatprep.subr.mxu0 0.0
    %3304 = vmatpush2.msra.mxu0 0.0
    %3305 = vmatprep.subr.mxu0 0.0
    %3306 = vmatpush2.msra.mxu0 0.0
    %3307 = vmatprep.subr.mxu0 0.0
    %3308 = vmatpush2.msra.mxu0 0.0
    %3309 = vmatprep.subr.mxu0 0.0
    %3310 = vmatpush2.msra.mxu0 0.0
    %3311 = vmatprep.subr.mxu0 0.0
    %3312 = vmatpush2.msra.mxu0 0.0
    %3313 = vmatprep.mubr.f32.mxu0 0.0
    %3314 = vmatmul.mubr.f32.gmra.mxu0 %v3247
    %v3315 = vpop.f32.mrf.mxu0
    %v3316 = vadd.f32 0.0, %v3315
    %v3317 = vpop.f32.mrf.mxu0
    %3318 = vdwg.mxu0
    %3319 = vrot.lane.b32.xlu0 %v2074, 40
    %v3320 = vpop.permute.xlu0 %3319
    %v3323 = vsel %vm278, %v3242, 0
    %3325 = vmatprep.subr.mxu0 0.0
    %3326 = vmatpush1.msra.mxu0 0.0
    %3327 = vmatprep.subr.mxu0 0.0
    %3328 = vmatpush1.msra.mxu0 0.0
    %3329 = vmatprep.subr.mxu0 0.0
    %3330 = vmatpush1.msra.mxu0 0.0
    %3331 = vmatprep.subr.mxu0 0.0
    %3332 = vmatpush1.msra.mxu0 0.0
    %3333 = vmatprep.subr.mxu0 0.0
    %3334 = vmatpush1.msra.mxu0 0.0
    %3335 = vmatprep.subr.mxu0 0.0
    %3336 = vmatpush1.msra.mxu0 0.0
    %3337 = vmatprep.subr.mxu0 0.0
    %3338 = vmatpush1.msra.mxu0 0.0
    %3339 = vmatprep.subr.mxu0 0.0
    %3340 = vmatpush1.msra.mxu0 0.0
    %3341 = vmatprep.subr.mxu0 0.0
    %3342 = vmatpush1.msra.mxu0 0.0
    %3343 = vmatprep.subr.mxu0 0.0
    %3344 = vmatpush1.msra.mxu0 0.0
    %3345 = vmatprep.subr.mxu0 0.0
    %3346 = vmatpush1.msra.mxu0 0.0
    %3347 = vmatprep.subr.mxu0 0.0
    %3348 = vmatpush1.msra.mxu0 0.0
    %3349 = vmatprep.subr.mxu0 0.0
    %3350 = vmatpush1.msra.mxu0 0.0
    %3351 = vmatprep.subr.mxu0 0.0
    %3352 = vmatpush1.msra.mxu0 0.0
    %3353 = vmatprep.subr.mxu0 0.0
    %3354 = vmatpush1.msra.mxu0 0.0
    %3355 = vmatprep.subr.mxu0 0.0
    %3356 = vmatpush1.msra.mxu0 %v3320
    %3357 = vmatprep.subr.mxu0 0.0
    %3358 = vmatpush2.msra.mxu0 0.0
    %3359 = vmatprep.subr.mxu0 0.0
    %3360 = vmatpush2.msra.mxu0 0.0
    %3361 = vmatprep.subr.mxu0 0.0
    %3362 = vmatpush2.msra.mxu0 0.0
    %3363 = vmatprep.subr.mxu0 0.0
    %3364 = vmatpush2.msra.mxu0 0.0
    %3365 = vmatprep.subr.mxu0 0.0
    %3366 = vmatpush2.msra.mxu0 0.0
    %3367 = vmatprep.subr.mxu0 0.0
    %3368 = vmatpush2.msra.mxu0 0.0
    %3369 = vmatprep.subr.mxu0 0.0
    %3370 = vmatpush2.msra.mxu0 0.0
    %3371 = vmatprep.subr.mxu0 0.0
    %3372 = vmatpush2.msra.mxu0 0.0
    %3373 = vmatprep.subr.mxu0 0.0
    %3374 = vmatpush2.msra.mxu0 0.0
    %3375 = vmatprep.subr.mxu0 0.0
    %3376 = vmatpush2.msra.mxu0 0.0
    %3377 = vmatprep.subr.mxu0 0.0
    %3378 = vmatpush2.msra.mxu0 0.0
    %3379 = vmatprep.subr.mxu0 0.0
    %3380 = vmatpush2.msra.mxu0 0.0
    %3381 = vmatprep.subr.mxu0 0.0
    %3382 = vmatpush2.msra.mxu0 0.0
    %3383 = vmatprep.subr.mxu0 0.0
    %3384 = vmatpush2.msra.mxu0 0.0
    %3385 = vmatprep.subr.mxu0 0.0
    %3386 = vmatpush2.msra.mxu0 0.0
    %3387 = vmatprep.subr.mxu0 0.0
    %3388 = vmatpush2.msra.mxu0 0.0
    %3389 = vmatprep.mubr.f32.mxu0 0.0
    %3390 = vmatmul.mubr.f32.gmra.mxu0 %v3323
    %v3391 = vpop.f32.mrf.mxu0
    %v3392 = vadd.f32 0.0, %v3391
    %v3393 = vpop.f32.mrf.mxu0
    %3394 = vdwg.mxu0
    %3397 = vrot.lane.b32.xlu0 %v2656, 8
    %v3398 = vpop.permute.xlu0 %3397
    %3399 = vrot.lane.b32.xlu0 %v2732, 8
    %v3400 = vpop.permute.xlu0 %3399
    %3405 = vrot.lane.b32.xlu0 %v2986, 16
    %v3406 = vpop.permute.xlu0 %3405
    %3407 = vrot.lane.b32.xlu0 %v3062, 16
    %v3408 = vpop.permute.xlu0 %3407
    %3413 = vrot.lane.b32.xlu0 %v3316, 24
    %v3414 = vpop.permute.xlu0 %3413
    %3415 = vrot.lane.b32.xlu0 %v3392, 24
    %v3416 = vpop.permute.xlu0 %3415
    %v3419 = vsel %vm278, %v2326, %v3398
    %v3420 = vsel %vm278, %v2402, %v3400
    %v3421 = vsel %vm1620, %v3419, %v3406
    %v3422 = vsel %vm1620, %v3420, %v3408
    %v3423 = vsel %vm1623, %v3421, %v3414
    %v3424 = vsel %vm1623, %v3422, %v3416
    %s3425 = scalar_lea.vmem %s6, 32
    %v3426 = vld [vmem:[%s3425] sm:$0xff]
    %v3427 = vld [vmem:[%s3425 + $0x8] sm:$0xff]
    %v3428 = vld [vmem:[%s3425 + $0x10] sm:$0xff]
    %v3429 = vld [vmem:[%s3425 + $0x18] sm:$0xff]
    %v3430 = vlaneseq
    %v3431 = vshrl.u32 %v3430, 7
    %v3432 = vsub.s32 0, %v3431
    %v3433 = vrot.slane %v1982, %v3432
    %v3435 = vsel %vm183, %v3423, 0
    %v3438 = vsel %vm183, %v3424, 0
    %3440 = vmatprep.subr.mxu0 0.0
    %3441 = vmatpush1.msra.mxu0 0.0
    %3442 = vmatprep.subr.mxu0 0.0
    %3443 = vmatpush1.msra.mxu0 0.0
    %3444 = vmatprep.subr.mxu0 0.0
    %3445 = vmatpush1.msra.mxu0 0.0
    %3446 = vmatprep.subr.mxu0 0.0
    %3447 = vmatpush1.msra.mxu0 0.0
    %3448 = vmatprep.subr.mxu0 0.0
    %3449 = vmatpush1.msra.mxu0 0.0
    %3450 = vmatprep.subr.mxu0 0.0
    %3451 = vmatpush1.msra.mxu0 0.0
    %3452 = vmatprep.subr.mxu0 0.0
    %3453 = vmatpush1.msra.mxu0 0.0
    %3454 = vmatprep.subr.mxu0 0.0
    %3455 = vmatpush1.msra.mxu0 0.0
    %3456 = vmatprep.subr.mxu0 0.0
    %3457 = vmatpush1.msra.mxu0 0.0
    %3458 = vmatprep.subr.mxu0 0.0
    %3459 = vmatpush1.msra.mxu0 0.0
    %3460 = vmatprep.subr.mxu0 0.0
    %3461 = vmatpush1.msra.mxu0 0.0
    %3462 = vmatprep.subr.mxu0 0.0
    %3463 = vmatpush1.msra.mxu0 0.0
    %3464 = vmatprep.subr.mxu0 0.0
    %3465 = vmatpush1.msra.mxu0 %v3429
    %3466 = vmatprep.subr.mxu0 0.0
    %3467 = vmatpush1.msra.mxu0 %v3428
    %3468 = vmatprep.subr.mxu0 0.0
    %3469 = vmatpush1.msra.mxu0 %v3427
    %3470 = vmatprep.subr.mxu0 0.0
    %3471 = vmatpush1.msra.mxu0 %v3426
    %3472 = vmatprep.subr.mxu0 0.0
    %3473 = vmatpush2.msra.mxu0 0.0
    %3474 = vmatprep.subr.mxu0 0.0
    %3475 = vmatpush2.msra.mxu0 0.0
    %3476 = vmatprep.subr.mxu0 0.0
    %3477 = vmatpush2.msra.mxu0 0.0
    %3478 = vmatprep.subr.mxu0 0.0
    %3479 = vmatpush2.msra.mxu0 0.0
    %3480 = vmatprep.subr.mxu0 0.0
    %3481 = vmatpush2.msra.mxu0 0.0
    %3482 = vmatprep.subr.mxu0 0.0
    %3483 = vmatpush2.msra.mxu0 0.0
    %3484 = vmatprep.subr.mxu0 0.0
    %3485 = vmatpush2.msra.mxu0 0.0
    %3486 = vmatprep.subr.mxu0 0.0
    %3487 = vmatpush2.msra.mxu0 0.0
    %3488 = vmatprep.subr.mxu0 0.0
    %3489 = vmatpush2.msra.mxu0 0.0
    %3490 = vmatprep.subr.mxu0 0.0
    %3491 = vmatpush2.msra.mxu0 0.0
    %3492 = vmatprep.subr.mxu0 0.0
    %3493 = vmatpush2.msra.mxu0 0.0
    %3494 = vmatprep.subr.mxu0 0.0
    %3495 = vmatpush2.msra.mxu0 0.0
    %3496 = vmatprep.subr.mxu0 0.0
    %3497 = vmatpush2.msra.mxu0 0.0
    %3498 = vmatprep.subr.mxu0 0.0
    %3499 = vmatpush2.msra.mxu0 0.0
    %3500 = vmatprep.subr.mxu0 0.0
    %3501 = vmatpush2.msra.mxu0 0.0
    %3502 = vmatprep.subr.mxu0 0.0
    %3503 = vmatpush2.msra.mxu0 0.0
    %3504 = vmatprep.mubr.f32.mxu0 0.0
    %3505 = vmatmul.mubr.f32.gmra.mxu0 %v3435
    %v3506 = vpop.f32.mrf.mxu0
    %v3507 = vadd.f32 %v3433, %v3506
    %v3508 = vpop.f32.mrf.mxu0
    %3509 = vmatprep.mubr.f32.mxu0 0.0
    %3510 = vmatmul.mubr.f32.gmra.mxu0 %v3438
    %v3511 = vpop.f32.mrf.mxu0
    %v3512 = vadd.f32 %v3433, %v3511
    %v3513 = vpop.f32.mrf.mxu0
    %3514 = vdwg.mxu0
    %v3515 = vadd.f32 %v1979, %v3507
    %v3516 = vadd.f32 %v1980, %v3512
    %v3517 = vsel %vm183, %v3515, 0.0
    %3518 = vadd.xlane.f32.xlu0 %v3517
    %v3519 = vpop.xlane.xlu0 %3518
    %v3520 = vsel %vm183, %v3516, 0.0
    %3521 = vadd.xlane.f32.xlu0 %v3520
    %v3522 = vpop.xlane.xlu0 %3521
    %v3523 = vmul.f32 %v3519, %v1723
    %v3524 = vmul.f32 %v3522, %v1723
    %v3525 = vsub.f32 %v3515, %v3523
    %v3526 = vsub.f32 %v3516, %v3524
    %v3527 = vmul.f32 %v3525, %v3525
    %v3528 = vmul.f32 %v3526, %v3526
    %v3529 = vsel %vm183, %v3527, 0.0
    %3530 = vadd.xlane.f32.xlu0 %v3529
    %v3531 = vpop.xlane.xlu0 %3530
    %v3532 = vsel %vm183, %v3528, 0.0
    %3533 = vadd.xlane.f32.xlu0 %v3532
    %v3534 = vpop.xlane.xlu0 %3533
    %v3535 = vmul.f32 %v3531, %v1723
    %v3536 = vmul.f32 %v3534, %v1723
    %v3537 = vadd.f32 %v3535, 1e-05
    %v3538 = vadd.f32 %v3536, 1e-05
    %v3539 = vrsqrt.pop %v3537
    %v3540 = vrsqrt.pop %v3538
    %v3541 = vmul.f32 %v3525, %v3539
    %v3542 = vmul.f32 %v3526, %v3540
    %v3543 = vlaneseq
    %v3544 = vshrl.u32 %v3543, 7
    %v3545 = vsub.s32 1, %v3544
    %v3546 = vrot.slane %v1982, %v3545
    %v3547 = vmul.f32 %v3541, %v3546
    %v3548 = vmul.f32 %v3542, %v3546
    %v3549 = vlaneseq
    %v3550 = vshrl.u32 %v3549, 7
    %v3551 = vsub.s32 2, %v3550
    %v3552 = vrot.slane %v1982, %v3551
    %v3553 = vadd.f32 %v3547, %v3552
    %v3554 = vadd.f32 %v3548, %v3552
    %s3555 = scalar_lea.vmem %s7, 32
    %v3556 = vld [vmem:[%s3555] sm:$0xff]
    %v3557 = vld [vmem:[%s3555 + $0x8] sm:$0xff]
    %v3558 = vld [vmem:[%s3555 + $0x10] sm:$0xff]
    %v3559 = vld [vmem:[%s3555 + $0x18] sm:$0xff]
    %v3560 = vlaneseq
    %v3561 = vshrl.u32 %v3560, 7
    %v3562 = vsub.s32 3, %v3561
    %v3563 = vrot.slane %v1982, %v3562
    %v3565 = vsel %vm183, %v3553, 0
    %v3568 = vsel %vm183, %v3554, 0
    %3570 = vmatprep.subr.mxu0 0.0
    %3571 = vmatpush1.msra.mxu0 0.0
    %3572 = vmatprep.subr.mxu0 0.0
    %3573 = vmatpush1.msra.mxu0 0.0
    %3574 = vmatprep.subr.mxu0 0.0
    %3575 = vmatpush1.msra.mxu0 0.0
    %3576 = vmatprep.subr.mxu0 0.0
    %3577 = vmatpush1.msra.mxu0 0.0
    %3578 = vmatprep.subr.mxu0 0.0
    %3579 = vmatpush1.msra.mxu0 0.0
    %3580 = vmatprep.subr.mxu0 0.0
    %3581 = vmatpush1.msra.mxu0 0.0
    %3582 = vmatprep.subr.mxu0 0.0
    %3583 = vmatpush1.msra.mxu0 0.0
    %3584 = vmatprep.subr.mxu0 0.0
    %3585 = vmatpush1.msra.mxu0 0.0
    %3586 = vmatprep.subr.mxu0 0.0
    %3587 = vmatpush1.msra.mxu0 0.0
    %3588 = vmatprep.subr.mxu0 0.0
    %3589 = vmatpush1.msra.mxu0 0.0
    %3590 = vmatprep.subr.mxu0 0.0
    %3591 = vmatpush1.msra.mxu0 0.0
    %3592 = vmatprep.subr.mxu0 0.0
    %3593 = vmatpush1.msra.mxu0 0.0
    %3594 = vmatprep.subr.mxu0 0.0
    %3595 = vmatpush1.msra.mxu0 %v3559
    %3596 = vmatprep.subr.mxu0 0.0
    %3597 = vmatpush1.msra.mxu0 %v3558
    %3598 = vmatprep.subr.mxu0 0.0
    %3599 = vmatpush1.msra.mxu0 %v3557
    %3600 = vmatprep.subr.mxu0 0.0
    %3601 = vmatpush1.msra.mxu0 %v3556
    %3602 = vmatprep.subr.mxu0 0.0
    %3603 = vmatpush2.msra.mxu0 0.0
    %3604 = vmatprep.subr.mxu0 0.0
    %3605 = vmatpush2.msra.mxu0 0.0
    %3606 = vmatprep.subr.mxu0 0.0
    %3607 = vmatpush2.msra.mxu0 0.0
    %3608 = vmatprep.subr.mxu0 0.0
    %3609 = vmatpush2.msra.mxu0 0.0
    %3610 = vmatprep.subr.mxu0 0.0
    %3611 = vmatpush2.msra.mxu0 0.0
    %3612 = vmatprep.subr.mxu0 0.0
    %3613 = vmatpush2.msra.mxu0 0.0
    %3614 = vmatprep.subr.mxu0 0.0
    %3615 = vmatpush2.msra.mxu0 0.0
    %3616 = vmatprep.subr.mxu0 0.0
    %3617 = vmatpush2.msra.mxu0 0.0
    %3618 = vmatprep.subr.mxu0 0.0
    %3619 = vmatpush2.msra.mxu0 0.0
    %3620 = vmatprep.subr.mxu0 0.0
    %3621 = vmatpush2.msra.mxu0 0.0
    %3622 = vmatprep.subr.mxu0 0.0
    %3623 = vmatpush2.msra.mxu0 0.0
    %3624 = vmatprep.subr.mxu0 0.0
    %3625 = vmatpush2.msra.mxu0 0.0
    %3626 = vmatprep.subr.mxu0 0.0
    %3627 = vmatpush2.msra.mxu0 0.0
    %3628 = vmatprep.subr.mxu0 0.0
    %3629 = vmatpush2.msra.mxu0 0.0
    %3630 = vmatprep.subr.mxu0 0.0
    %3631 = vmatpush2.msra.mxu0 0.0
    %3632 = vmatprep.subr.mxu0 0.0
    %3633 = vmatpush2.msra.mxu0 0.0
    %3634 = vmatprep.mubr.f32.mxu0 0.0
    %3635 = vmatmul.mubr.f32.gmra.mxu0 %v3565
    %v3636 = vpop.f32.mrf.mxu0
    %v3637 = vadd.f32 %v3563, %v3636
    %v3638 = vpop.f32.mrf.mxu0
    %3639 = vmatprep.mubr.f32.mxu0 0.0
    %3640 = vmatmul.mubr.f32.gmra.mxu0 %v3568
    %v3641 = vpop.f32.mrf.mxu0
    %v3642 = vadd.f32 %v3563, %v3641
    %v3643 = vpop.f32.mrf.mxu0
    %3644 = vdwg.mxu0
    %v3645 = vmax.f32 %v3637, 0.0
    %v3646 = vmax.f32 %v3642, 0.0
    %s3647 = scalar_lea.vmem %s8, 64
    %v3648 = vld [vmem:[%s3647] sm:$0xff]
    %v3649 = vld [vmem:[%s3647 + $0x8] sm:$0xff]
    %v3650 = vld [vmem:[%s3647 + $0x10] sm:$0xff]
    %v3651 = vld [vmem:[%s3647 + $0x18] sm:$0xff]
    %v3652 = vld [vmem:[%s3647 + $0x20] sm:$0xff]
    %v3653 = vld [vmem:[%s3647 + $0x28] sm:$0xff]
    %v3654 = vld [vmem:[%s3647 + $0x30] sm:$0xff]
    %v3655 = vld [vmem:[%s3647 + $0x38] sm:$0xff]
    %v3656 = vlaneseq
    %v3657 = vshrl.u32 %v3656, 7
    %v3658 = vsub.s32 4, %v3657
    %v3659 = vrot.slane %v1982, %v3658
    %v3661 = vsel %vm1859, %v3645, 0
    %v3664 = vsel %vm1859, %v3646, 0
    %3666 = vmatprep.subr.mxu0 0.0
    %3667 = vmatpush1.msra.mxu0 0.0
    %3668 = vmatprep.subr.mxu0 0.0
    %3669 = vmatpush1.msra.mxu0 0.0
    %3670 = vmatprep.subr.mxu0 0.0
    %3671 = vmatpush1.msra.mxu0 0.0
    %3672 = vmatprep.subr.mxu0 0.0
    %3673 = vmatpush1.msra.mxu0 0.0
    %3674 = vmatprep.subr.mxu0 0.0
    %3675 = vmatpush1.msra.mxu0 0.0
    %3676 = vmatprep.subr.mxu0 0.0
    %3677 = vmatpush1.msra.mxu0 0.0
    %3678 = vmatprep.subr.mxu0 0.0
    %3679 = vmatpush1.msra.mxu0 0.0
    %3680 = vmatprep.subr.mxu0 0.0
    %3681 = vmatpush1.msra.mxu0 0.0
    %3682 = vmatprep.subr.mxu0 0.0
    %3683 = vmatpush1.msra.mxu0 %v3655
    %3684 = vmatprep.subr.mxu0 0.0
    %3685 = vmatpush1.msra.mxu0 %v3654
    %3686 = vmatprep.subr.mxu0 0.0
    %3687 = vmatpush1.msra.mxu0 %v3653
    %3688 = vmatprep.subr.mxu0 0.0
    %3689 = vmatpush1.msra.mxu0 %v3652
    %3690 = vmatprep.subr.mxu0 0.0
    %3691 = vmatpush1.msra.mxu0 %v3651
    %3692 = vmatprep.subr.mxu0 0.0
    %3693 = vmatpush1.msra.mxu0 %v3650
    %3694 = vmatprep.subr.mxu0 0.0
    %3695 = vmatpush1.msra.mxu0 %v3649
    %3696 = vmatprep.subr.mxu0 0.0
    %3697 = vmatpush1.msra.mxu0 %v3648
    %3698 = vmatprep.subr.mxu0 0.0
    %3699 = vmatpush2.msra.mxu0 0.0
    %3700 = vmatprep.subr.mxu0 0.0
    %3701 = vmatpush2.msra.mxu0 0.0
    %3702 = vmatprep.subr.mxu0 0.0
    %3703 = vmatpush2.msra.mxu0 0.0
    %3704 = vmatprep.subr.mxu0 0.0
    %3705 = vmatpush2.msra.mxu0 0.0
    %3706 = vmatprep.subr.mxu0 0.0
    %3707 = vmatpush2.msra.mxu0 0.0
    %3708 = vmatprep.subr.mxu0 0.0
    %3709 = vmatpush2.msra.mxu0 0.0
    %3710 = vmatprep.subr.mxu0 0.0
    %3711 = vmatpush2.msra.mxu0 0.0
    %3712 = vmatprep.subr.mxu0 0.0
    %3713 = vmatpush2.msra.mxu0 0.0
    %3714 = vmatprep.subr.mxu0 0.0
    %3715 = vmatpush2.msra.mxu0 0.0
    %3716 = vmatprep.subr.mxu0 0.0
    %3717 = vmatpush2.msra.mxu0 0.0
    %3718 = vmatprep.subr.mxu0 0.0
    %3719 = vmatpush2.msra.mxu0 0.0
    %3720 = vmatprep.subr.mxu0 0.0
    %3721 = vmatpush2.msra.mxu0 0.0
    %3722 = vmatprep.subr.mxu0 0.0
    %3723 = vmatpush2.msra.mxu0 0.0
    %3724 = vmatprep.subr.mxu0 0.0
    %3725 = vmatpush2.msra.mxu0 0.0
    %3726 = vmatprep.subr.mxu0 0.0
    %3727 = vmatpush2.msra.mxu0 0.0
    %3728 = vmatprep.subr.mxu0 0.0
    %3729 = vmatpush2.msra.mxu0 0.0
    %3730 = vmatprep.mubr.f32.mxu0 0.0
    %3731 = vmatmul.mubr.f32.gmra.mxu0 %v3661
    %v3732 = vpop.f32.mrf.mxu0
    %v3733 = vadd.f32 %v3659, %v3732
    %v3734 = vpop.f32.mrf.mxu0
    %3735 = vmatprep.mubr.f32.mxu0 0.0
    %3736 = vmatmul.mubr.f32.gmra.mxu0 %v3664
    %v3737 = vpop.f32.mrf.mxu0
    %v3738 = vadd.f32 %v3659, %v3737
    %v3739 = vpop.f32.mrf.mxu0
    %3740 = vdwg.mxu0
    %v3741 = vadd.f32 %v3553, %v3733
    %v3742 = vadd.f32 %v3554, %v3738
    %v3743 = vsel %vm183, %v3741, 0.0
    %3744 = vadd.xlane.f32.xlu0 %v3743
    %v3745 = vpop.xlane.xlu0 %3744
    %v3746 = vsel %vm183, %v3742, 0.0
    %3747 = vadd.xlane.f32.xlu0 %v3746
    %v3748 = vpop.xlane.xlu0 %3747
    %v3749 = vmul.f32 %v3745, %v1723
    %v3750 = vmul.f32 %v3748, %v1723
    %v3751 = vsub.f32 %v3741, %v3749
    %v3752 = vsub.f32 %v3742, %v3750
    %v3753 = vmul.f32 %v3751, %v3751
    %v3754 = vmul.f32 %v3752, %v3752
    %v3755 = vsel %vm183, %v3753, 0.0
    %3756 = vadd.xlane.f32.xlu0 %v3755
    %v3757 = vpop.xlane.xlu0 %3756
    %v3758 = vsel %vm183, %v3754, 0.0
    %3759 = vadd.xlane.f32.xlu0 %v3758
    %v3760 = vpop.xlane.xlu0 %3759
    %v3761 = vmul.f32 %v3757, %v1723
    %v3762 = vmul.f32 %v3760, %v1723
    %v3763 = vadd.f32 %v3761, 1e-05
    %v3764 = vadd.f32 %v3762, 1e-05
    %v3765 = vrsqrt.pop %v3763
    %v3766 = vrsqrt.pop %v3764
    %v3767 = vmul.f32 %v3751, %v3765
    %v3768 = vmul.f32 %v3752, %v3766
    %v3769 = vlaneseq
    %v3770 = vshrl.u32 %v3769, 7
    %v3771 = vsub.s32 5, %v3770
    %v3772 = vrot.slane %v1982, %v3771
    %v3773 = vmul.f32 %v3767, %v3772
    %v3774 = vmul.f32 %v3768, %v3772
    %v3775 = vlaneseq
    %v3776 = vshrl.u32 %v3775, 7
    %v3777 = vsub.s32 6, %v3776
    %v3778 = vrot.slane %v1982, %v3777
    %v3779 = vadd.f32 %v3773, %v3778
    %v3780 = vadd.f32 %v3774, %v3778
    %3781 = vst.msk [vmem:[#allocation2] sm:$0xff] %vm183, %v3779
    %3782 = vst.msk [vmem:[#allocation2 + $0x8] sm:$0xff] %vm183, %v3780
    // Predicated region
    $region42: #{tpu_custom_call.1} parent=1 // pred_check
      _
    $region43: #{tpu_custom_call.1} parent=1 // pred_check_branch
      %3784 = sbr.rel (0) target = $region45
    $region44: #{tpu_custom_call.1} parent=1 // pred_region
      %s3786 = ssub.s32 256, 256
      %3787 = vsyncadd [#allocation3], %s3786
      %s3788 = sshll.u32 [#allocation2], 4
      %s3789 = int_to_ptr.vmem [resolvable:$true] %s3788
      %3794 = dma.vmem_to_hbm [thread:$0]  %s3789, 256, %s10, [#allocation3], 128, 128, 8
    $region45: #{tpu_custom_call.1} parent=1 // pred_fallthru
      _
    // Predicated region
    $region46: #{tpu_custom_call.1} parent=1 // pred_check
      _
    $region47: #{tpu_custom_call.1} parent=1 // pred_check_branch
      %3796 = sbr.rel (0) target = $region49
    $region48: #{tpu_custom_call.1} parent=1 // pred_region
      %3797 = dma.done [#allocation3], 256
    $region49: #{tpu_custom_call.1} parent=1 // pred_fallthru
      _
    %3798 = vsyncpa [#allocation3], 1

</llo_original>
